<compile_context>
chip_gen: v6e
topology: v6e:2x2x1
jax: 0.10.0
libtpu: 0.0.40
codegen_flags: <defaults>
</compile_context>

<pallas_src>
import functools

import jax
import jax.numpy as jnp
from jax.experimental import pallas as pl
from jax.experimental.pallas import tpu as pltpu


# ----------------------------------------------------------------------------
# helpers / generation-aware tuning
# ----------------------------------------------------------------------------
def _round_up(x, m):
    return (x + m - 1) // m * m


def _tpu_vmem_capacity():
    try:
        return int(pltpu.get_tpu_info().vmem_capacity_bytes)
    except Exception:
        return 64 * 1024 * 1024  # conservative fallback (v7x per-core VMEM)


_VMEM_CAP = _tpu_vmem_capacity()
# ~48 MiB scoped limit on v7x (64 MiB physical), ~96 MiB on v5e/v6e (128 MiB).
_VMEM_LIMIT = max(32 * 1024 * 1024,
                  min(int(_VMEM_CAP * 0.75), _VMEM_CAP - 8 * 1024 * 1024))
_MIN_GRID_STEPS = 8  # >= 3-4 steps per TensorCore on v7x's 2-TC megacore

_TM_CANDS = (8192, 4096, 2048, 1024, 512, 256, 128, 64, 32, 16, 8)


def _pick_tm(M, bytes_per_row, budget_bytes, min_steps=_MIN_GRID_STEPS):
    """Row tile for the 1x1 kernels: biggest that fits, but keep grid depth."""
    cands = [t for t in _TM_CANDS if M % t == 0]
    if not cands:
        # TODO(synk): pad M to a multiple of 8 instead of one whole-M block.
        return M
    fit = [t for t in cands if t * bytes_per_row <= budget_bytes] or [cands[-1]]
    for ms in (min_steps, 4, 2, 1):
        pref = [t for t in fit if M // t >= ms]
        if pref:
            return pref[0]
    return fit[0]


def _pick_th(N, H, W, bytes_per_row, budget_bytes, min_steps=_MIN_GRID_STEPS):
    """Rows per spatial tile for the bottleneck kernel (halo-extended)."""
    cands = [t for t in range(H, 0, -1) if H % t == 0 and (t * W) % 8 == 0]
    if not cands:
        return H
    fit = [t for t in cands if (t + 2) * W * bytes_per_row <= budget_bytes]
    fit = fit or [cands[-1]]
    for ms in (min_steps, 4, 2, 1):
        pref = [t for t in fit if N * (H // t) >= ms]
        if pref:
            return pref[0]
    return fit[0]


def _silu(z_f32):
    # exp and reciprocal both live on the EUP slot (free relative to VPU/MXU).
    return z_f32 * pl.reciprocal(1.0 + jnp.exp(-z_f32), approx=True)


def _bn_silu(acc_f32, scale, bias):
    """Folded-BN + SiLU epilogue in f32 (v5e has no bf16 VPU/EUP)."""
    return _silu(acc_f32 * scale + bias)


# ----------------------------------------------------------------------------
# Kernel 1: fused cv1 & cv2 — ONE matmul over x against the concatenated
#           (Cin, 2*hp) weight, pad + bf16 cast of x folded into the kernel.
# ----------------------------------------------------------------------------
def _conv1x1_cv12_kernel(x_ref, w_ref, s_ref, b_ref, o1_ref, o2_ref):
    hp = o1_ref.shape[1]
    x = x_ref[...].astype(jnp.bfloat16)            # (TM, Cin) f32 -> bf16
    act = _bn_silu(jnp.dot(x, w_ref[...], preferred_element_type=jnp.float32),
                   s_ref[...], b_ref[...])
    o1_ref[...] = act[:, :hp].astype(o1_ref.dtype)
    o2_ref[...] = act[:, hp:].astype(o2_ref.dtype)


def conv1x1_cv12(x, w12, s12, b12):
    M, cin = x.shape
    hp2 = w12.shape[1]
    hp = hp2 // 2
    bytes_per_row = 8 * cin + 24 * hp
    TM = _pick_tm(M, bytes_per_row, _VMEM_LIMIT // 2)
    const = lambda i: (0, 0)
    return pl.pallas_call(
        _conv1x1_cv12_kernel,
        out_shape=(jax.ShapeDtypeStruct((M, hp), jnp.bfloat16),
                   jax.ShapeDtypeStruct((M, hp), jnp.bfloat16)),
        grid_spec=pltpu.PrefetchScalarGridSpec(
            num_scalar_prefetch=0,
            grid=(M // TM,),
            in_specs=[
                pl.BlockSpec((TM, cin), lambda i: (i, 0)),
                pl.BlockSpec((cin, hp2), const),
                pl.BlockSpec((1, hp2), const),
                pl.BlockSpec((1, hp2), const),
            ],
            out_specs=[pl.BlockSpec((TM, hp), lambda i: (i, 0)),
                       pl.BlockSpec((TM, hp), lambda i: (i, 0))],
        ),
        compiler_params=pltpu.CompilerParams(
            dimension_semantics=("parallel",),
            vmem_limit_bytes=_VMEM_LIMIT),
    )(x, w12, s12, b12)


# ----------------------------------------------------------------------------
# Kernel 2: cv3 over the implicit concat(y1, y2) — single K = 2*hp contraction,
#           emits the sliced f32 (M, Cout) output directly.
# ----------------------------------------------------------------------------
def _conv1x1_cv3_kernel(a_ref, b_ref, w_ref, s_ref, bias_ref, o_ref):
    ab = jnp.concatenate([a_ref[...], b_ref[...]], axis=1)    # (TM, 2*hp) bf16
    acc = jnp.dot(ab, w_ref[...], preferred_element_type=jnp.float32)
    o_ref[...] = _bn_silu(acc, s_ref[...], bias_ref[...]).astype(o_ref.dtype)


def conv1x1_cv3(a, b, w, scale, bias):
    M, hp = a.shape
    cout = w.shape[1]
    bytes_per_row = 12 * hp + 12 * cout
    TM = _pick_tm(M, bytes_per_row, _VMEM_LIMIT // 2)
    const = lambda i: (0, 0)
    return pl.pallas_call(
        _conv1x1_cv3_kernel,
        out_shape=jax.ShapeDtypeStruct((M, cout), jnp.float32),
        grid_spec=pltpu.PrefetchScalarGridSpec(
            num_scalar_prefetch=0,
            grid=(M // TM,),
            in_specs=[
                pl.BlockSpec((TM, hp), lambda i: (i, 0)),
                pl.BlockSpec((TM, hp), lambda i: (i, 0)),
                pl.BlockSpec((2 * hp, cout), const),
                pl.BlockSpec((1, cout), const),
                pl.BlockSpec((1, cout), const),
            ],
            out_specs=pl.BlockSpec((TM, cout), lambda i: (i, 0)),
        ),
        compiler_params=pltpu.CompilerParams(
            dimension_semantics=("parallel",),
            vmem_limit_bytes=_VMEM_LIMIT),
    )(a, b, w, scale, bias)


# ----------------------------------------------------------------------------
# Kernel 3: one full Bottleneck block per call:
#   t_ext = SiLU(BN(y_ext @ W1))    (ONE 1x1 matmul over main + halo rows)
#   z     = SiLU(BN(conv3x3(t)))    (kx taps folded into the contraction dim,
#                                    ky taps = static row windows of t3)
#   out   = z + y (if shortcut)
# Grid = (batch, row-tile).  y is passed three times: main (TH*W, Cp) tile plus
# two single-image-row halo views; out-of-image halo rows of t are zeroed
# in-kernel (conv zero-padding acts on conv2's input, i.e. on t).
# ----------------------------------------------------------------------------
def _bottleneck_kernel(yt_ref, y_ref, yb_ref,
                       w1_ref, s1_ref, b1_ref,
                       w3_ref, s2_ref, b2_ref,
                       o_ref, *, W, add_residual):
    L, Cp = y_ref.shape             # L = TH * W main rows, Cp padded channels
    Lext = L + 2 * W
    j = pl.program_id(1)
    n_j = pl.num_programs(1)

    # ---- halo-extended input tile -> ONE 1x1 matmul for t_ext -------------
    y_main = y_ref[...]
    y_ext = jnp.concatenate([yt_ref[...], y_main, yb_ref[...]], axis=0)
    t_ext = _bn_silu(
        jnp.dot(y_ext, w1_ref[...], preferred_element_type=jnp.float32),
        s1_ref[...], b1_ref[...])

    # zero t rows that fall outside the image (zero-padding of conv2's input)
    row = jax.lax.broadcasted_iota(jnp.int32, (Lext, 1), 0)
    in_image = jnp.logical_and(jnp.logical_or(row >= W, j > 0),
                               jnp.logical_or(row < W + L, j < n_j - 1))
    t_ext = jnp.where(in_image, t_ext, 0.0)

    # ---- kx taps folded into the lane/contraction dim (mask hoisted) ------
    w_idx = row % W
    left = jnp.where(w_idx > 0, pltpu.roll(t_ext, 1, 0), 0.0)          # col w-1
    right = jnp.where(w_idx < W - 1, pltpu.roll(t_ext, Lext - 1, 0), 0.0)  # w+1
    bf = jnp.bfloat16
    t3 = jnp.concatenate(
        [left.astype(bf), t_ext.astype(bf), right.astype(bf)], axis=1)  # (Lext, 3*Cp)

    # ---- ky taps = static, sublane-aligned row windows of t3 --------------
    acc = jnp.dot(t3[:L], w3_ref[0], preferred_element_type=jnp.float32)
    acc = acc + jnp.dot(t3[W:W + L], w3_ref[1], preferred_element_type=jnp.float32)
    acc = acc + jnp.dot(t3[2 * W:], w3_ref[2], preferred_element_type=jnp.float32)

    out = _bn_silu(acc, s2_ref[...], b2_ref[...])
    if add_residual:
        out = out + y_main.astype(jnp.float32)
    o_ref[...] = out.astype(o_ref.dtype)


def bottleneck_fused(y1, blk, *, N, H, W, shortcut):
    M, cp = y1.shape                       # M = N*H*W, cp = padded hidden
    # TODO(synk): W not a multiple of 8 needs a different halo block shape.
    bytes_per_row = 40 * cp                # main + intermediates, rough upper bound
    TH = _pick_th(N, H, W, bytes_per_row, _VMEM_LIMIT // 2)
    n_j = H // TH
    L = TH * W
    NH = N * H
    s1, b1 = blk["c1_bn"]
    s2, b2 = blk["c2_bn"]
    kern = functools.partial(_bottleneck_kernel, W=W, add_residual=bool(shortcut))
    const2 = lambda b, j: (0, 0)

    return pl.pallas_call(
        kern,
        out_shape=jax.ShapeDtypeStruct((M, cp), y1.dtype),
        grid_spec=pltpu.PrefetchScalarGridSpec(
            num_scalar_prefetch=0,
            grid=(N, n_j),
            in_specs=[
                # single image row just above the tile (clamped; zero-gated in-kernel)
                pl.BlockSpec((W, cp),
                             lambda b, j: (jnp.maximum(b * H + j * TH - 1, 0), 0)),
                # main (TH*W, Cp) tile
                pl.BlockSpec((L, cp), lambda b, j: (b * n_j + j, 0)),
                # single image row just below the tile
                pl.BlockSpec((W, cp),
                             lambda b, j: (jnp.minimum(b * H + (j + 1) * TH,
                                                       NH - 1), 0)),
                pl.BlockSpec(blk["c1_w"].shape, const2),
                pl.BlockSpec(s1.shape, const2),
                pl.BlockSpec(b1.shape, const2),
                pl.BlockSpec(blk["c2_w"].shape, lambda b, j: (0, 0, 0)),
                pl.BlockSpec(s2.shape, const2),
                pl.BlockSpec(b2.shape, const2),
            ],
            out_specs=pl.BlockSpec((L, cp), lambda b, j: (b * n_j + j, 0)),
        ),
        compiler_params=pltpu.CompilerParams(
            dimension_semantics=("parallel", "parallel"),
            vmem_limit_bytes=_VMEM_LIMIT),
    )(y1, y1, y1, blk["c1_w"], s1, b1, blk["c2_w"], s2, b2)


# ----------------------------------------------------------------------------
# Deterministic parameter construction (PyTorch-equivalent shapes; hidden
# channels zero-padded to a multiple of 128 so activations stay lane dense).
# ----------------------------------------------------------------------------
def _bn_folded(key, c, cp, eps=1e-5):
    k1, k2, k3, k4 = jax.random.split(key, 4)
    gamma = jax.random.uniform(k1, (c,), minval=0.5, maxval=1.5)
    beta = 0.1 * jax.random.normal(k2, (c,))
    mean = 0.1 * jax.random.normal(k3, (c,))
    var = jax.random.uniform(k4, (c,), minval=0.5, maxval=1.5)
    scale = gamma / jnp.sqrt(var + eps)
    bias = beta - mean * scale
    # padded channels: scale 0, bias 0  ->  silu(0) = 0 propagates cleanly
    scale = jnp.pad(scale, (0, cp - c)).reshape(1, cp).astype(jnp.float32)
    bias = jnp.pad(bias, (0, cp - c)).reshape(1, cp).astype(jnp.float32)
    return scale, bias


def _w_3x3(key, cin, cout, cinp, coutp):
    # (ky, kx, ci, co) -> (3, 3*Cinp, Coutp): the kx taps live in the
    # contraction dim, matching the in-kernel [dx=-1 | dx=0 | dx=+1] layout.
    w = 0.3 * jax.random.normal(key, (3, 3, cin, cout))
    w = jnp.pad(w, ((0, 0), (0, 0), (0, cinp - cin), (0, coutp - cout)))
    return w.reshape(3, 3 * cinp, coutp).astype(jnp.bfloat16)


def init_csp_params(key, in_channels, out_channels, n=1, expansion=0.5):
    hidden = int(out_channels * expansion)
    hp = _round_up(hidden, 128)
    keys = jax.random.split(key, 6 + 4 * n)

    # cv1 & cv2 fused: one (Cin, 2*hp) weight -> a single MXU pass over x
    w1 = 0.3 * jax.random.normal(keys[0], (in_channels, hidden))
    w2 = 0.3 * jax.random.normal(keys[2], (in_channels, hidden))
    w12 = jnp.zeros((in_channels, 2 * hp), jnp.float32)
    w12 = w12.at[:, :hidden].set(w1).at[:, hp:hp + hidden].set(w2)
    s1, b1 = _bn_folded(keys[1], hidden, hp)
    s2, b2 = _bn_folded(keys[3], hidden, hp)

    # cv3: single (2*hp, Cout) weight, K = 2*hp contraction
    w3 = 0.3 * jax.random.normal(keys[4], (2 * hidden, out_channels))
    w3c = jnp.zeros((2 * hp, out_channels), jnp.float32)
    w3c = w3c.at[:hidden].set(w3[:hidden]).at[hp:hp + hidden].set(w3[hidden:])
    s3, b3 = _bn_folded(keys[5], out_channels, out_channels)

    p = {
        "cv12_w": w12.astype(jnp.bfloat16),
        "cv12_s": jnp.concatenate([s1, s2], axis=1),
        "cv12_b": jnp.concatenate([b1, b2], axis=1),
        "cv3_w": w3c.astype(jnp.bfloat16),
        "cv3_s": s3,
        "cv3_b": b3,
        "blocks": [],
    }
    for i in range(n):
        kk = keys[6 + 4 * i: 6 + 4 * (i + 1)]
        # Bottleneck with expansion=1.0: hidden -> hidden -> hidden
        cw = 0.3 * jax.random.normal(kk[0], (hidden, hidden))
        c1_w = jnp.zeros((hp, hp), jnp.float32).at[:hidden, :hidden].set(cw)
        p["blocks"].append({
            "c1_w": c1_w.astype(jnp.bfloat16),
            "c1_bn": _bn_folded(kk[1], hidden, hp),
            "c2_w": _w_3x3(kk[2], hidden, hidden, hp, hp),
            "c2_bn": _bn_folded(kk[3], hidden, hp),
        })
    return p


# ----------------------------------------------------------------------------
# Full CSPBottleneck forward (NCHW in / NCHW out, like the PyTorch module)
# ----------------------------------------------------------------------------
def csp_bottleneck_forward(x_nchw, params, out_channels, shortcut=True):
    N, Cin, H, W = x_nchw.shape
    M = N * H * W

    # NCHW -> flat (M, Cin) f32; channel pad + bf16 cast are done inside kernel 1.
    x = jnp.transpose(x_nchw, (0, 2, 3, 1)).reshape(M, Cin)

    # cv1 & cv2 in one MXU pass over x
    y1, y2 = conv1x1_cv12(x, params["cv12_w"], params["cv12_s"], params["cv12_b"])

    # n fused Bottleneck blocks (1x1 + 3x3 + residual in one kernel each)
    for blk in params["blocks"]:
        y1 = bottleneck_fused(y1, blk, N=N, H=H, W=W, shortcut=shortcut)

    # cv3 on the implicit concat(y1, y2); kernel emits (M, Cout) f32 directly
    out = conv1x1_cv3(y1, y2, params["cv3_w"], params["cv3_s"], params["cv3_b"])
    return jnp.transpose(out.reshape(N, H, W, out_channels), (0, 3, 1, 2))


if __name__ == "__main__":
    key = jax.random.PRNGKey(0)
    k_x, k_p = jax.random.split(key)

    # Small shapes consistent with the module: N=2, Cin=Cout=4, H=W=16, n=1
    in_channels, out_channels, n = 4, 4, 1
    x = jax.random.normal(k_x, (2, in_channels, 16, 16), dtype=jnp.float32)

    params = init_csp_params(k_p, in_channels, out_channels, n=n)

    fwd = jax.jit(functools.partial(csp_bottleneck_forward,
                                    out_channels=out_channels, shortcut=True))
    out = fwd(x, params)
    jax.block_until_ready(out)

    assert out.shape == (2, out_channels, 16, 16), out.shape
    print("KERNEL_OK")
</pallas_src>

<mosaic_0001>
module attributes {stable_mosaic.version = 11 : i64} {
  func.func @_conv1x1_cv12_kernel(%arg0: i32, %arg1: memref<64x4xf32, #tpu.memory_space<vmem>>, %arg2: memref<4x256xbf16, #tpu.memory_space<vmem>>, %arg3: memref<1x256xf32, #tpu.memory_space<vmem>>, %arg4: memref<1x256xf32, #tpu.memory_space<vmem>>, %arg5: memref<64x128xbf16, #tpu.memory_space<vmem>>, %arg6: memref<64x128xbf16, #tpu.memory_space<vmem>>) attributes {dimension_semantics = [#tpu.dimension_semantics<parallel>], iteration_bounds = array<i64: 8>, scalar_prefetch = 0 : i64, scratch_operands = 0 : i64, tpu.core_type = #tpu.core_type<tc>, window_params = [{transform_indices = @transform_0, window_bounds = array<i64: 64, 4>}, {pipeline_mode = #tpu.pipeline_mode<synchronous>, transform_indices = @transform_1, window_bounds = array<i64: 4, 256>}, {pipeline_mode = #tpu.pipeline_mode<synchronous>, transform_indices = @transform_2, window_bounds = array<i64: 1, 256>}, {pipeline_mode = #tpu.pipeline_mode<synchronous>, transform_indices = @transform_3, window_bounds = array<i64: 1, 256>}, {transform_indices = @transform_4, window_bounds = array<i64: 64, 128>}, {transform_indices = @transform_5, window_bounds = array<i64: 64, 128>}]} {
    %c0 = arith.constant 0 : index
    %c0_0 = arith.constant 0 : index
    %0 = vector.load %arg1[%c0, %c0_0] : memref<64x4xf32, #tpu.memory_space<vmem>>, vector<64x4xf32>
    %1 = arith.truncf %0 : vector<64x4xf32> to vector<64x4xbf16>
    %c0_1 = arith.constant 0 : index
    %c0_2 = arith.constant 0 : index
    %2 = vector.load %arg2[%c0_1, %c0_2] : memref<4x256xbf16, #tpu.memory_space<vmem>>, vector<4x256xbf16>
    %cst = arith.constant dense<0.000000e+00> : vector<64x256xf32>
    %3 = tpu.matmul %1, %2, %cst {dimension_numbers = #tpu.dot_dimension_numbers<[1], [0], [0], [1], [0, 0, 1, 1], [], []>} : vector<64x4xbf16>, vector<4x256xbf16>, vector<64x256xf32> -> vector<64x256xf32>
    %c0_3 = arith.constant 0 : index
    %c0_4 = arith.constant 0 : index
    %4 = vector.load %arg3[%c0_3, %c0_4] : memref<1x256xf32, #tpu.memory_space<vmem>>, vector<1x256xf32>
    %c0_5 = arith.constant 0 : index
    %c0_6 = arith.constant 0 : index
    %5 = vector.load %arg4[%c0_5, %c0_6] : memref<1x256xf32, #tpu.memory_space<vmem>>, vector<1x256xf32>
    %6 = vector.broadcast %4 : vector<1x256xf32> to vector<64x256xf32>
    %7 = arith.mulf %3, %6 : vector<64x256xf32>
    %8 = vector.broadcast %5 : vector<1x256xf32> to vector<64x256xf32>
    %9 = arith.addf %7, %8 : vector<64x256xf32>
    %cst_7 = arith.constant 0.000000e+00 : f32
    %10 = vector.broadcast %cst_7 : f32 to vector<64x256xf32>
    %11 = arith.subf %10, %9 : vector<64x256xf32>
    %12 = math.exp %11 : vector<64x256xf32>
    %cst_8 = arith.constant 1.000000e+00 : f32
    %13 = vector.broadcast %cst_8 : f32 to vector<64x256xf32>
    %14 = arith.addf %13, %12 : vector<64x256xf32>
    %15 = tpu.reciprocal %14 {approx = true} : vector<64x256xf32> -> vector<64x256xf32>
    %16 = arith.mulf %9, %15 : vector<64x256xf32>
    %17 = vector.extract_strided_slice %16 {offsets = [0, 0], sizes = [64, 128], strides = [1, 1]} : vector<64x256xf32> to vector<64x128xf32>
    %18 = arith.truncf %17 : vector<64x128xf32> to vector<64x128xbf16>
    %c0_9 = arith.constant 0 : index
    %c0_10 = arith.constant 0 : index
    %19 = vector.load %arg5[%c0_9, %c0_10] : memref<64x128xbf16, #tpu.memory_space<vmem>>, vector<64x128xbf16>
    tpu.vector_store %arg5[%c0_9, %c0_10], %18 {strides = array<i32>} : memref<64x128xbf16, #tpu.memory_space<vmem>>, vector<64x128xbf16>,
    %20 = vector.extract_strided_slice %16 {offsets = [0, 128], sizes = [64, 128], strides = [1, 1]} : vector<64x256xf32> to vector<64x128xf32>
    %21 = arith.truncf %20 : vector<64x128xf32> to vector<64x128xbf16>
    %c0_11 = arith.constant 0 : index
    %c0_12 = arith.constant 0 : index
    %22 = vector.load %arg6[%c0_11, %c0_12] : memref<64x128xbf16, #tpu.memory_space<vmem>>, vector<64x128xbf16>
    tpu.vector_store %arg6[%c0_11, %c0_12], %21 {strides = array<i32>} : memref<64x128xbf16, #tpu.memory_space<vmem>>, vector<64x128xbf16>,
    return
  }
  func.func @transform_0(%arg0: i32) -> (i32, i32) {
    %c0_i32 = arith.constant 0 : i32
    %c0_i32_0 = arith.constant 0 : i32
    return %arg0, %c0_i32 : i32, i32
  }
  func.func @transform_1(%arg0: i32) -> (i32, i32) {
    %c0_i32 = arith.constant 0 : i32
    %c0_i32_0 = arith.constant 0 : i32
    %c0_i32_1 = arith.constant 0 : i32
    return %c0_i32, %c0_i32_0 : i32, i32
  }
  func.func @transform_2(%arg0: i32) -> (i32, i32) {
    %c0_i32 = arith.constant 0 : i32
    %c0_i32_0 = arith.constant 0 : i32
    %c0_i32_1 = arith.constant 0 : i32
    return %c0_i32, %c0_i32_0 : i32, i32
  }
  func.func @transform_3(%arg0: i32) -> (i32, i32) {
    %c0_i32 = arith.constant 0 : i32
    %c0_i32_0 = arith.constant 0 : i32
    %c0_i32_1 = arith.constant 0 : i32
    return %c0_i32, %c0_i32_0 : i32, i32
  }
  func.func @transform_4(%arg0: i32) -> (i32, i32) {
    %c0_i32 = arith.constant 0 : i32
    %c0_i32_0 = arith.constant 0 : i32
    return %arg0, %c0_i32 : i32, i32
  }
  func.func @transform_5(%arg0: i32) -> (i32, i32) {
    %c0_i32 = arith.constant 0 : i32
    %c0_i32_0 = arith.constant 0 : i32
    return %arg0, %c0_i32 : i32, i32
  }
}

module attributes {stable_mosaic.version = 11 : i64} {
  func.func @_bottleneck_kernel(%arg0: i32, %arg1: i32, %arg2: memref<16x128xbf16, #tpu.memory_space<vmem>>, %arg3: memref<64x128xbf16, #tpu.memory_space<vmem>>, %arg4: memref<16x128xbf16, #tpu.memory_space<vmem>>, %arg5: memref<128x128xbf16, #tpu.memory_space<vmem>>, %arg6: memref<1x128xf32, #tpu.memory_space<vmem>>, %arg7: memref<1x128xf32, #tpu.memory_space<vmem>>, %arg8: memref<3x384x128xbf16, #tpu.memory_space<vmem>>, %arg9: memref<1x128xf32, #tpu.memory_space<vmem>>, %arg10: memref<1x128xf32, #tpu.memory_space<vmem>>, %arg11: memref<64x128xbf16, #tpu.memory_space<vmem>>) attributes {dimension_semantics = [#tpu.dimension_semantics<parallel>, #tpu.dimension_semantics<parallel>], iteration_bounds = array<i64: 2, 4>, scalar_prefetch = 0 : i64, scratch_operands = 0 : i64, tpu.core_type = #tpu.core_type<tc>, window_params = [{transform_indices = @transform_0, window_bounds = array<i64: 16, 128>}, {transform_indices = @transform_1, window_bounds = array<i64: 64, 128>}, {transform_indices = @transform_2, window_bounds = array<i64: 16, 128>}, {pipeline_mode = #tpu.pipeline_mode<synchronous>, transform_indices = @transform_3, window_bounds = array<i64: 128, 128>}, {pipeline_mode = #tpu.pipeline_mode<synchronous>, transform_indices = @transform_4, window_bounds = array<i64: 1, 128>}, {pipeline_mode = #tpu.pipeline_mode<synchronous>, transform_indices = @transform_5, window_bounds = array<i64: 1, 128>}, {pipeline_mode = #tpu.pipeline_mode<synchronous>, transform_indices = @transform_6, window_bounds = array<i64: 3, 384, 128>}, {pipeline_mode = #tpu.pipeline_mode<synchronous>, transform_indices = @transform_7, window_bounds = array<i64: 1, 128>}, {pipeline_mode = #tpu.pipeline_mode<synchronous>, transform_indices = @transform_8, window_bounds = array<i64: 1, 128>}, {transform_indices = @transform_9, window_bounds = array<i64: 64, 128>}]} {
    %c0 = arith.constant 0 : index
    %c0_0 = arith.constant 0 : index
    %0 = vector.load %arg3[%c0, %c0_0] : memref<64x128xbf16, #tpu.memory_space<vmem>>, vector<64x128xbf16>
    %c0_1 = arith.constant 0 : index
    %c0_2 = arith.constant 0 : index
    %1 = vector.load %arg2[%c0_1, %c0_2] : memref<16x128xbf16, #tpu.memory_space<vmem>>, vector<16x128xbf16>
    %c0_3 = arith.constant 0 : index
    %c0_4 = arith.constant 0 : index
    %2 = vector.load %arg4[%c0_3, %c0_4] : memref<16x128xbf16, #tpu.memory_space<vmem>>, vector<16x128xbf16>
    %3 = tpu.concatenate %1, %0, %2 in 0 : vector<16x128xbf16>, vector<64x128xbf16>, vector<16x128xbf16> -> vector<96x128xbf16>
    %c0_5 = arith.constant 0 : index
    %c0_6 = arith.constant 0 : index
    %4 = vector.load %arg5[%c0_5, %c0_6] : memref<128x128xbf16, #tpu.memory_space<vmem>>, vector<128x128xbf16>
    %cst = arith.constant dense<0.000000e+00> : vector<96x128xf32>
    %5 = tpu.matmul %3, %4, %cst {dimension_numbers = #tpu.dot_dimension_numbers<[1], [0], [0], [1], [0, 0, 1, 1], [], []>} : vector<96x128xbf16>, vector<128x128xbf16>, vector<96x128xf32> -> vector<96x128xf32>
    %c0_7 = arith.constant 0 : index
    %c0_8 = arith.constant 0 : index
    %6 = vector.load %arg6[%c0_7, %c0_8] : memref<1x128xf32, #tpu.memory_space<vmem>>, vector<1x128xf32>
    %c0_9 = arith.constant 0 : index
    %c0_10 = arith.constant 0 : index
    %7 = vector.load %arg7[%c0_9, %c0_10] : memref<1x128xf32, #tpu.memory_space<vmem>>, vector<1x128xf32>
    %8 = vector.broadcast %6 : vector<1x128xf32> to vector<96x128xf32>
    %9 = arith.mulf %5, %8 : vector<96x128xf32>
    %10 = vector.broadcast %7 : vector<1x128xf32> to vector<96x128xf32>
    %11 = arith.addf %9, %10 : vector<96x128xf32>
    %cst_11 = arith.constant 0.000000e+00 : f32
    %12 = vector.broadcast %cst_11 : f32 to vector<96x128xf32>
    %13 = arith.subf %12, %11 : vector<96x128xf32>
    %14 = math.exp %13 : vector<96x128xf32>
    %cst_12 = arith.constant 1.000000e+00 : f32
    %15 = vector.broadcast %cst_12 : f32 to vector<96x128xf32>
    %16 = arith.addf %15, %14 : vector<96x128xf32>
    %17 = tpu.reciprocal %16 {approx = true} : vector<96x128xf32> -> vector<96x128xf32>
    %18 = arith.mulf %11, %17 : vector<96x128xf32>
    %19 = tpu.iota {dimensions = array<i32: 0>} : vector<96x1xi32>
    %c16_i32 = arith.constant 16 : i32
    %20 = vector.broadcast %c16_i32 : i32 to vector<96x1xi32>
    %21 = arith.cmpi sge, %19, %20 : vector<96x1xi32>
    %c0_i32 = arith.constant 0 : i32
    %22 = arith.cmpi sgt, %arg1, %c0_i32 : i32
    %23 = vector.broadcast %22 : i1 to vector<96x1xi1>
    %24 = arith.ori %21, %23 : vector<96x1xi1>
    %c80_i32 = arith.constant 80 : i32
    %25 = vector.broadcast %c80_i32 : i32 to vector<96x1xi32>
    %26 = arith.cmpi slt, %19, %25 : vector<96x1xi32>
    %c3_i32 = arith.constant 3 : i32
    %27 = arith.cmpi slt, %arg1, %c3_i32 : i32
    %28 = vector.broadcast %27 : i1 to vector<96x1xi1>
    %29 = arith.ori %26, %28 : vector<96x1xi1>
    %30 = arith.andi %24, %29 : vector<96x1xi1>
    %cst_13 = arith.constant 0.000000e+00 : f32
    %31 = vector.shape_cast %30 : vector<96x1xi1> to vector<96x1xi1>
    %32 = vector.broadcast %31 : vector<96x1xi1> to vector<96x128xi1>
    %33 = vector.broadcast %cst_13 : f32 to vector<96x128xf32>
    %34 = arith.select %32, %18, %33 : vector<96x128xi1>, vector<96x128xf32>
    %c16_i32_14 = arith.constant 16 : i32
    %c0_i32_15 = arith.constant 0 : i32
    %35 = arith.cmpi eq, %c16_i32_14, %c0_i32_15 : i32
    %c1_i32 = arith.constant 1 : i32
    %36 = arith.select %35, %c1_i32, %c16_i32_14 : i32
    %37 = vector.broadcast %36 : i32 to vector<96x1xi32>
    %38 = arith.remsi %19, %37 : vector<96x1xi32>
    %c0_i32_16 = arith.constant 0 : i32
    %39 = vector.broadcast %c0_i32_16 : i32 to vector<96x1xi32>
    %40 = arith.cmpi ne, %38, %39 : vector<96x1xi32>
    %c0_i32_17 = arith.constant 0 : i32
    %41 = vector.broadcast %c0_i32_17 : i32 to vector<96x1xi32>
    %42 = arith.cmpi slt, %38, %41 : vector<96x1xi32>
    %c0_i32_18 = arith.constant 0 : i32
    %43 = arith.cmpi slt, %36, %c0_i32_18 : i32
    %44 = vector.broadcast %43 : i1 to vector<96x1xi1>
    %45 = vector.broadcast %44 : vector<96x1xi1> to vector<96x1xi1>
    %46 = arith.xori %42, %45 : vector<96x1xi1>
    %47 = arith.andi %46, %40 : vector<96x1xi1>
    %48 = vector.broadcast %36 : i32 to vector<96x1xi32>
    %49 = arith.addi %38, %48 : vector<96x1xi32>
    %50 = arith.select %47, %49, %38 : vector<96x1xi1>, vector<96x1xi32>
    %c0_i32_19 = arith.constant 0 : i32
    %51 = vector.broadcast %c0_i32_19 : i32 to vector<96x1xi32>
    %52 = arith.cmpi sgt, %50, %51 : vector<96x1xi32>
    %c1_i32_20 = arith.constant 1 : i32
    %53 = tpu.dynamic_rotate %34 by %c1_i32_20 dim 0 : vector<96x128xf32>, i32 -> vector<96x128xf32>
    %cst_21 = arith.constant 0.000000e+00 : f32
    %54 = vector.shape_cast %52 : vector<96x1xi1> to vector<96x1xi1>
    %55 = vector.broadcast %54 : vector<96x1xi1> to vector<96x128xi1>
    %56 = vector.broadcast %cst_21 : f32 to vector<96x128xf32>
    %57 = arith.select %55, %53, %56 : vector<96x128xi1>, vector<96x128xf32>
    %c15_i32 = arith.constant 15 : i32
    %58 = vector.broadcast %c15_i32 : i32 to vector<96x1xi32>
    %59 = arith.cmpi slt, %50, %58 : vector<96x1xi32>
    %c95_i32 = arith.constant 95 : i32
    %60 = tpu.dynamic_rotate %34 by %c95_i32 dim 0 : vector<96x128xf32>, i32 -> vector<96x128xf32>
    %cst_22 = arith.constant 0.000000e+00 : f32
    %61 = vector.shape_cast %59 : vector<96x1xi1> to vector<96x1xi1>
    %62 = vector.broadcast %61 : vector<96x1xi1> to vector<96x128xi1>
    %63 = vector.broadcast %cst_22 : f32 to vector<96x128xf32>
    %64 = arith.select %62, %60, %63 : vector<96x128xi1>, vector<96x128xf32>
    %65 = arith.truncf %57 : vector<96x128xf32> to vector<96x128xbf16>
    %66 = arith.truncf %34 : vector<96x128xf32> to vector<96x128xbf16>
    %67 = arith.truncf %64 : vector<96x128xf32> to vector<96x128xbf16>
    %68 = tpu.concatenate %65, %66, %67 in 1 : vector<96x128xbf16>, vector<96x128xbf16>, vector<96x128xbf16> -> vector<96x384xbf16>
    %69 = vector.extract_strided_slice %68 {offsets = [0, 0], sizes = [64, 384], strides = [1, 1]} : vector<96x384xbf16> to vector<64x384xbf16>
    %c0_23 = arith.constant 0 : index
    %c0_24 = arith.constant 0 : index
    %c0_25 = arith.constant 0 : index
    %70 = vector.load %arg8[%c0_23, %c0_24, %c0_25] : memref<3x384x128xbf16, #tpu.memory_space<vmem>>, vector<1x384x128xbf16>
    %71 = vector.shape_cast %70 : vector<1x384x128xbf16> to vector<384x128xbf16>
    %cst_26 = arith.constant dense<0.000000e+00> : vector<64x128xf32>
    %72 = tpu.matmul %69, %71, %cst_26 {dimension_numbers = #tpu.dot_dimension_numbers<[1], [0], [0], [1], [0, 0, 1, 1], [], []>} : vector<64x384xbf16>, vector<384x128xbf16>, vector<64x128xf32> -> vector<64x128xf32>
    %73 = vector.extract_strided_slice %68 {offsets = [16, 0], sizes = [64, 384], strides = [1, 1]} : vector<96x384xbf16> to vector<64x384xbf16>
    %c1 = arith.constant 1 : index
    %c0_27 = arith.constant 0 : index
    %c0_28 = arith.constant 0 : index
    %74 = vector.load %arg8[%c1, %c0_27, %c0_28] : memref<3x384x128xbf16, #tpu.memory_space<vmem>>, vector<1x384x128xbf16>
    %75 = vector.shape_cast %74 : vector<1x384x128xbf16> to vector<384x128xbf16>
    %cst_29 = arith.constant dense<0.000000e+00> : vector<64x128xf32>
    %76 = tpu.matmul %73, %75, %cst_29 {dimension_numbers = #tpu.dot_dimension_numbers<[1], [0], [0], [1], [0, 0, 1, 1], [], []>} : vector<64x384xbf16>, vector<384x128xbf16>, vector<64x128xf32> -> vector<64x128xf32>
    %77 = arith.addf %72, %76 : vector<64x128xf32>
    %78 = vector.extract_strided_slice %68 {offsets = [32, 0], sizes = [64, 384], strides = [1, 1]} : vector<96x384xbf16> to vector<64x384xbf16>
    %c2 = arith.constant 2 : index
    %c0_30 = arith.constant 0 : index
    %c0_31 = arith.constant 0 : index
    %79 = vector.load %arg8[%c2, %c0_30, %c0_31] : memref<3x384x128xbf16, #tpu.memory_space<vmem>>, vector<1x384x128xbf16>
    %80 = vector.shape_cast %79 : vector<1x384x128xbf16> to vector<384x128xbf16>
    %cst_32 = arith.constant dense<0.000000e+00> : vector<64x128xf32>
    %81 = tpu.matmul %78, %80, %cst_32 {dimension_numbers = #tpu.dot_dimension_numbers<[1], [0], [0], [1], [0, 0, 1, 1], [], []>} : vector<64x384xbf16>, vector<384x128xbf16>, vector<64x128xf32> -> vector<64x128xf32>
    %82 = arith.addf %77, %81 : vector<64x128xf32>
    %c0_33 = arith.constant 0 : index
    %c0_34 = arith.constant 0 : index
    %83 = vector.load %arg9[%c0_33, %c0_34] : memref<1x128xf32, #tpu.memory_space<vmem>>, vector<1x128xf32>
    %c0_35 = arith.constant 0 : index
    %c0_36 = arith.constant 0 : index
    %84 = vector.load %arg10[%c0_35, %c0_36] : memref<1x128xf32, #tpu.memory_space<vmem>>, vector<1x128xf32>
    %85 = vector.broadcast %83 : vector<1x128xf32> to vector<64x128xf32>
    %86 = arith.mulf %82, %85 : vector<64x128xf32>
    %87 = vector.broadcast %84 : vector<1x128xf32> to vector<64x128xf32>
    %88 = arith.addf %86, %87 : vector<64x128xf32>
    %cst_37 = arith.constant 0.000000e+00 : f32
    %89 = vector.broadcast %cst_37 : f32 to vector<64x128xf32>
    %90 = arith.subf %89, %88 : vector<64x128xf32>
    %91 = math.exp %90 : vector<64x128xf32>
    %cst_38 = arith.constant 1.000000e+00 : f32
    %92 = vector.broadcast %cst_38 : f32 to vector<64x128xf32>
    %93 = arith.addf %92, %91 : vector<64x128xf32>
    %94 = tpu.reciprocal %93 {approx = true} : vector<64x128xf32> -> vector<64x128xf32>
    %95 = arith.mulf %88, %94 : vector<64x128xf32>
    %96 = arith.extf %0 : vector<64x128xbf16> to vector<64x128xf32>
    %97 = arith.addf %95, %96 : vector<64x128xf32>
    %98 = arith.truncf %97 : vector<64x128xf32> to vector<64x128xbf16>
    %c0_39 = arith.constant 0 : index
    %c0_40 = arith.constant 0 : index
    %99 = vector.load %arg11[%c0_39, %c0_40] : memref<64x128xbf16, #tpu.memory_space<vmem>>, vector<64x128xbf16>
    tpu.vector_store %arg11[%c0_39, %c0_40], %98 {strides = array<i32>} : memref<64x128xbf16, #tpu.memory_space<vmem>>, vector<64x128xbf16>,
    return
  }
  func.func @transform_0(%arg0: i32, %arg1: i32) -> (i32, i32) {
    %c16_i32 = arith.constant 16 : i32
    %0 = arith.muli %arg0, %c16_i32 : i32
    %c4_i32 = arith.constant 4 : i32
    %1 = arith.muli %arg1, %c4_i32 : i32
    %2 = arith.addi %0, %1 : i32
    %c1_i32 = arith.constant 1 : i32
    %3 = arith.subi %2, %c1_i32 : i32
    %c0_i32 = arith.constant 0 : i32
    %4 = arith.maxsi %3, %c0_i32 : i32
    %c0_i32_0 = arith.constant 0 : i32
    %c0_i32_1 = arith.constant 0 : i32
    return %4, %c0_i32_0 : i32, i32
  }
  func.func @transform_1(%arg0: i32, %arg1: i32) -> (i32, i32) {
    %c4_i32 = arith.constant 4 : i32
    %0 = arith.muli %arg0, %c4_i32 : i32
    %1 = arith.addi %0, %arg1 : i32
    %c0_i32 = arith.constant 0 : i32
    %c0_i32_0 = arith.constant 0 : i32
    return %1, %c0_i32 : i32, i32
  }
  func.func @transform_2(%arg0: i32, %arg1: i32) -> (i32, i32) {
    %c16_i32 = arith.constant 16 : i32
    %0 = arith.muli %arg0, %c16_i32 : i32
    %c1_i32 = arith.constant 1 : i32
    %1 = arith.addi %arg1, %c1_i32 : i32
    %c4_i32 = arith.constant 4 : i32
    %2 = arith.muli %1, %c4_i32 : i32
    %3 = arith.addi %0, %2 : i32
    %c31_i32 = arith.constant 31 : i32
    %4 = arith.minsi %3, %c31_i32 : i32
    %c0_i32 = arith.constant 0 : i32
    %c0_i32_0 = arith.constant 0 : i32
    return %4, %c0_i32 : i32, i32
  }
  func.func @transform_3(%arg0: i32, %arg1: i32) -> (i32, i32) {
    %c0_i32 = arith.constant 0 : i32
    %c0_i32_0 = arith.constant 0 : i32
    %c0_i32_1 = arith.constant 0 : i32
    return %c0_i32, %c0_i32_0 : i32, i32
  }
  func.func @transform_4(%arg0: i32, %arg1: i32) -> (i32, i32) {
    %c0_i32 = arith.constant 0 : i32
    %c0_i32_0 = arith.constant 0 : i32
    %c0_i32_1 = arith.constant 0 : i32
    return %c0_i32, %c0_i32_0 : i32, i32
  }
  func.func @transform_5(%arg0: i32, %arg1: i32) -> (i32, i32) {
    %c0_i32 = arith.constant 0 : i32
    %c0_i32_0 = arith.constant 0 : i32
    %c0_i32_1 = arith.constant 0 : i32
    return %c0_i32, %c0_i32_0 : i32, i32
  }
  func.func @transform_6(%arg0: i32, %arg1: i32) -> (i32, i32, i32) {
    %c0_i32 = arith.constant 0 : i32
    %c0_i32_0 = arith.constant 0 : i32
    %c0_i32_1 = arith.constant 0 : i32
    %c0_i32_2 = arith.constant 0 : i32
    return %c0_i32, %c0_i32_0, %c0_i32_1 : i32, i32, i32
  }
  func.func @transform_7(%arg0: i32, %arg1: i32) -> (i32, i32) {
    %c0_i32 = arith.constant 0 : i32
    %c0_i32_0 = arith.constant 0 : i32
    %c0_i32_1 = arith.constant 0 : i32
    return %c0_i32, %c0_i32_0 : i32, i32
  }
  func.func @transform_8(%arg0: i32, %arg1: i32) -> (i32, i32) {
    %c0_i32 = arith.constant 0 : i32
    %c0_i32_0 = arith.constant 0 : i32
    %c0_i32_1 = arith.constant 0 : i32
    return %c0_i32, %c0_i32_0 : i32, i32
  }
  func.func @transform_9(%arg0: i32, %arg1: i32) -> (i32, i32) {
    %c4_i32 = arith.constant 4 : i32
    %0 = arith.muli %arg0, %c4_i32 : i32
    %1 = arith.addi %0, %arg1 : i32
    %c0_i32 = arith.constant 0 : i32
    %c0_i32_0 = arith.constant 0 : i32
    return %1, %c0_i32 : i32, i32
  }
}

module attributes {stable_mosaic.version = 11 : i64} {
  func.func @_conv1x1_cv3_kernel(%arg0: i32, %arg1: memref<64x128xbf16, #tpu.memory_space<vmem>>, %arg2: memref<64x128xbf16, #tpu.memory_space<vmem>>, %arg3: memref<256x4xbf16, #tpu.memory_space<vmem>>, %arg4: memref<1x4xf32, #tpu.memory_space<vmem>>, %arg5: memref<1x4xf32, #tpu.memory_space<vmem>>, %arg6: memref<64x4xf32, #tpu.memory_space<vmem>>) attributes {dimension_semantics = [#tpu.dimension_semantics<parallel>], iteration_bounds = array<i64: 8>, scalar_prefetch = 0 : i64, scratch_operands = 0 : i64, tpu.core_type = #tpu.core_type<tc>, window_params = [{transform_indices = @transform_0, window_bounds = array<i64: 64, 128>}, {transform_indices = @transform_1, window_bounds = array<i64: 64, 128>}, {pipeline_mode = #tpu.pipeline_mode<synchronous>, transform_indices = @transform_2, window_bounds = array<i64: 256, 4>}, {pipeline_mode = #tpu.pipeline_mode<synchronous>, transform_indices = @transform_3, window_bounds = array<i64: 1, 4>}, {pipeline_mode = #tpu.pipeline_mode<synchronous>, transform_indices = @transform_4, window_bounds = array<i64: 1, 4>}, {transform_indices = @transform_5, window_bounds = array<i64: 64, 4>}]} {
    %c0 = arith.constant 0 : index
    %c0_0 = arith.constant 0 : index
    %0 = vector.load %arg1[%c0, %c0_0] : memref<64x128xbf16, #tpu.memory_space<vmem>>, vector<64x128xbf16>
    %c0_1 = arith.constant 0 : index
    %c0_2 = arith.constant 0 : index
    %1 = vector.load %arg2[%c0_1, %c0_2] : memref<64x128xbf16, #tpu.memory_space<vmem>>, vector<64x128xbf16>
    %2 = tpu.concatenate %0, %1 in 1 : vector<64x128xbf16>, vector<64x128xbf16> -> vector<64x256xbf16>
    %c0_3 = arith.constant 0 : index
    %c0_4 = arith.constant 0 : index
    %3 = vector.load %arg3[%c0_3, %c0_4] : memref<256x4xbf16, #tpu.memory_space<vmem>>, vector<256x4xbf16>
    %cst = arith.constant dense<0.000000e+00> : vector<64x4xf32>
    %4 = tpu.matmul %2, %3, %cst {dimension_numbers = #tpu.dot_dimension_numbers<[1], [0], [0], [1], [0, 0, 1, 1], [], []>} : vector<64x256xbf16>, vector<256x4xbf16>, vector<64x4xf32> -> vector<64x4xf32>
    %c0_5 = arith.constant 0 : index
    %c0_6 = arith.constant 0 : index
    %5 = vector.load %arg4[%c0_5, %c0_6] : memref<1x4xf32, #tpu.memory_space<vmem>>, vector<1x4xf32>
    %c0_7 = arith.constant 0 : index
    %c0_8 = arith.constant 0 : index
    %6 = vector.load %arg5[%c0_7, %c0_8] : memref<1x4xf32, #tpu.memory_space<vmem>>, vector<1x4xf32>
    %7 = vector.broadcast %5 : vector<1x4xf32> to vector<64x4xf32>
    %8 = arith.mulf %4, %7 : vector<64x4xf32>
    %9 = vector.broadcast %6 : vector<1x4xf32> to vector<64x4xf32>
    %10 = arith.addf %8, %9 : vector<64x4xf32>
    %cst_9 = arith.constant 0.000000e+00 : f32
    %11 = vector.broadcast %cst_9 : f32 to vector<64x4xf32>
    %12 = arith.subf %11, %10 : vector<64x4xf32>
    %13 = math.exp %12 : vector<64x4xf32>
    %cst_10 = arith.constant 1.000000e+00 : f32
    %14 = vector.broadcast %cst_10 : f32 to vector<64x4xf32>
    %15 = arith.addf %14, %13 : vector<64x4xf32>
    %16 = tpu.reciprocal %15 {approx = true} : vector<64x4xf32> -> vector<64x4xf32>
    %17 = arith.mulf %10, %16 : vector<64x4xf32>
    %c0_11 = arith.constant 0 : index
    %c0_12 = arith.constant 0 : index
    %18 = vector.load %arg6[%c0_11, %c0_12] : memref<64x4xf32, #tpu.memory_space<vmem>>, vector<64x4xf32>
    tpu.vector_store %arg6[%c0_11, %c0_12], %17 {strides = array<i32>} : memref<64x4xf32, #tpu.memory_space<vmem>>, vector<64x4xf32>,
    return
  }
  func.func @transform_0(%arg0: i32) -> (i32, i32) {
    %c0_i32 = arith.constant 0 : i32
    %c0_i32_0 = arith.constant 0 : i32
    return %arg0, %c0_i32 : i32, i32
  }
  func.func @transform_1(%arg0: i32) -> (i32, i32) {
    %c0_i32 = arith.constant 0 : i32
    %c0_i32_0 = arith.constant 0 : i32
    return %arg0, %c0_i32 : i32, i32
  }
  func.func @transform_2(%arg0: i32) -> (i32, i32) {
    %c0_i32 = arith.constant 0 : i32
    %c0_i32_0 = arith.constant 0 : i32
    %c0_i32_1 = arith.constant 0 : i32
    return %c0_i32, %c0_i32_0 : i32, i32
  }
  func.func @transform_3(%arg0: i32) -> (i32, i32) {
    %c0_i32 = arith.constant 0 : i32
    %c0_i32_0 = arith.constant 0 : i32
    %c0_i32_1 = arith.constant 0 : i32
    return %c0_i32, %c0_i32_0 : i32, i32
  }
  func.func @transform_4(%arg0: i32) -> (i32, i32) {
    %c0_i32 = arith.constant 0 : i32
    %c0_i32_0 = arith.constant 0 : i32
    %c0_i32_1 = arith.constant 0 : i32
    return %c0_i32, %c0_i32_0 : i32, i32
  }
  func.func @transform_5(%arg0: i32) -> (i32, i32) {
    %c0_i32 = arith.constant 0 : i32
    %c0_i32_0 = arith.constant 0 : i32
    return %arg0, %c0_i32 : i32, i32
  }
}

</mosaic_0001>

<llo_original>
// kernel: csp_bottleneck_forward.3
$region0: #{csp_bottleneck_forward.3}
  #allocation0 [shape = 'u32[]', space=smem, size = 0x4, offset = 0x4, fixed_abs, tag = 'smem constant byte address 0x4 - core index']
  #allocation1 [shape = 'u32[144,128]{1,0:T(1,128)}', space=vmem, size = 0x12000, scoped, tag = 'internal scratch']
  %s0 = inlined_call_operand.vmem [shape: f32[512,4], index: 0, kind: input, shape index: {}]
  %s1 = inlined_call_operand.vmem [shape: bf16[4,256], index: 1, kind: input, shape index: {}]
  %s2 = inlined_call_operand.vmem [shape: f32[1,256], index: 2, kind: input, shape index: {}]
  %s3 = inlined_call_operand.vmem [shape: f32[1,256], index: 3, kind: input, shape index: {}]
  %s4 = inlined_call_operand.vmem [shape: bf16[512,128], index: 4, kind: output, shape index: {0}]
  %s5 = inlined_call_operand.vmem [shape: bf16[512,128], index: 5, kind: output, shape index: {1}]
  %6 = xla_tuple %s4, %s5
  %s7 = sld [smem:[#allocation0]]
  $region57: #{csp_bottleneck_forward.3} parent=0
    _
  %s9 = ssub.s32 1, %s7
  %s10 = scalar_select 0, %s9, %s7
  loop: start=0, step=1, limit=10
  $region2: #{csp_bottleneck_forward.3} parent=0 // loop_pre_header
    _
  $region3: #{csp_bottleneck_forward.3} parent=0 // loop_header
    %s12 = sphi 0, %s16
    %p13 = scmp.ge.s32.totalorder %s12, 10
    %s22 = sphi 0, %s24
    %s25 = sphi 0, %s22
    %s26 = sphi 0, %s25
    %s42 = sphi 0, %s26
    %s46 = sphi 0, %s46
    %s48 = sphi 0, %s46
    %s49 = sphi 0, %s48
    %s63 = sphi 0, %s49
    %s67 = sphi 0, %s67
    %s69 = sphi 0, %s67
    %s70 = sphi 0, %s69
    %s84 = sphi 0, %s70
    %s88 = sphi 0, %s88
    %s90 = sphi 0, %s88
    %s91 = sphi 0, %s90
    %s105 = sphi 0, %s91
    %s111 = sphi 0, %s113
    %s114 = sphi 0, %s111
    %s115 = sphi 0, %s114
    %s131 = sphi 0, %s115
    %s137 = sphi 0, %s139
    %s140 = sphi 0, %s137
    %s141 = sphi 0, %s140
    %s157 = sphi 0, %s141
  $region4: #{csp_bottleneck_forward.3} parent=0 // loop_header_branch
    %15 = sbr.rel (%p13) target = $region8
  $region5: #{csp_bottleneck_forward.3} parent=0 // loop_body
    %s17 = ssub.s32 %s12, 1
    %s18 = ssub.s32 %s12, 2
    %s19 = sadd.s32 %s12, 1
    %s20 = ssub.s32 %s12, %s19
    %p21 = scmp.eq.s32.totalorder %s20, 0
    %s23 = sadd.s32 %s22, 1
    %s24 = scalar_select %p21, %s22, %s23
    %p27 = pneg %p21
    %p28 = scmp.eq.s32.totalorder %s12, 7
    %p29 = por %p27, %p28
    %p30 = scmp.ne.s32.totalorder %s22, %s25
    %p31 = scmp.eq.s32.totalorder %s12, 0
    %p32 = por %p30, %p31
    %p33 = scmp.ne.s32.totalorder %s22, %s25
    %p34 = scmp.eq.s32.totalorder %s17, 7
    %p35 = por %p33, %p34
    %p36 = scmp.ne.s32.totalorder %s25, %s26
    %p37 = scmp.eq.s32.totalorder %s17, 0
    %p38 = por %p36, %p37
    %p39 = scmp.ne.s32.totalorder %s25, %s26
    %p40 = scmp.eq.s32.totalorder %s18, 7
    %p41 = por %p39, %p40
    %p43 = scmp.ne.s32.totalorder %s26, %s42
    %p44 = scmp.eq.s32.totalorder %s18, 0
    %p45 = por %p43, %p44
    %s47 = sadd.s32 %s46, 1
    %p50 = scmp.eq.s32.totalorder %s12, 7
    %p51 = scmp.ne.s32.totalorder %s46, %s48
    %p52 = scmp.eq.s32.totalorder %s12, 0
    %p53 = por %p51, %p52
    %p54 = scmp.ne.s32.totalorder %s46, %s48
    %p55 = scmp.eq.s32.totalorder %s17, 7
    %p56 = por %p54, %p55
    %p57 = scmp.ne.s32.totalorder %s48, %s49
    %p58 = scmp.eq.s32.totalorder %s17, 0
    %p59 = por %p57, %p58
    %p60 = scmp.ne.s32.totalorder %s48, %s49
    %p61 = scmp.eq.s32.totalorder %s18, 7
    %p62 = por %p60, %p61
    %p64 = scmp.ne.s32.totalorder %s49, %s63
    %p65 = scmp.eq.s32.totalorder %s18, 0
    %p66 = por %p64, %p65
    %s68 = sadd.s32 %s67, 1
    %p71 = scmp.eq.s32.totalorder %s12, 7
    %p72 = scmp.ne.s32.totalorder %s67, %s69
    %p73 = scmp.eq.s32.totalorder %s12, 0
    %p74 = por %p72, %p73
    %p75 = scmp.ne.s32.totalorder %s67, %s69
    %p76 = scmp.eq.s32.totalorder %s17, 7
    %p77 = por %p75, %p76
    %p78 = scmp.ne.s32.totalorder %s69, %s70
    %p79 = scmp.eq.s32.totalorder %s17, 0
    %p80 = por %p78, %p79
    %p81 = scmp.ne.s32.totalorder %s69, %s70
    %p82 = scmp.eq.s32.totalorder %s18, 7
    %p83 = por %p81, %p82
    %p85 = scmp.ne.s32.totalorder %s70, %s84
    %p86 = scmp.eq.s32.totalorder %s18, 0
    %p87 = por %p85, %p86
    %s89 = sadd.s32 %s88, 1
    %p92 = scmp.eq.s32.totalorder %s12, 7
    %p93 = scmp.ne.s32.totalorder %s88, %s90
    %p94 = scmp.eq.s32.totalorder %s12, 0
    %p95 = por %p93, %p94
    %p96 = scmp.ne.s32.totalorder %s88, %s90
    %p97 = scmp.eq.s32.totalorder %s17, 7
    %p98 = por %p96, %p97
    %p99 = scmp.ne.s32.totalorder %s90, %s91
    %p100 = scmp.eq.s32.totalorder %s17, 0
    %p101 = por %p99, %p100
    %p102 = scmp.ne.s32.totalorder %s90, %s91
    %p103 = scmp.eq.s32.totalorder %s18, 7
    %p104 = por %p102, %p103
    %p106 = scmp.ne.s32.totalorder %s91, %s105
    %p107 = scmp.eq.s32.totalorder %s18, 0
    %p108 = por %p106, %p107
    %s109 = ssub.s32 %s12, %s19
    %p110 = scmp.eq.s32.totalorder %s109, 0
    %s112 = sadd.s32 %s111, 1
    %s113 = scalar_select %p110, %s111, %s112
    %p116 = pneg %p110
    %p117 = scmp.eq.s32.totalorder %s12, 7
    %p118 = por %p116, %p117
    %p119 = scmp.ne.s32.totalorder %s111, %s114
    %p120 = scmp.eq.s32.totalorder %s12, 0
    %p121 = por %p119, %p120
    %p122 = scmp.ne.s32.totalorder %s111, %s114
    %p123 = scmp.eq.s32.totalorder %s17, 7
    %p124 = por %p122, %p123
    %p125 = scmp.ne.s32.totalorder %s114, %s115
    %p126 = scmp.eq.s32.totalorder %s17, 0
    %p127 = por %p125, %p126
    %p128 = scmp.ne.s32.totalorder %s114, %s115
    %p129 = scmp.eq.s32.totalorder %s18, 7
    %p130 = por %p128, %p129
    %p132 = scmp.ne.s32.totalorder %s115, %s131
    %p133 = scmp.eq.s32.totalorder %s18, 0
    %p134 = por %p132, %p133
    %s135 = ssub.s32 %s12, %s19
    %p136 = scmp.eq.s32.totalorder %s135, 0
    %s138 = sadd.s32 %s137, 1
    %s139 = scalar_select %p136, %s137, %s138
    %p142 = pneg %p136
    %p143 = scmp.eq.s32.totalorder %s12, 7
    %p144 = por %p142, %p143
    %p145 = scmp.ne.s32.totalorder %s137, %s140
    %p146 = scmp.eq.s32.totalorder %s12, 0
    %p147 = por %p145, %p146
    %p148 = scmp.ne.s32.totalorder %s137, %s140
    %p149 = scmp.eq.s32.totalorder %s17, 7
    %p150 = por %p148, %p149
    %p151 = scmp.ne.s32.totalorder %s140, %s141
    %p152 = scmp.eq.s32.totalorder %s17, 0
    %p153 = por %p151, %p152
    %p154 = scmp.ne.s32.totalorder %s140, %s141
    %p155 = scmp.eq.s32.totalorder %s18, 7
    %p156 = por %p154, %p155
    %p158 = scmp.ne.s32.totalorder %s141, %s157
    %p159 = scmp.eq.s32.totalorder %s18, 0
    %p160 = por %p158, %p159
    %p161 = scmp.le.s32.totalorder 1, %s12
    %p162 = scmp.lt.s32.totalorder %s12, 9
    %p163 = pnand %p161, %p162
    %p164 = pneg %p163
    // Predicated region
    $region9: #{csp_bottleneck_forward.3} parent=5 // pred_check
      _
    $region10: #{csp_bottleneck_forward.3} parent=5 // pred_check_branch
      %166 = sbr.rel (%p163) target = $region12
    $region11: #{csp_bottleneck_forward.3} parent=5 // pred_region
      %s167 = ssub.s32 %s12, 1
      // Predicated region
      $region13: #{csp_bottleneck_forward.3} parent=11 // pred_check
        %p168 = pneg %p59
      $region14: #{csp_bottleneck_forward.3} parent=11 // pred_check_branch
        %170 = sbr.rel (%p168) target = $region16
      $region15: #{csp_bottleneck_forward.3} parent=11 // pred_region
        _
      $region16: #{csp_bottleneck_forward.3} parent=11 // pred_fallthru
        _
      // Predicated region
      $region17: #{csp_bottleneck_forward.3} parent=11 // pred_check
        %p171 = pneg %p80
      $region18: #{csp_bottleneck_forward.3} parent=11 // pred_check_branch
        %173 = sbr.rel (%p171) target = $region20
      $region19: #{csp_bottleneck_forward.3} parent=11 // pred_region
        _
      $region20: #{csp_bottleneck_forward.3} parent=11 // pred_fallthru
        _
      // Predicated region
      $region21: #{csp_bottleneck_forward.3} parent=11 // pred_check
        %p174 = pneg %p101
      $region22: #{csp_bottleneck_forward.3} parent=11 // pred_check_branch
        %176 = sbr.rel (%p174) target = $region24
      $region23: #{csp_bottleneck_forward.3} parent=11 // pred_region
        _
      $region24: #{csp_bottleneck_forward.3} parent=11 // pred_fallthru
        _
    $region12: #{csp_bottleneck_forward.3} parent=5 // pred_fallthru
      _
    %p177 = scmp.lt.s32.totalorder %s12, 8
    // Predicated region
    $region25: #{csp_bottleneck_forward.3} parent=5 // pred_check
      %p178 = pneg %p177
    $region26: #{csp_bottleneck_forward.3} parent=5 // pred_check_branch
      %180 = sbr.rel (%p178) target = $region28
    $region27: #{csp_bottleneck_forward.3} parent=5 // pred_region
      // Predicated region
      $region29: #{csp_bottleneck_forward.3} parent=27 // pred_check
        %p181 = pneg %p32
      $region30: #{csp_bottleneck_forward.3} parent=27 // pred_check_branch
        %183 = sbr.rel (%p181) target = $region32
      $region31: #{csp_bottleneck_forward.3} parent=27 // pred_region
        %s184 = smul.u32 8, %s12
        %p185 = scmp.lt.s32.totalorder %s184, 63
        %s186 = scalar_select %p185, %s184, 63
        %s187 = smul.addr %s186, 8
        %s188 = scalar_lea.vmem %s0, %s187
        %s189 = smul.u32 8, %s12
      $region32: #{csp_bottleneck_forward.3} parent=27 // pred_fallthru
        _
    $region28: #{csp_bottleneck_forward.3} parent=5 // pred_fallthru
      _
    %p190 = scmp.le.s32.totalorder 1, %s12
    %p191 = scmp.lt.s32.totalorder %s12, 9
    %p192 = pnand %p190, %p191
    %p193 = pneg %p192
    // Predicated region
    $region33: #{csp_bottleneck_forward.3} parent=5 // pred_check
      _
    $region34: #{csp_bottleneck_forward.3} parent=5 // pred_check_branch
      %195 = sbr.rel (%p192) target = $region36
    $region35: #{csp_bottleneck_forward.3} parent=5 // pred_region
      %s196 = ssub.s32 %s12, 1
      %s197 = smul.u32 8, %s17
      %p198 = scmp.lt.s32.totalorder %s197, 63
      %s199 = scalar_select %p198, %s197, 63
      %s200 = smul.addr %s199, 8
      %s201 = scalar_lea.vmem %s0, %s200
      %p202 = pneg %p38
      %p203 = pneg %p35
      %p204 = pneg %p59
      %p205 = pneg %p56
      %p206 = pneg %p80
      %p207 = pneg %p77
      %p208 = pneg %p101
      %p209 = pneg %p98
      %p210 = pneg %p127
      %p211 = pneg %p124
      %s212 = smul.u32 8, %s17
      %p213 = scmp.lt.s32.totalorder %s212, 63
      %s214 = scalar_select %p213, %s212, 63
      %s215 = smul.addr %s214, 4
      %s216 = scalar_lea.vmem %s4, %s215
      %p217 = pneg %p153
      %p218 = pneg %p150
      %s219 = smul.u32 8, %s17
      %p220 = scmp.lt.s32.totalorder %s219, 63
      %s221 = scalar_select %p220, %s219, 63
      %s222 = smul.addr %s221, 4
      %s223 = scalar_lea.vmem %s5, %s222
      %s224 = smul.u32 8, %s17
      %p225 = scmp.lt.s32.totalorder %s224, 63
      %s226 = scalar_select %p225, %s224, 63
      %s227 = smul.addr %s226, 8
      %s228 = scalar_lea.vmem %s0, %s227
      %s229 = smul.u32 8, %s17
      %s230 = smul.u32 8, %s17
      %p231 = scmp.lt.s32.totalorder %s230, 63
      %s232 = scalar_select %p231, %s230, 63
      %s233 = smul.addr %s232, 4
      %s234 = scalar_lea.vmem %s4, %s233
      %s235 = smul.u32 8, %s17
      %s236 = smul.u32 8, %s17
      %p237 = scmp.lt.s32.totalorder %s236, 63
      %s238 = scalar_select %p237, %s236, 63
      %s239 = smul.addr %s238, 4
      %s240 = scalar_lea.vmem %s5, %s239
      %s241 = smul.u32 8, %s17
      %v243 = vld [vmem:[%s228] sm:$0xff]
      %v244 = vld [vmem:[%s228 + $0x8] sm:$0xff]
      %v245 = vld [vmem:[%s228 + $0x10] sm:$0xff]
      %v246 = vld [vmem:[%s228 + $0x18] sm:$0xff]
      %v247 = vld [vmem:[%s228 + $0x20] sm:$0xff]
      %v248 = vld [vmem:[%s228 + $0x28] sm:$0xff]
      %v249 = vld [vmem:[%s228 + $0x30] sm:$0xff]
      %v250 = vld [vmem:[%s228 + $0x38] sm:$0xff]
      %v251 = vpack.c.bf16 %v244, %v243
      %v252 = vpack.c.bf16 %v246, %v245
      %v253 = vpack.c.bf16 %v248, %v247
      %v254 = vpack.c.bf16 %v250, %v249
      %v255 = vld [vmem:[%s1] sm:$0xf]
      %v258 = vunpack.c.l.s4 1983009808
      %v259 = vunpack.c.0.s8 %v258
      %v260 = vlaneseq
      %v261 = vshrl.u32 %v260, 7
      %v262 = vsub.s32 %v259, %v261
      %v263 = vrot.slane %v255, %v262
      %v264 = vcombine.high %v263, %v263
      %vm265 = vcmask 31744
      %v267 = vsel %vm265, %v251, 0
      %v270 = vsel %vm265, %v252, 0
      %v273 = vsel %vm265, %v253, 0
      %v276 = vsel %vm265, %v254, 0
      %vm278 = vcmask 1041408
      %v280 = vsel %vm278, %v263, 0
      %v283 = vsel %vm278, %v264, 0
      %285 = vmatprep.subr.bf16.mxu0 0
      %286 = vmatpush1.bf16.msra.mxu0 0
      %287 = vmatprep.subr.bf16.mxu0 0
      %288 = vmatpush1.bf16.msra.mxu0 0
      %289 = vmatprep.subr.bf16.mxu0 0
      %290 = vmatpush1.bf16.msra.mxu0 0
      %291 = vmatprep.subr.bf16.mxu0 0
      %292 = vmatpush1.bf16.msra.mxu0 0
      %293 = vmatprep.subr.bf16.mxu0 0
      %294 = vmatpush1.bf16.msra.mxu0 0
      %295 = vmatprep.subr.bf16.mxu0 0
      %296 = vmatpush1.bf16.msra.mxu0 0
      %297 = vmatprep.subr.bf16.mxu0 0
      %298 = vmatpush1.bf16.msra.mxu0 0
      %299 = vmatprep.subr.bf16.mxu0 %v283
      %300 = vmatpush1.bf16.msra.mxu0 %v280
      %301 = vmatprep.subr.bf16.mxu0 0
      %302 = vmatpush2.bf16.msra.mxu0 0
      %303 = vmatprep.subr.bf16.mxu0 0
      %304 = vmatpush2.bf16.msra.mxu0 0
      %305 = vmatprep.subr.bf16.mxu0 0
      %306 = vmatpush2.bf16.msra.mxu0 0
      %307 = vmatprep.subr.bf16.mxu0 0
      %308 = vmatpush2.bf16.msra.mxu0 0
      %309 = vmatprep.subr.bf16.mxu0 0
      %310 = vmatpush2.bf16.msra.mxu0 0
      %311 = vmatprep.subr.bf16.mxu0 0
      %312 = vmatpush2.bf16.msra.mxu0 0
      %313 = vmatprep.subr.bf16.mxu0 0
      %314 = vmatpush2.bf16.msra.mxu0 0
      %315 = vmatprep.subr.bf16.mxu0 0
      %316 = vmatpush2.bf16.msra.mxu0 0
      %317 = vmatprep.mubr.bf16.mxu0 0
      %318 = vmatmul.mubr.bf16.gmra.mxu0 %v267
      %v319 = vpop.f32.mrf.mxu0
      %v320 = vadd.f32 0.0, %v319
      %v321 = vpop.f32.mrf.mxu0
      %v322 = vadd.f32 0.0, %v321
      %v323 = vpop.f32.mrf.mxu0
      %v324 = vadd.f32 0.0, %v323
      %v325 = vpop.f32.mrf.mxu0
      %v326 = vadd.f32 0.0, %v325
      %327 = vmatprep.mubr.bf16.mxu0 0
      %328 = vmatmul.mubr.bf16.gmra.mxu0 %v270
      %v329 = vpop.f32.mrf.mxu0
      %v330 = vadd.f32 0.0, %v329
      %v331 = vpop.f32.mrf.mxu0
      %v332 = vadd.f32 0.0, %v331
      %v333 = vpop.f32.mrf.mxu0
      %v334 = vadd.f32 0.0, %v333
      %v335 = vpop.f32.mrf.mxu0
      %v336 = vadd.f32 0.0, %v335
      %337 = vmatprep.mubr.bf16.mxu0 0
      %338 = vmatmul.mubr.bf16.gmra.mxu0 %v273
      %v339 = vpop.f32.mrf.mxu0
      %v340 = vadd.f32 0.0, %v339
      %v341 = vpop.f32.mrf.mxu0
      %v342 = vadd.f32 0.0, %v341
      %v343 = vpop.f32.mrf.mxu0
      %v344 = vadd.f32 0.0, %v343
      %v345 = vpop.f32.mrf.mxu0
      %v346 = vadd.f32 0.0, %v345
      %347 = vmatprep.mubr.bf16.mxu0 0
      %348 = vmatmul.mubr.bf16.gmra.mxu0 %v276
      %v349 = vpop.f32.mrf.mxu0
      %v350 = vadd.f32 0.0, %v349
      %v351 = vpop.f32.mrf.mxu0
      %v352 = vadd.f32 0.0, %v351
      %v353 = vpop.f32.mrf.mxu0
      %v354 = vadd.f32 0.0, %v353
      %v355 = vpop.f32.mrf.mxu0
      %v356 = vadd.f32 0.0, %v355
      %357 = vdwg.mxu0
      %v358 = vld [vmem:[%s2] sm:$0x3]
      %v359 = vld [vmem:[%s3] sm:$0x3]
      %v361 = vlaneseq
      %v362 = vshrl.u32 %v361, 7
      %v363 = vsub.s32 0, %v362
      %v364 = vrot.slane %v358, %v363
      %v365 = vlaneseq
      %v366 = vshrl.u32 %v365, 7
      %v367 = vsub.s32 1, %v366
      %v368 = vrot.slane %v358, %v367
      %v371 = vmul.f32 %v320, %v364
      %v372 = vmul.f32 %v322, %v368
      %v373 = vmul.f32 %v324, %v364
      %v374 = vmul.f32 %v326, %v368
      %v375 = vmul.f32 %v330, %v364
      %v376 = vmul.f32 %v332, %v368
      %v377 = vmul.f32 %v334, %v364
      %v378 = vmul.f32 %v336, %v368
      %v379 = vmul.f32 %v340, %v364
      %v380 = vmul.f32 %v342, %v368
      %v381 = vmul.f32 %v344, %v364
      %v382 = vmul.f32 %v346, %v368
      %v383 = vmul.f32 %v350, %v364
      %v384 = vmul.f32 %v352, %v368
      %v385 = vmul.f32 %v354, %v364
      %v386 = vmul.f32 %v356, %v368
      %v388 = vlaneseq
      %v389 = vshrl.u32 %v388, 7
      %v390 = vsub.s32 0, %v389
      %v391 = vrot.slane %v359, %v390
      %v392 = vlaneseq
      %v393 = vshrl.u32 %v392, 7
      %v394 = vsub.s32 1, %v393
      %v395 = vrot.slane %v359, %v394
      %v398 = vadd.f32 %v371, %v391
      %v399 = vadd.f32 %v372, %v395
      %v400 = vadd.f32 %v373, %v391
      %v401 = vadd.f32 %v374, %v395
      %v402 = vadd.f32 %v375, %v391
      %v403 = vadd.f32 %v376, %v395
      %v404 = vadd.f32 %v377, %v391
      %v405 = vadd.f32 %v378, %v395
      %v406 = vadd.f32 %v379, %v391
      %v407 = vadd.f32 %v380, %v395
      %v408 = vadd.f32 %v381, %v391
      %v409 = vadd.f32 %v382, %v395
      %v410 = vadd.f32 %v383, %v391
      %v411 = vadd.f32 %v384, %v395
      %v412 = vadd.f32 %v385, %v391
      %v413 = vadd.f32 %v386, %v395
      %v414 = vsub.f32 0.0, %v398
      %v415 = vsub.f32 0.0, %v399
      %v416 = vsub.f32 0.0, %v400
      %v417 = vsub.f32 0.0, %v401
      %v418 = vsub.f32 0.0, %v402
      %v419 = vsub.f32 0.0, %v403
      %v420 = vsub.f32 0.0, %v404
      %v421 = vsub.f32 0.0, %v405
      %v422 = vsub.f32 0.0, %v406
      %v423 = vsub.f32 0.0, %v407
      %v424 = vsub.f32 0.0, %v408
      %v425 = vsub.f32 0.0, %v409
      %v426 = vsub.f32 0.0, %v410
      %v427 = vsub.f32 0.0, %v411
      %v428 = vsub.f32 0.0, %v412
      %v429 = vsub.f32 0.0, %v413
      %v430 = vmul.f32 %v414, 1.442695
      %v431 = vpow.pop %v430
      %v432 = vmul.f32 %v415, 1.442695
      %v433 = vpow.pop %v432
      %v434 = vmul.f32 %v416, 1.442695
      %v435 = vpow.pop %v434
      %v436 = vmul.f32 %v417, 1.442695
      %v437 = vpow.pop %v436
      %v438 = vmul.f32 %v418, 1.442695
      %v439 = vpow.pop %v438
      %v440 = vmul.f32 %v419, 1.442695
      %v441 = vpow.pop %v440
      %v442 = vmul.f32 %v420, 1.442695
      %v443 = vpow.pop %v442
      %v444 = vmul.f32 %v421, 1.442695
      %v445 = vpow.pop %v444
      %v446 = vmul.f32 %v422, 1.442695
      %v447 = vpow.pop %v446
      %v448 = vmul.f32 %v423, 1.442695
      %v449 = vpow.pop %v448
      %v450 = vmul.f32 %v424, 1.442695
      %v451 = vpow.pop %v450
      %v452 = vmul.f32 %v425, 1.442695
      %v453 = vpow.pop %v452
      %v454 = vmul.f32 %v426, 1.442695
      %v455 = vpow.pop %v454
      %v456 = vmul.f32 %v427, 1.442695
      %v457 = vpow.pop %v456
      %v458 = vmul.f32 %v428, 1.442695
      %v459 = vpow.pop %v458
      %v460 = vmul.f32 %v429, 1.442695
      %v461 = vpow.pop %v460
      %v462 = vadd.f32 %v431, 1.0
      %v463 = vadd.f32 %v433, 1.0
      %v464 = vadd.f32 %v435, 1.0
      %v465 = vadd.f32 %v437, 1.0
      %v466 = vadd.f32 %v439, 1.0
      %v467 = vadd.f32 %v441, 1.0
      %v468 = vadd.f32 %v443, 1.0
      %v469 = vadd.f32 %v445, 1.0
      %v470 = vadd.f32 %v447, 1.0
      %v471 = vadd.f32 %v449, 1.0
      %v472 = vadd.f32 %v451, 1.0
      %v473 = vadd.f32 %v453, 1.0
      %v474 = vadd.f32 %v455, 1.0
      %v475 = vadd.f32 %v457, 1.0
      %v476 = vadd.f32 %v459, 1.0
      %v477 = vadd.f32 %v461, 1.0
      %v478 = vrcp.pop %v462
      %v479 = vrcp.pop %v463
      %v480 = vrcp.pop %v464
      %v481 = vrcp.pop %v465
      %v482 = vrcp.pop %v466
      %v483 = vrcp.pop %v467
      %v484 = vrcp.pop %v468
      %v485 = vrcp.pop %v469
      %v486 = vrcp.pop %v470
      %v487 = vrcp.pop %v471
      %v488 = vrcp.pop %v472
      %v489 = vrcp.pop %v473
      %v490 = vrcp.pop %v474
      %v491 = vrcp.pop %v475
      %v492 = vrcp.pop %v476
      %v493 = vrcp.pop %v477
      %v494 = vmul.f32 %v398, %v478
      %v495 = vmul.f32 %v399, %v479
      %v496 = vmul.f32 %v400, %v480
      %v497 = vmul.f32 %v401, %v481
      %v498 = vmul.f32 %v402, %v482
      %v499 = vmul.f32 %v403, %v483
      %v500 = vmul.f32 %v404, %v484
      %v501 = vmul.f32 %v405, %v485
      %v502 = vmul.f32 %v406, %v486
      %v503 = vmul.f32 %v407, %v487
      %v504 = vmul.f32 %v408, %v488
      %v505 = vmul.f32 %v409, %v489
      %v506 = vmul.f32 %v410, %v490
      %v507 = vmul.f32 %v411, %v491
      %v508 = vmul.f32 %v412, %v492
      %v509 = vmul.f32 %v413, %v493
      %v510 = vpack.c.bf16 %v496, %v494
      %v511 = vpack.c.bf16 %v500, %v498
      %v512 = vpack.c.bf16 %v504, %v502
      %v513 = vpack.c.bf16 %v508, %v506
      %v518 = vunpack.c.l.b16 %v510
      %v519 = vunpack.c.h.b16 %v510
      %v520 = vunpack.c.l.b16 %v511
      %v521 = vunpack.c.h.b16 %v511
      %v522 = vunpack.c.l.b16 %v512
      %v523 = vunpack.c.h.b16 %v512
      %v524 = vunpack.c.l.b16 %v513
      %v525 = vunpack.c.h.b16 %v513
      %v526 = vpack.c.b16 %v518, %v518
      %v527 = vpack.c.b16 %v519, %v519
      %v528 = vpack.c.b16 %v520, %v520
      %v529 = vpack.c.b16 %v521, %v521
      %v530 = vpack.c.b16 %v522, %v522
      %v531 = vpack.c.b16 %v523, %v523
      %v532 = vpack.c.b16 %v524, %v524
      %v533 = vpack.c.b16 %v525, %v525
      %542 = vst [vmem:[%s234] sm:$0xf] %v526
      %543 = vst [vmem:[%s234 + $0x4] sm:$0xf] %v527
      %544 = vst [vmem:[%s234 + $0x8] sm:$0xf] %v528
      %545 = vst [vmem:[%s234 + $0xc] sm:$0xf] %v529
      %546 = vst [vmem:[%s234 + $0x10] sm:$0xf] %v530
      %547 = vst [vmem:[%s234 + $0x14] sm:$0xf] %v531
      %548 = vst [vmem:[%s234 + $0x18] sm:$0xf] %v532
      %549 = vst [vmem:[%s234 + $0x1c] sm:$0xf] %v533
      %v550 = vpack.c.bf16 %v497, %v495
      %v551 = vpack.c.bf16 %v501, %v499
      %v552 = vpack.c.bf16 %v505, %v503
      %v553 = vpack.c.bf16 %v509, %v507
      %v558 = vunpack.c.l.b16 %v550
      %v559 = vunpack.c.h.b16 %v550
      %v560 = vunpack.c.l.b16 %v551
      %v561 = vunpack.c.h.b16 %v551
      %v562 = vunpack.c.l.b16 %v552
      %v563 = vunpack.c.h.b16 %v552
      %v564 = vunpack.c.l.b16 %v553
      %v565 = vunpack.c.h.b16 %v553
      %v566 = vpack.c.b16 %v558, %v558
      %v567 = vpack.c.b16 %v559, %v559
      %v568 = vpack.c.b16 %v560, %v560
      %v569 = vpack.c.b16 %v561, %v561
      %v570 = vpack.c.b16 %v562, %v562
      %v571 = vpack.c.b16 %v563, %v563
      %v572 = vpack.c.b16 %v564, %v564
      %v573 = vpack.c.b16 %v565, %v565
      %582 = vst [vmem:[%s240] sm:$0xf] %v566
      %583 = vst [vmem:[%s240 + $0x4] sm:$0xf] %v567
      %584 = vst [vmem:[%s240 + $0x8] sm:$0xf] %v568
      %585 = vst [vmem:[%s240 + $0xc] sm:$0xf] %v569
      %586 = vst [vmem:[%s240 + $0x10] sm:$0xf] %v570
      %587 = vst [vmem:[%s240 + $0x14] sm:$0xf] %v571
      %588 = vst [vmem:[%s240 + $0x18] sm:$0xf] %v572
      %589 = vst [vmem:[%s240 + $0x1c] sm:$0xf] %v573
      %s590 = smul.u32 8, %s17
      %p591 = scmp.lt.s32.totalorder %s590, 63
      %s592 = scalar_select %p591, %s590, 63
      %s593 = smul.addr %s592, 4
      %s594 = scalar_lea.vmem %s4, %s593
      %s595 = smul.u32 8, %s17
      %p596 = scmp.lt.s32.totalorder %s595, 63
      %s597 = scalar_select %p596, %s595, 63
      %s598 = smul.addr %s597, 4
      %s599 = scalar_lea.vmem %s5, %s598
      // Predicated region
      $region37: #{csp_bottleneck_forward.3} parent=35 // pred_check
        %p600 = pneg %p124
      $region38: #{csp_bottleneck_forward.3} parent=35 // pred_check_branch
        %602 = sbr.rel (%p600) target = $region40
      $region39: #{csp_bottleneck_forward.3} parent=35 // pred_region
        %s603 = smul.u32 8, %s17
      $region40: #{csp_bottleneck_forward.3} parent=35 // pred_fallthru
        _
      // Predicated region
      $region41: #{csp_bottleneck_forward.3} parent=35 // pred_check
        %p604 = pneg %p150
      $region42: #{csp_bottleneck_forward.3} parent=35 // pred_check_branch
        %606 = sbr.rel (%p604) target = $region44
      $region43: #{csp_bottleneck_forward.3} parent=35 // pred_region
        %s607 = smul.u32 8, %s17
      $region44: #{csp_bottleneck_forward.3} parent=35 // pred_fallthru
        _
    $region36: #{csp_bottleneck_forward.3} parent=5 // pred_fallthru
      _
    %p608 = scmp.le.s32.totalorder 2, %s12
    // Predicated region
    $region45: #{csp_bottleneck_forward.3} parent=5 // pred_check
      %p609 = pneg %p608
    $region46: #{csp_bottleneck_forward.3} parent=5 // pred_check_branch
      %611 = sbr.rel (%p609) target = $region48
    $region47: #{csp_bottleneck_forward.3} parent=5 // pred_region
      %s612 = ssub.s32 %s12, 2
      // Predicated region
      $region49: #{csp_bottleneck_forward.3} parent=47 // pred_check
        %p613 = pneg %p130
      $region50: #{csp_bottleneck_forward.3} parent=47 // pred_check_branch
        %615 = sbr.rel (%p613) target = $region52
      $region51: #{csp_bottleneck_forward.3} parent=47 // pred_region
        %s616 = smul.u32 8, %s18
        %p617 = scmp.lt.s32.totalorder %s616, 63
        %s618 = scalar_select %p617, %s616, 63
        %s619 = smul.addr %s618, 4
        %s620 = scalar_lea.vmem %s4, %s619
      $region52: #{csp_bottleneck_forward.3} parent=47 // pred_fallthru
        _
      // Predicated region
      $region53: #{csp_bottleneck_forward.3} parent=47 // pred_check
        %p621 = pneg %p156
      $region54: #{csp_bottleneck_forward.3} parent=47 // pred_check_branch
        %623 = sbr.rel (%p621) target = $region56
      $region55: #{csp_bottleneck_forward.3} parent=47 // pred_region
        %s624 = smul.u32 8, %s18
        %p625 = scmp.lt.s32.totalorder %s624, 63
        %s626 = scalar_select %p625, %s624, 63
        %s627 = smul.addr %s626, 4
        %s628 = scalar_lea.vmem %s5, %s627
      $region56: #{csp_bottleneck_forward.3} parent=47 // pred_fallthru
        _
    $region48: #{csp_bottleneck_forward.3} parent=5 // pred_fallthru
      _
  $region6: #{csp_bottleneck_forward.3} parent=0 // loop_footer
    %s16 = sadd.s32 1, %s12
  $region7: #{csp_bottleneck_forward.3} parent=0 // loop_footer_branch
    %11 = sbr.rel target = $region3
  $region8: #{csp_bottleneck_forward.3} parent=0 // loop_exit
    _

// kernel: csp_bottleneck_forward.4
$region0: #{csp_bottleneck_forward.4}
  #allocation0 [shape = 'u32[]', space=smem, size = 0x4, offset = 0x4, fixed_abs, tag = 'smem constant byte address 0x4 - core index']
  #allocation1 [shape = 'u32[144,128]{1,0:T(1,128)}', space=vmem, size = 0x12000, scoped, tag = 'internal scratch']
  %s0 = inlined_call_operand.vmem [shape: bf16[512,128], index: 0, kind: input, shape index: {}, may-alias: {0,1,2}]
  %s1 = inlined_call_operand.vmem [shape: bf16[512,128], index: 1, kind: input, shape index: {}, may-alias: {0,1,2}]
  %s2 = inlined_call_operand.vmem [shape: bf16[512,128], index: 2, kind: input, shape index: {}, may-alias: {0,1,2}]
  %s3 = inlined_call_operand.vmem [shape: bf16[128,128], index: 3, kind: input, shape index: {}]
  %s4 = inlined_call_operand.vmem [shape: f32[1,128], index: 4, kind: input, shape index: {}]
  %s5 = inlined_call_operand.vmem [shape: f32[1,128], index: 5, kind: input, shape index: {}]
  %s6 = inlined_call_operand.vmem [shape: bf16[3,384,128], index: 6, kind: input, shape index: {}]
  %s7 = inlined_call_operand.vmem [shape: f32[1,128], index: 7, kind: input, shape index: {}]
  %s8 = inlined_call_operand.vmem [shape: f32[1,128], index: 8, kind: input, shape index: {}]
  %s9 = inlined_call_operand.vmem [shape: bf16[512,128], index: 9, kind: output, shape index: {}]
  %s10 = sld [smem:[#allocation0]]
  $region69: #{csp_bottleneck_forward.4} parent=0
    _
  %s12 = ssub.s32 1, %s10
  %s13 = scalar_select 0, %s12, %s10
  loop: start=0, step=1, limit=10
  $region2: #{csp_bottleneck_forward.4} parent=0 // loop_pre_header
    _
  $region3: #{csp_bottleneck_forward.4} parent=0 // loop_header
    %s15 = sphi 0, %s19
    %p16 = scmp.ge.s32.totalorder %s15, 10
    %s22 = sphi 0, %s34
    %s23 = sphi 0, %s30
    %s24 = sphi 0, %s22
    %s25 = sphi 0, %s23
    %s26 = sphi 0, %s24
    %s27 = sphi 0, %s25
    %s49 = sphi 0, %s51
    %s52 = sphi 0, %s49
    %s53 = sphi 0, %s52
    %s69 = sphi 0, %s53
    %s79 = sphi 0, %s81
    %s82 = sphi 0, %s79
    %s83 = sphi 0, %s82
    %s99 = sphi 0, %s83
    %s117 = sphi 0, %s119
    %s120 = sphi 0, %s117
    %s121 = sphi 0, %s120
    %s137 = sphi 0, %s121
    %s141 = sphi 0, %s141
    %s143 = sphi 0, %s141
    %s144 = sphi 0, %s143
    %s158 = sphi 0, %s144
    %s162 = sphi 0, %s162
    %s164 = sphi 0, %s162
    %s165 = sphi 0, %s164
    %s179 = sphi 0, %s165
    %s183 = sphi 0, %s183
    %s185 = sphi 0, %s183
    %s186 = sphi 0, %s185
    %s200 = sphi 0, %s186
    %s204 = sphi 0, %s204
    %s206 = sphi 0, %s204
    %s207 = sphi 0, %s206
    %s221 = sphi 0, %s207
    %s225 = sphi 0, %s225
    %s227 = sphi 0, %s225
    %s228 = sphi 0, %s227
    %s242 = sphi 0, %s228
    %s246 = sphi 0, %s246
    %s248 = sphi 0, %s246
    %s249 = sphi 0, %s248
    %s263 = sphi 0, %s249
    %s273 = sphi 0, %s275
    %s276 = sphi 0, %s273
    %s277 = sphi 0, %s276
    %s293 = sphi 0, %s277
  $region4: #{csp_bottleneck_forward.4} parent=0 // loop_header_branch
    %18 = sbr.rel (%p16) target = $region8
  $region5: #{csp_bottleneck_forward.4} parent=0 // loop_body
    %s20 = ssub.s32 %s15, 1
    %s21 = ssub.s32 %s15, 2
    %s28 = sadd.s32 1, %s23
    %p29 = scmp.ge.s32.totalorder %s28, 4
    %s30 = scalar_select %p29, 0, %s28
    %s31 = sadd.s32 1, %s22
    %s32 = scalar_select %p29, %s31, %s22
    %p33 = scmp.ge.s32.totalorder %s32, 2
    %s34 = scalar_select %p33, 0, %s32
    %s35 = smul.u32 %s22, 16
    %s36 = smul.u32 %s23, 4
    %s37 = sadd.s32 %s35, %s36
    %s38 = ssub.s32 %s37, 1
    %p39 = scmp.gt.s32.totalorder %s38, 0
    %s40 = scalar_select %p39, %s38, 0
    %s41 = smul.u32 %s34, 16
    %s42 = smul.u32 %s30, 4
    %s43 = sadd.s32 %s41, %s42
    %s44 = ssub.s32 %s43, 1
    %p45 = scmp.gt.s32.totalorder %s44, 0
    %s46 = scalar_select %p45, %s44, 0
    %s47 = ssub.s32 %s40, %s46
    %p48 = scmp.eq.s32.totalorder %s47, 0
    %s50 = sadd.s32 %s49, 1
    %s51 = scalar_select %p48, %s49, %s50
    %p54 = pneg %p48
    %p55 = scmp.eq.s32.totalorder %s15, 7
    %p56 = por %p54, %p55
    %p57 = scmp.ne.s32.totalorder %s49, %s52
    %p58 = scmp.eq.s32.totalorder %s15, 0
    %p59 = por %p57, %p58
    %p60 = scmp.ne.s32.totalorder %s49, %s52
    %p61 = scmp.eq.s32.totalorder %s20, 7
    %p62 = por %p60, %p61
    %p63 = scmp.ne.s32.totalorder %s52, %s53
    %p64 = scmp.eq.s32.totalorder %s20, 0
    %p65 = por %p63, %p64
    %p66 = scmp.ne.s32.totalorder %s52, %s53
    %p67 = scmp.eq.s32.totalorder %s21, 7
    %p68 = por %p66, %p67
    %p70 = scmp.ne.s32.totalorder %s53, %s69
    %p71 = scmp.eq.s32.totalorder %s21, 0
    %p72 = por %p70, %p71
    %s73 = smul.u32 %s22, 4
    %s74 = sadd.s32 %s73, %s23
    %s75 = smul.u32 %s34, 4
    %s76 = sadd.s32 %s75, %s30
    %s77 = ssub.s32 %s74, %s76
    %p78 = scmp.eq.s32.totalorder %s77, 0
    %s80 = sadd.s32 %s79, 1
    %s81 = scalar_select %p78, %s79, %s80
    %p84 = pneg %p78
    %p85 = scmp.eq.s32.totalorder %s15, 7
    %p86 = por %p84, %p85
    %p87 = scmp.ne.s32.totalorder %s79, %s82
    %p88 = scmp.eq.s32.totalorder %s15, 0
    %p89 = por %p87, %p88
    %p90 = scmp.ne.s32.totalorder %s79, %s82
    %p91 = scmp.eq.s32.totalorder %s20, 7
    %p92 = por %p90, %p91
    %p93 = scmp.ne.s32.totalorder %s82, %s83
    %p94 = scmp.eq.s32.totalorder %s20, 0
    %p95 = por %p93, %p94
    %p96 = scmp.ne.s32.totalorder %s82, %s83
    %p97 = scmp.eq.s32.totalorder %s21, 7
    %p98 = por %p96, %p97
    %p100 = scmp.ne.s32.totalorder %s83, %s99
    %p101 = scmp.eq.s32.totalorder %s21, 0
    %p102 = por %p100, %p101
    %s103 = smul.u32 %s22, 16
    %s104 = sadd.s32 %s23, 1
    %s105 = smul.u32 %s104, 4
    %s106 = sadd.s32 %s103, %s105
    %p107 = scmp.lt.s32.totalorder %s106, 31
    %s108 = scalar_select %p107, %s106, 31
    %s109 = smul.u32 %s34, 16
    %s110 = sadd.s32 %s30, 1
    %s111 = smul.u32 %s110, 4
    %s112 = sadd.s32 %s109, %s111
    %p113 = scmp.lt.s32.totalorder %s112, 31
    %s114 = scalar_select %p113, %s112, 31
    %s115 = ssub.s32 %s108, %s114
    %p116 = scmp.eq.s32.totalorder %s115, 0
    %s118 = sadd.s32 %s117, 1
    %s119 = scalar_select %p116, %s117, %s118
    %p122 = pneg %p116
    %p123 = scmp.eq.s32.totalorder %s15, 7
    %p124 = por %p122, %p123
    %p125 = scmp.ne.s32.totalorder %s117, %s120
    %p126 = scmp.eq.s32.totalorder %s15, 0
    %p127 = por %p125, %p126
    %p128 = scmp.ne.s32.totalorder %s117, %s120
    %p129 = scmp.eq.s32.totalorder %s20, 7
    %p130 = por %p128, %p129
    %p131 = scmp.ne.s32.totalorder %s120, %s121
    %p132 = scmp.eq.s32.totalorder %s20, 0
    %p133 = por %p131, %p132
    %p134 = scmp.ne.s32.totalorder %s120, %s121
    %p135 = scmp.eq.s32.totalorder %s21, 7
    %p136 = por %p134, %p135
    %p138 = scmp.ne.s32.totalorder %s121, %s137
    %p139 = scmp.eq.s32.totalorder %s21, 0
    %p140 = por %p138, %p139
    %s142 = sadd.s32 %s141, 1
    %p145 = scmp.eq.s32.totalorder %s15, 7
    %p146 = scmp.ne.s32.totalorder %s141, %s143
    %p147 = scmp.eq.s32.totalorder %s15, 0
    %p148 = por %p146, %p147
    %p149 = scmp.ne.s32.totalorder %s141, %s143
    %p150 = scmp.eq.s32.totalorder %s20, 7
    %p151 = por %p149, %p150
    %p152 = scmp.ne.s32.totalorder %s143, %s144
    %p153 = scmp.eq.s32.totalorder %s20, 0
    %p154 = por %p152, %p153
    %p155 = scmp.ne.s32.totalorder %s143, %s144
    %p156 = scmp.eq.s32.totalorder %s21, 7
    %p157 = por %p155, %p156
    %p159 = scmp.ne.s32.totalorder %s144, %s158
    %p160 = scmp.eq.s32.totalorder %s21, 0
    %p161 = por %p159, %p160
    %s163 = sadd.s32 %s162, 1
    %p166 = scmp.eq.s32.totalorder %s15, 7
    %p167 = scmp.ne.s32.totalorder %s162, %s164
    %p168 = scmp.eq.s32.totalorder %s15, 0
    %p169 = por %p167, %p168
    %p170 = scmp.ne.s32.totalorder %s162, %s164
    %p171 = scmp.eq.s32.totalorder %s20, 7
    %p172 = por %p170, %p171
    %p173 = scmp.ne.s32.totalorder %s164, %s165
    %p174 = scmp.eq.s32.totalorder %s20, 0
    %p175 = por %p173, %p174
    %p176 = scmp.ne.s32.totalorder %s164, %s165
    %p177 = scmp.eq.s32.totalorder %s21, 7
    %p178 = por %p176, %p177
    %p180 = scmp.ne.s32.totalorder %s165, %s179
    %p181 = scmp.eq.s32.totalorder %s21, 0
    %p182 = por %p180, %p181
    %s184 = sadd.s32 %s183, 1
    %p187 = scmp.eq.s32.totalorder %s15, 7
    %p188 = scmp.ne.s32.totalorder %s183, %s185
    %p189 = scmp.eq.s32.totalorder %s15, 0
    %p190 = por %p188, %p189
    %p191 = scmp.ne.s32.totalorder %s183, %s185
    %p192 = scmp.eq.s32.totalorder %s20, 7
    %p193 = por %p191, %p192
    %p194 = scmp.ne.s32.totalorder %s185, %s186
    %p195 = scmp.eq.s32.totalorder %s20, 0
    %p196 = por %p194, %p195
    %p197 = scmp.ne.s32.totalorder %s185, %s186
    %p198 = scmp.eq.s32.totalorder %s21, 7
    %p199 = por %p197, %p198
    %p201 = scmp.ne.s32.totalorder %s186, %s200
    %p202 = scmp.eq.s32.totalorder %s21, 0
    %p203 = por %p201, %p202
    %s205 = sadd.s32 %s204, 1
    %p208 = scmp.eq.s32.totalorder %s15, 7
    %p209 = scmp.ne.s32.totalorder %s204, %s206
    %p210 = scmp.eq.s32.totalorder %s15, 0
    %p211 = por %p209, %p210
    %p212 = scmp.ne.s32.totalorder %s204, %s206
    %p213 = scmp.eq.s32.totalorder %s20, 7
    %p214 = por %p212, %p213
    %p215 = scmp.ne.s32.totalorder %s206, %s207
    %p216 = scmp.eq.s32.totalorder %s20, 0
    %p217 = por %p215, %p216
    %p218 = scmp.ne.s32.totalorder %s206, %s207
    %p219 = scmp.eq.s32.totalorder %s21, 7
    %p220 = por %p218, %p219
    %p222 = scmp.ne.s32.totalorder %s207, %s221
    %p223 = scmp.eq.s32.totalorder %s21, 0
    %p224 = por %p222, %p223
    %s226 = sadd.s32 %s225, 1
    %p229 = scmp.eq.s32.totalorder %s15, 7
    %p230 = scmp.ne.s32.totalorder %s225, %s227
    %p231 = scmp.eq.s32.totalorder %s15, 0
    %p232 = por %p230, %p231
    %p233 = scmp.ne.s32.totalorder %s225, %s227
    %p234 = scmp.eq.s32.totalorder %s20, 7
    %p235 = por %p233, %p234
    %p236 = scmp.ne.s32.totalorder %s227, %s228
    %p237 = scmp.eq.s32.totalorder %s20, 0
    %p238 = por %p236, %p237
    %p239 = scmp.ne.s32.totalorder %s227, %s228
    %p240 = scmp.eq.s32.totalorder %s21, 7
    %p241 = por %p239, %p240
    %p243 = scmp.ne.s32.totalorder %s228, %s242
    %p244 = scmp.eq.s32.totalorder %s21, 0
    %p245 = por %p243, %p244
    %s247 = sadd.s32 %s246, 1
    %p250 = scmp.eq.s32.totalorder %s15, 7
    %p251 = scmp.ne.s32.totalorder %s246, %s248
    %p252 = scmp.eq.s32.totalorder %s15, 0
    %p253 = por %p251, %p252
    %p254 = scmp.ne.s32.totalorder %s246, %s248
    %p255 = scmp.eq.s32.totalorder %s20, 7
    %p256 = por %p254, %p255
    %p257 = scmp.ne.s32.totalorder %s248, %s249
    %p258 = scmp.eq.s32.totalorder %s20, 0
    %p259 = por %p257, %p258
    %p260 = scmp.ne.s32.totalorder %s248, %s249
    %p261 = scmp.eq.s32.totalorder %s21, 7
    %p262 = por %p260, %p261
    %p264 = scmp.ne.s32.totalorder %s249, %s263
    %p265 = scmp.eq.s32.totalorder %s21, 0
    %p266 = por %p264, %p265
    %s267 = smul.u32 %s22, 4
    %s268 = sadd.s32 %s267, %s23
    %s269 = smul.u32 %s34, 4
    %s270 = sadd.s32 %s269, %s30
    %s271 = ssub.s32 %s268, %s270
    %p272 = scmp.eq.s32.totalorder %s271, 0
    %s274 = sadd.s32 %s273, 1
    %s275 = scalar_select %p272, %s273, %s274
    %p278 = pneg %p272
    %p279 = scmp.eq.s32.totalorder %s15, 7
    %p280 = por %p278, %p279
    %p281 = scmp.ne.s32.totalorder %s273, %s276
    %p282 = scmp.eq.s32.totalorder %s15, 0
    %p283 = por %p281, %p282
    %p284 = scmp.ne.s32.totalorder %s273, %s276
    %p285 = scmp.eq.s32.totalorder %s20, 7
    %p286 = por %p284, %p285
    %p287 = scmp.ne.s32.totalorder %s276, %s277
    %p288 = scmp.eq.s32.totalorder %s20, 0
    %p289 = por %p287, %p288
    %p290 = scmp.ne.s32.totalorder %s276, %s277
    %p291 = scmp.eq.s32.totalorder %s21, 7
    %p292 = por %p290, %p291
    %p294 = scmp.ne.s32.totalorder %s277, %s293
    %p295 = scmp.eq.s32.totalorder %s21, 0
    %p296 = por %p294, %p295
    %p297 = scmp.le.s32.totalorder 1, %s15
    %p298 = scmp.lt.s32.totalorder %s15, 9
    %p299 = pnand %p297, %p298
    %p300 = pneg %p299
    // Predicated region
    $region9: #{csp_bottleneck_forward.4} parent=5 // pred_check
      _
    $region10: #{csp_bottleneck_forward.4} parent=5 // pred_check_branch
      %302 = sbr.rel (%p299) target = $region12
    $region11: #{csp_bottleneck_forward.4} parent=5 // pred_region
      %s303 = ssub.s32 %s15, 1
      // Predicated region
      $region13: #{csp_bottleneck_forward.4} parent=11 // pred_check
        %p304 = pneg %p154
      $region14: #{csp_bottleneck_forward.4} parent=11 // pred_check_branch
        %306 = sbr.rel (%p304) target = $region16
      $region15: #{csp_bottleneck_forward.4} parent=11 // pred_region
        _
      $region16: #{csp_bottleneck_forward.4} parent=11 // pred_fallthru
        _
      // Predicated region
      $region17: #{csp_bottleneck_forward.4} parent=11 // pred_check
        %p307 = pneg %p175
      $region18: #{csp_bottleneck_forward.4} parent=11 // pred_check_branch
        %309 = sbr.rel (%p307) target = $region20
      $region19: #{csp_bottleneck_forward.4} parent=11 // pred_region
        _
      $region20: #{csp_bottleneck_forward.4} parent=11 // pred_fallthru
        _
      // Predicated region
      $region21: #{csp_bottleneck_forward.4} parent=11 // pred_check
        %p310 = pneg %p196
      $region22: #{csp_bottleneck_forward.4} parent=11 // pred_check_branch
        %312 = sbr.rel (%p310) target = $region24
      $region23: #{csp_bottleneck_forward.4} parent=11 // pred_region
        _
      $region24: #{csp_bottleneck_forward.4} parent=11 // pred_fallthru
        _
      // Predicated region
      $region25: #{csp_bottleneck_forward.4} parent=11 // pred_check
        %p313 = pneg %p217
      $region26: #{csp_bottleneck_forward.4} parent=11 // pred_check_branch
        %315 = sbr.rel (%p313) target = $region28
      $region27: #{csp_bottleneck_forward.4} parent=11 // pred_region
        _
      $region28: #{csp_bottleneck_forward.4} parent=11 // pred_fallthru
        _
      // Predicated region
      $region29: #{csp_bottleneck_forward.4} parent=11 // pred_check
        %p316 = pneg %p238
      $region30: #{csp_bottleneck_forward.4} parent=11 // pred_check_branch
        %318 = sbr.rel (%p316) target = $region32
      $region31: #{csp_bottleneck_forward.4} parent=11 // pred_region
        _
      $region32: #{csp_bottleneck_forward.4} parent=11 // pred_fallthru
        _
      // Predicated region
      $region33: #{csp_bottleneck_forward.4} parent=11 // pred_check
        %p319 = pneg %p259
      $region34: #{csp_bottleneck_forward.4} parent=11 // pred_check_branch
        %321 = sbr.rel (%p319) target = $region36
      $region35: #{csp_bottleneck_forward.4} parent=11 // pred_region
        _
      $region36: #{csp_bottleneck_forward.4} parent=11 // pred_fallthru
        _
    $region12: #{csp_bottleneck_forward.4} parent=5 // pred_fallthru
      _
    %p322 = scmp.lt.s32.totalorder %s15, 8
    // Predicated region
    $region37: #{csp_bottleneck_forward.4} parent=5 // pred_check
      %p323 = pneg %p322
    $region38: #{csp_bottleneck_forward.4} parent=5 // pred_check_branch
      %325 = sbr.rel (%p323) target = $region40
    $region39: #{csp_bottleneck_forward.4} parent=5 // pred_region
      // Predicated region
      $region41: #{csp_bottleneck_forward.4} parent=39 // pred_check
        %p326 = pneg %p59
      $region42: #{csp_bottleneck_forward.4} parent=39 // pred_check_branch
        %328 = sbr.rel (%p326) target = $region44
      $region43: #{csp_bottleneck_forward.4} parent=39 // pred_region
        %s329 = smul.u32 %s22, 16
        %s330 = smul.u32 %s23, 4
        %s331 = sadd.s32 %s329, %s330
        %s332 = ssub.s32 %s331, 1
        %p333 = scmp.gt.s32.totalorder %s332, 0
        %s334 = scalar_select %p333, %s332, 0
        %s335 = smul.u32 2, %s334
        %p336 = scmp.lt.s32.totalorder %s335, 63
        %s337 = scalar_select %p336, %s335, 63
        %s338 = smul.addr %s337, 4
        %s339 = scalar_lea.vmem %s0, %s338
        %s340 = smul.u32 %s22, 16
        %s341 = smul.u32 %s23, 4
        %s342 = sadd.s32 %s340, %s341
        %s343 = ssub.s32 %s342, 1
        %p344 = scmp.gt.s32.totalorder %s343, 0
        %s345 = scalar_select %p344, %s343, 0
        %s346 = smul.u32 2, %s345
      $region44: #{csp_bottleneck_forward.4} parent=39 // pred_fallthru
        _
      // Predicated region
      $region45: #{csp_bottleneck_forward.4} parent=39 // pred_check
        %p347 = pneg %p89
      $region46: #{csp_bottleneck_forward.4} parent=39 // pred_check_branch
        %349 = sbr.rel (%p347) target = $region48
      $region47: #{csp_bottleneck_forward.4} parent=39 // pred_region
        %s350 = smul.u32 %s22, 4
        %s351 = sadd.s32 %s350, %s23
        %s352 = smul.u32 8, %s351
        %p353 = scmp.lt.s32.totalorder %s352, 63
        %s354 = scalar_select %p353, %s352, 63
        %s355 = smul.addr %s354, 4
        %s356 = scalar_lea.vmem %s1, %s355
        %s357 = smul.u32 %s22, 4
        %s358 = sadd.s32 %s357, %s23
        %s359 = smul.u32 8, %s358
      $region48: #{csp_bottleneck_forward.4} parent=39 // pred_fallthru
        _
      // Predicated region
      $region49: #{csp_bottleneck_forward.4} parent=39 // pred_check
        %p360 = pneg %p127
      $region50: #{csp_bottleneck_forward.4} parent=39 // pred_check_branch
        %362 = sbr.rel (%p360) target = $region52
      $region51: #{csp_bottleneck_forward.4} parent=39 // pred_region
        %s363 = smul.u32 %s22, 16
        %s364 = sadd.s32 %s23, 1
        %s365 = smul.u32 %s364, 4
        %s366 = sadd.s32 %s363, %s365
        %p367 = scmp.lt.s32.totalorder %s366, 31
        %s368 = scalar_select %p367, %s366, 31
        %s369 = smul.u32 2, %s368
        %p370 = scmp.lt.s32.totalorder %s369, 63
        %s371 = scalar_select %p370, %s369, 63
        %s372 = smul.addr %s371, 4
        %s373 = scalar_lea.vmem %s2, %s372
        %s374 = smul.u32 %s22, 16
        %s375 = sadd.s32 %s23, 1
        %s376 = smul.u32 %s375, 4
        %s377 = sadd.s32 %s374, %s376
        %p378 = scmp.lt.s32.totalorder %s377, 31
        %s379 = scalar_select %p378, %s377, 31
        %s380 = smul.u32 2, %s379
      $region52: #{csp_bottleneck_forward.4} parent=39 // pred_fallthru
        _
    $region40: #{csp_bottleneck_forward.4} parent=5 // pred_fallthru
      _
    %p381 = scmp.le.s32.totalorder 1, %s15
    %p382 = scmp.lt.s32.totalorder %s15, 9
    %p383 = pnand %p381, %p382
    %p384 = pneg %p383
    // Predicated region
    $region53: #{csp_bottleneck_forward.4} parent=5 // pred_check
      _
    $region54: #{csp_bottleneck_forward.4} parent=5 // pred_check_branch
      %386 = sbr.rel (%p383) target = $region56
    $region55: #{csp_bottleneck_forward.4} parent=5 // pred_region
      %s387 = ssub.s32 %s15, 1
      %s388 = smul.u32 %s24, 16
      %s389 = smul.u32 %s25, 4
      %s390 = sadd.s32 %s388, %s389
      %s391 = ssub.s32 %s390, 1
      %p392 = scmp.gt.s32.totalorder %s391, 0
      %s393 = scalar_select %p392, %s391, 0
      %s394 = smul.u32 2, %s393
      %p395 = scmp.lt.s32.totalorder %s394, 63
      %s396 = scalar_select %p395, %s394, 63
      %s397 = smul.addr %s396, 4
      %s398 = scalar_lea.vmem %s0, %s397
      %p399 = pneg %p65
      %p400 = pneg %p62
      %s401 = smul.u32 %s24, 4
      %s402 = sadd.s32 %s401, %s25
      %s403 = smul.u32 8, %s402
      %p404 = scmp.lt.s32.totalorder %s403, 63
      %s405 = scalar_select %p404, %s403, 63
      %s406 = smul.addr %s405, 4
      %s407 = scalar_lea.vmem %s1, %s406
      %p408 = pneg %p95
      %p409 = pneg %p92
      %s410 = smul.u32 %s24, 16
      %s411 = sadd.s32 %s25, 1
      %s412 = smul.u32 %s411, 4
      %s413 = sadd.s32 %s410, %s412
      %p414 = scmp.lt.s32.totalorder %s413, 31
      %s415 = scalar_select %p414, %s413, 31
      %s416 = smul.u32 2, %s415
      %p417 = scmp.lt.s32.totalorder %s416, 63
      %s418 = scalar_select %p417, %s416, 63
      %s419 = smul.addr %s418, 4
      %s420 = scalar_lea.vmem %s2, %s419
      %p421 = pneg %p133
      %p422 = pneg %p130
      %p423 = pneg %p154
      %p424 = pneg %p151
      %p425 = pneg %p175
      %p426 = pneg %p172
      %p427 = pneg %p196
      %p428 = pneg %p193
      %p429 = pneg %p217
      %p430 = pneg %p214
      %p431 = pneg %p238
      %p432 = pneg %p235
      %p433 = pneg %p259
      %p434 = pneg %p256
      %p435 = pneg %p289
      %p436 = pneg %p286
      %s437 = smul.u32 %s24, 4
      %s438 = sadd.s32 %s437, %s25
      %s439 = smul.u32 8, %s438
      %p440 = scmp.lt.s32.totalorder %s439, 63
      %s441 = scalar_select %p440, %s439, 63
      %s442 = smul.addr %s441, 4
      %s443 = scalar_lea.vmem %s9, %s442
      %s444 = smul.u32 %s24, 16
      %s445 = smul.u32 %s25, 4
      %s446 = sadd.s32 %s444, %s445
      %s447 = ssub.s32 %s446, 1
      %p448 = scmp.gt.s32.totalorder %s447, 0
      %s449 = scalar_select %p448, %s447, 0
      %s450 = smul.u32 2, %s449
      %p451 = scmp.lt.s32.totalorder %s450, 63
      %s452 = scalar_select %p451, %s450, 63
      %s453 = smul.addr %s452, 4
      %s454 = scalar_lea.vmem %s0, %s453
      %s455 = smul.u32 %s24, 16
      %s456 = smul.u32 %s25, 4
      %s457 = sadd.s32 %s455, %s456
      %s458 = ssub.s32 %s457, 1
      %p459 = scmp.gt.s32.totalorder %s458, 0
      %s460 = scalar_select %p459, %s458, 0
      %s461 = smul.u32 2, %s460
      %s462 = smul.u32 %s24, 4
      %s463 = sadd.s32 %s462, %s25
      %s464 = smul.u32 8, %s463
      %p465 = scmp.lt.s32.totalorder %s464, 63
      %s466 = scalar_select %p465, %s464, 63
      %s467 = smul.addr %s466, 4
      %s468 = scalar_lea.vmem %s1, %s467
      %s469 = smul.u32 %s24, 4
      %s470 = sadd.s32 %s469, %s25
      %s471 = smul.u32 8, %s470
      %s472 = smul.u32 %s24, 16
      %s473 = sadd.s32 %s25, 1
      %s474 = smul.u32 %s473, 4
      %s475 = sadd.s32 %s472, %s474
      %p476 = scmp.lt.s32.totalorder %s475, 31
      %s477 = scalar_select %p476, %s475, 31
      %s478 = smul.u32 2, %s477
      %p479 = scmp.lt.s32.totalorder %s478, 63
      %s480 = scalar_select %p479, %s478, 63
      %s481 = smul.addr %s480, 4
      %s482 = scalar_lea.vmem %s2, %s481
      %s483 = smul.u32 %s24, 16
      %s484 = sadd.s32 %s25, 1
      %s485 = smul.u32 %s484, 4
      %s486 = sadd.s32 %s483, %s485
      %p487 = scmp.lt.s32.totalorder %s486, 31
      %s488 = scalar_select %p487, %s486, 31
      %s489 = smul.u32 2, %s488
      %s490 = smul.u32 %s24, 4
      %s491 = sadd.s32 %s490, %s25
      %s492 = smul.u32 8, %s491
      %p493 = scmp.lt.s32.totalorder %s492, 63
      %s494 = scalar_select %p493, %s492, 63
      %s495 = smul.addr %s494, 4
      %s496 = scalar_lea.vmem %s9, %s495
      %s497 = smul.u32 %s24, 4
      %s498 = sadd.s32 %s497, %s25
      %s499 = smul.u32 8, %s498
      %v501 = vld [vmem:[%s468] sm:$0xf]
      %v502 = vld [vmem:[%s468 + $0x4] sm:$0xf]
      %v503 = vld [vmem:[%s468 + $0x8] sm:$0xf]
      %v504 = vld [vmem:[%s468 + $0xc] sm:$0xf]
      %v505 = vld [vmem:[%s468 + $0x10] sm:$0xf]
      %v506 = vld [vmem:[%s468 + $0x14] sm:$0xf]
      %v507 = vld [vmem:[%s468 + $0x18] sm:$0xf]
      %v508 = vld [vmem:[%s468 + $0x1c] sm:$0xf]
      %v509 = vld [vmem:[%s454] sm:$0xf]
      %v510 = vld [vmem:[%s454 + $0x4] sm:$0xf]
      %v511 = vld [vmem:[%s482] sm:$0xf]
      %v512 = vld [vmem:[%s482 + $0x4] sm:$0xf]
      %v515 = vunpack.c.l.b16 %v509
      %v516 = vunpack.c.l.b16 %v510
      %v517 = vpack.c.b16 %v516, %v515
      %v527 = vunpack.c.l.b16 %v501
      %v528 = vunpack.c.l.b16 %v502
      %v529 = vunpack.c.l.b16 %v503
      %v530 = vunpack.c.l.b16 %v504
      %v531 = vunpack.c.l.b16 %v505
      %v532 = vunpack.c.l.b16 %v506
      %v533 = vunpack.c.l.b16 %v507
      %v534 = vunpack.c.l.b16 %v508
      %v535 = vpack.c.b16 %v528, %v527
      %v536 = vpack.c.b16 %v530, %v529
      %v537 = vpack.c.b16 %v532, %v531
      %v538 = vpack.c.b16 %v534, %v533
      %v545 = vunpack.c.l.b16 %v511
      %v546 = vunpack.c.l.b16 %v512
      %v547 = vpack.c.b16 %v546, %v545
      %v549 = vld [vmem:[%s3] sm:$0xf]
      %v550 = vld [vmem:[%s3 + $0x4] sm:$0xf]
      %v551 = vld [vmem:[%s3 + $0x8] sm:$0xf]
      %v552 = vld [vmem:[%s3 + $0xc] sm:$0xf]
      %v553 = vld [vmem:[%s3 + $0x10] sm:$0xf]
      %v554 = vld [vmem:[%s3 + $0x14] sm:$0xf]
      %v555 = vld [vmem:[%s3 + $0x18] sm:$0xf]
      %v556 = vld [vmem:[%s3 + $0x1c] sm:$0xf]
      %v557 = vld [vmem:[%s3 + $0x20] sm:$0xf]
      %v558 = vld [vmem:[%s3 + $0x24] sm:$0xf]
      %v559 = vld [vmem:[%s3 + $0x28] sm:$0xf]
      %v560 = vld [vmem:[%s3 + $0x2c] sm:$0xf]
      %v561 = vld [vmem:[%s3 + $0x30] sm:$0xf]
      %v562 = vld [vmem:[%s3 + $0x34] sm:$0xf]
      %v563 = vld [vmem:[%s3 + $0x38] sm:$0xf]
      %v564 = vld [vmem:[%s3 + $0x3c] sm:$0xf]
      %v581 = vunpack.c.l.b16 %v549
      %v582 = vunpack.c.l.b16 %v550
      %v583 = vunpack.c.l.b16 %v551
      %v584 = vunpack.c.l.b16 %v552
      %v585 = vunpack.c.l.b16 %v553
      %v586 = vunpack.c.l.b16 %v554
      %v587 = vunpack.c.l.b16 %v555
      %v588 = vunpack.c.l.b16 %v556
      %v589 = vunpack.c.l.b16 %v557
      %v590 = vunpack.c.l.b16 %v558
      %v591 = vunpack.c.l.b16 %v559
      %v592 = vunpack.c.l.b16 %v560
      %v593 = vunpack.c.l.b16 %v561
      %v594 = vunpack.c.l.b16 %v562
      %v595 = vunpack.c.l.b16 %v563
      %v596 = vunpack.c.l.b16 %v564
      %v597 = vpack.c.b16 %v582, %v581
      %v598 = vpack.c.b16 %v584, %v583
      %v599 = vpack.c.b16 %v586, %v585
      %v600 = vpack.c.b16 %v588, %v587
      %v601 = vpack.c.b16 %v590, %v589
      %v602 = vpack.c.b16 %v592, %v591
      %v603 = vpack.c.b16 %v594, %v593
      %v604 = vpack.c.b16 %v596, %v595
      %613 = vmatprep.subr.bf16.mxu0 0
      %614 = vmatpush1.bf16.msra.mxu0 %v604
      %615 = vmatprep.subr.bf16.mxu0 0
      %616 = vmatpush1.bf16.msra.mxu0 %v603
      %617 = vmatprep.subr.bf16.mxu0 0
      %618 = vmatpush1.bf16.msra.mxu0 %v602
      %619 = vmatprep.subr.bf16.mxu0 0
      %620 = vmatpush1.bf16.msra.mxu0 %v601
      %621 = vmatprep.subr.bf16.mxu0 0
      %622 = vmatpush1.bf16.msra.mxu0 %v600
      %623 = vmatprep.subr.bf16.mxu0 0
      %624 = vmatpush1.bf16.msra.mxu0 %v599
      %625 = vmatprep.subr.bf16.mxu0 0
      %626 = vmatpush1.bf16.msra.mxu0 %v598
      %627 = vmatprep.subr.bf16.mxu0 0
      %628 = vmatpush1.bf16.msra.mxu0 %v597
      %629 = vmatprep.subr.bf16.mxu0 0
      %630 = vmatpush2.bf16.msra.mxu0 0
      %631 = vmatprep.subr.bf16.mxu0 0
      %632 = vmatpush2.bf16.msra.mxu0 0
      %633 = vmatprep.subr.bf16.mxu0 0
      %634 = vmatpush2.bf16.msra.mxu0 0
      %635 = vmatprep.subr.bf16.mxu0 0
      %636 = vmatpush2.bf16.msra.mxu0 0
      %637 = vmatprep.subr.bf16.mxu0 0
      %638 = vmatpush2.bf16.msra.mxu0 0
      %639 = vmatprep.subr.bf16.mxu0 0
      %640 = vmatpush2.bf16.msra.mxu0 0
      %641 = vmatprep.subr.bf16.mxu0 0
      %642 = vmatpush2.bf16.msra.mxu0 0
      %643 = vmatprep.subr.bf16.mxu0 0
      %644 = vmatpush2.bf16.msra.mxu0 0
      %645 = vmatprep.mubr.bf16.mxu0 0
      %646 = vmatmul.mubr.bf16.gmra.mxu0 %v517
      %v647 = vpop.f32.mrf.mxu0
      %v648 = vadd.f32 0.0, %v647
      %v649 = vpop.f32.mrf.mxu0
      %v650 = vpop.f32.mrf.mxu0
      %v651 = vadd.f32 0.0, %v650
      %v652 = vpop.f32.mrf.mxu0
      %653 = vmatprep.mubr.bf16.mxu0 0
      %654 = vmatmul.mubr.bf16.gmra.mxu0 %v535
      %v655 = vpop.f32.mrf.mxu0
      %v656 = vadd.f32 0.0, %v655
      %v657 = vpop.f32.mrf.mxu0
      %v658 = vpop.f32.mrf.mxu0
      %v659 = vadd.f32 0.0, %v658
      %v660 = vpop.f32.mrf.mxu0
      %661 = vmatprep.mubr.bf16.mxu0 0
      %662 = vmatmul.mubr.bf16.gmra.mxu0 %v536
      %v663 = vpop.f32.mrf.mxu0
      %v664 = vadd.f32 0.0, %v663
      %v665 = vpop.f32.mrf.mxu0
      %v666 = vpop.f32.mrf.mxu0
      %v667 = vadd.f32 0.0, %v666
      %v668 = vpop.f32.mrf.mxu0
      %669 = vmatprep.mubr.bf16.mxu0 0
      %670 = vmatmul.mubr.bf16.gmra.mxu0 %v537
      %v671 = vpop.f32.mrf.mxu0
      %v672 = vadd.f32 0.0, %v671
      %v673 = vpop.f32.mrf.mxu0
      %v674 = vpop.f32.mrf.mxu0
      %v675 = vadd.f32 0.0, %v674
      %v676 = vpop.f32.mrf.mxu0
      %677 = vmatprep.mubr.bf16.mxu0 0
      %678 = vmatmul.mubr.bf16.gmra.mxu0 %v538
      %v679 = vpop.f32.mrf.mxu0
      %v680 = vadd.f32 0.0, %v679
      %v681 = vpop.f32.mrf.mxu0
      %v682 = vpop.f32.mrf.mxu0
      %v683 = vadd.f32 0.0, %v682
      %v684 = vpop.f32.mrf.mxu0
      %685 = vmatprep.mubr.bf16.mxu0 0
      %686 = vmatmul.mubr.bf16.gmra.mxu0 %v547
      %v687 = vpop.f32.mrf.mxu0
      %v688 = vadd.f32 0.0, %v687
      %v689 = vpop.f32.mrf.mxu0
      %v690 = vpop.f32.mrf.mxu0
      %v691 = vadd.f32 0.0, %v690
      %v692 = vpop.f32.mrf.mxu0
      %693 = vdwg.mxu0
      %v694 = vld [vmem:[%s4] sm:$0x1]
      %v695 = vld [vmem:[%s5] sm:$0x1]
      %v697 = vlaneseq
      %v698 = vshrl.u32 %v697, 7
      %v699 = vsub.s32 0, %v698
      %v700 = vrot.slane %v694, %v699
      %v702 = vmul.f32 %v648, %v700
      %v703 = vmul.f32 %v651, %v700
      %v704 = vmul.f32 %v656, %v700
      %v705 = vmul.f32 %v659, %v700
      %v706 = vmul.f32 %v664, %v700
      %v707 = vmul.f32 %v667, %v700
      %v708 = vmul.f32 %v672, %v700
      %v709 = vmul.f32 %v675, %v700
      %v710 = vmul.f32 %v680, %v700
      %v711 = vmul.f32 %v683, %v700
      %v712 = vmul.f32 %v688, %v700
      %v713 = vmul.f32 %v691, %v700
      %v715 = vlaneseq
      %v716 = vshrl.u32 %v715, 7
      %v717 = vsub.s32 0, %v716
      %v718 = vrot.slane %v695, %v717
      %v720 = vadd.f32 %v702, %v718
      %v721 = vadd.f32 %v703, %v718
      %v722 = vadd.f32 %v704, %v718
      %v723 = vadd.f32 %v705, %v718
      %v724 = vadd.f32 %v706, %v718
      %v725 = vadd.f32 %v707, %v718
      %v726 = vadd.f32 %v708, %v718
      %v727 = vadd.f32 %v709, %v718
      %v728 = vadd.f32 %v710, %v718
      %v729 = vadd.f32 %v711, %v718
      %v730 = vadd.f32 %v712, %v718
      %v731 = vadd.f32 %v713, %v718
      %v732 = vsub.f32 0.0, %v720
      %v733 = vsub.f32 0.0, %v721
      %v734 = vsub.f32 0.0, %v722
      %v735 = vsub.f32 0.0, %v723
      %v736 = vsub.f32 0.0, %v724
      %v737 = vsub.f32 0.0, %v725
      %v738 = vsub.f32 0.0, %v726
      %v739 = vsub.f32 0.0, %v727
      %v740 = vsub.f32 0.0, %v728
      %v741 = vsub.f32 0.0, %v729
      %v742 = vsub.f32 0.0, %v730
      %v743 = vsub.f32 0.0, %v731
      %v744 = vmul.f32 %v732, 1.442695
      %v745 = vpow.pop %v744
      %v746 = vmul.f32 %v733, 1.442695
      %v747 = vpow.pop %v746
      %v748 = vmul.f32 %v734, 1.442695
      %v749 = vpow.pop %v748
      %v750 = vmul.f32 %v735, 1.442695
      %v751 = vpow.pop %v750
      %v752 = vmul.f32 %v736, 1.442695
      %v753 = vpow.pop %v752
      %v754 = vmul.f32 %v737, 1.442695
      %v755 = vpow.pop %v754
      %v756 = vmul.f32 %v738, 1.442695
      %v757 = vpow.pop %v756
      %v758 = vmul.f32 %v739, 1.442695
      %v759 = vpow.pop %v758
      %v760 = vmul.f32 %v740, 1.442695
      %v761 = vpow.pop %v760
      %v762 = vmul.f32 %v741, 1.442695
      %v763 = vpow.pop %v762
      %v764 = vmul.f32 %v742, 1.442695
      %v765 = vpow.pop %v764
      %v766 = vmul.f32 %v743, 1.442695
      %v767 = vpow.pop %v766
      %v768 = vadd.f32 %v745, 1.0
      %v769 = vadd.f32 %v747, 1.0
      %v770 = vadd.f32 %v749, 1.0
      %v771 = vadd.f32 %v751, 1.0
      %v772 = vadd.f32 %v753, 1.0
      %v773 = vadd.f32 %v755, 1.0
      %v774 = vadd.f32 %v757, 1.0
      %v775 = vadd.f32 %v759, 1.0
      %v776 = vadd.f32 %v761, 1.0
      %v777 = vadd.f32 %v763, 1.0
      %v778 = vadd.f32 %v765, 1.0
      %v779 = vadd.f32 %v767, 1.0
      %v780 = vrcp.pop %v768
      %v781 = vrcp.pop %v769
      %v782 = vrcp.pop %v770
      %v783 = vrcp.pop %v771
      %v784 = vrcp.pop %v772
      %v785 = vrcp.pop %v773
      %v786 = vrcp.pop %v774
      %v787 = vrcp.pop %v775
      %v788 = vrcp.pop %v776
      %v789 = vrcp.pop %v777
      %v790 = vrcp.pop %v778
      %v791 = vrcp.pop %v779
      %v792 = vmul.f32 %v720, %v780
      %v793 = vmul.f32 %v721, %v781
      %v794 = vmul.f32 %v722, %v782
      %v795 = vmul.f32 %v723, %v783
      %v796 = vmul.f32 %v724, %v784
      %v797 = vmul.f32 %v725, %v785
      %v798 = vmul.f32 %v726, %v786
      %v799 = vmul.f32 %v727, %v787
      %v800 = vmul.f32 %v728, %v788
      %v801 = vmul.f32 %v729, %v789
      %v802 = vmul.f32 %v730, %v790
      %v803 = vmul.f32 %v731, %v791
      %v804 = vlaneseq
      %v805 = vshrl.u32 %v804, 7
      %v806 = vadd.s32 %v805, 8
      %v807 = vadd.s32 %v805, 16
      %v808 = vadd.s32 %v805, 24
      %v809 = vadd.s32 %v805, 32
      %v810 = vadd.s32 %v805, 40
      %v811 = vadd.s32 %v805, 48
      %v812 = vadd.s32 %v805, 56
      %v813 = vadd.s32 %v805, 64
      %v814 = vadd.s32 %v805, 72
      %v815 = vadd.s32 %v805, 80
      %v816 = vadd.s32 %v805, 88
      %vm817 = vcmp.ge.s32.totalorder %v805, 16
      %vm818 = vcmp.ge.s32.totalorder %v806, 16
      %vm819 = vcmp.ge.s32.totalorder %v807, 16
      %vm820 = vcmp.ge.s32.totalorder %v808, 16
      %vm821 = vcmp.ge.s32.totalorder %v809, 16
      %vm822 = vcmp.ge.s32.totalorder %v810, 16
      %vm823 = vcmp.ge.s32.totalorder %v811, 16
      %vm824 = vcmp.ge.s32.totalorder %v812, 16
      %vm825 = vcmp.ge.s32.totalorder %v813, 16
      %vm826 = vcmp.ge.s32.totalorder %v814, 16
      %vm827 = vcmp.ge.s32.totalorder %v815, 16
      %vm828 = vcmp.ge.s32.totalorder %v816, 16
      %p829 = scmp.gt.s32.totalorder %s25, 0
      %s830 = scalar_select %p829, 1, 0
      %v831 = vstv %s830
      %vm832 = vcmp.eq.s32.totalorder %v831, 1
      %vm833 = vmor %vm817, %vm832
      %vm834 = vmor %vm818, %vm832
      %vm835 = vmor %vm819, %vm832
      %vm836 = vmor %vm820, %vm832
      %vm837 = vmor %vm821, %vm832
      %vm838 = vmor %vm822, %vm832
      %vm839 = vmor %vm823, %vm832
      %vm840 = vmor %vm824, %vm832
      %vm841 = vmor %vm825, %vm832
      %vm842 = vmor %vm826, %vm832
      %vm843 = vmor %vm827, %vm832
      %vm844 = vmor %vm828, %vm832
      %vm845 = vcmp.lt.s32.totalorder %v805, 80
      %vm846 = vcmp.lt.s32.totalorder %v806, 80
      %vm847 = vcmp.lt.s32.totalorder %v807, 80
      %vm848 = vcmp.lt.s32.totalorder %v808, 80
      %vm849 = vcmp.lt.s32.totalorder %v809, 80
      %vm850 = vcmp.lt.s32.totalorder %v810, 80
      %vm851 = vcmp.lt.s32.totalorder %v811, 80
      %vm852 = vcmp.lt.s32.totalorder %v812, 80
      %vm853 = vcmp.lt.s32.totalorder %v813, 80
      %vm854 = vcmp.lt.s32.totalorder %v814, 80
      %vm855 = vcmp.lt.s32.totalorder %v815, 80
      %vm856 = vcmp.lt.s32.totalorder %v816, 80
      %p857 = scmp.lt.s32.totalorder %s25, 3
      %s858 = scalar_select %p857, 1, 0
      %v859 = vstv %s858
      %vm860 = vcmp.eq.s32.totalorder %v859, 1
      %vm861 = vmor %vm845, %vm860
      %vm862 = vmor %vm846, %vm860
      %vm863 = vmor %vm847, %vm860
      %vm864 = vmor %vm848, %vm860
      %vm865 = vmor %vm849, %vm860
      %vm866 = vmor %vm850, %vm860
      %vm867 = vmor %vm851, %vm860
      %vm868 = vmor %vm852, %vm860
      %vm869 = vmor %vm853, %vm860
      %vm870 = vmor %vm854, %vm860
      %vm871 = vmor %vm855, %vm860
      %vm872 = vmor %vm856, %vm860
      %vm873 = vmand %vm833, %vm861
      %vm874 = vmand %vm834, %vm862
      %vm875 = vmand %vm835, %vm863
      %vm876 = vmand %vm836, %vm864
      %vm877 = vmand %vm837, %vm865
      %vm878 = vmand %vm838, %vm866
      %vm879 = vmand %vm839, %vm867
      %vm880 = vmand %vm840, %vm868
      %vm881 = vmand %vm841, %vm869
      %vm882 = vmand %vm842, %vm870
      %vm883 = vmand %vm843, %vm871
      %vm884 = vmand %vm844, %vm872
      %v885 = vsel %vm873, 1, 0
      %v886 = vsel %vm874, 1, 0
      %v887 = vsel %vm875, 1, 0
      %v888 = vsel %vm876, 1, 0
      %v889 = vsel %vm877, 1, 0
      %v890 = vsel %vm878, 1, 0
      %v891 = vsel %vm879, 1, 0
      %v892 = vsel %vm880, 1, 0
      %v893 = vsel %vm881, 1, 0
      %v894 = vsel %vm882, 1, 0
      %v895 = vsel %vm883, 1, 0
      %v896 = vsel %vm884, 1, 0
      %vm897 = vcmp.eq.s32.totalorder %v885, 1
      %vm898 = vcmp.eq.s32.totalorder %v886, 1
      %vm899 = vcmp.eq.s32.totalorder %v887, 1
      %vm900 = vcmp.eq.s32.totalorder %v888, 1
      %vm901 = vcmp.eq.s32.totalorder %v889, 1
      %vm902 = vcmp.eq.s32.totalorder %v890, 1
      %vm903 = vcmp.eq.s32.totalorder %v891, 1
      %vm904 = vcmp.eq.s32.totalorder %v892, 1
      %vm905 = vcmp.eq.s32.totalorder %v893, 1
      %vm906 = vcmp.eq.s32.totalorder %v894, 1
      %vm907 = vcmp.eq.s32.totalorder %v895, 1
      %vm908 = vcmp.eq.s32.totalorder %v896, 1
      %v909 = vsel %vm897, %v792, 0.0
      %v910 = vsel %vm898, %v793, 0.0
      %v911 = vsel %vm899, %v794, 0.0
      %v912 = vsel %vm900, %v795, 0.0
      %v913 = vsel %vm901, %v796, 0.0
      %v914 = vsel %vm902, %v797, 0.0
      %v915 = vsel %vm903, %v798, 0.0
      %v916 = vsel %vm904, %v799, 0.0
      %v917 = vsel %vm905, %v800, 0.0
      %v918 = vsel %vm906, %v801, 0.0
      %v919 = vsel %vm907, %v802, 0.0
      %v920 = vsel %vm908, %v803, 0.0
      %vm921 = vcmp.lt.s32.totalorder %v805, 0
      %v922 = vsub.s32 0, %v805
      %v923 = vsel %vm921, %v922, %v805
      %v924 = vshrl.u32 %v923, 4
      %v925 = vand.u32 %v923, 15
      %v926 = vsub.s32 0, %v925
      %v927 = vsel %vm921, %v926, %v925
      %vm928 = vcmp.lt.s32.totalorder %v806, 0
      %v929 = vsub.s32 0, %v806
      %v930 = vsel %vm928, %v929, %v806
      %v931 = vshrl.u32 %v930, 4
      %v932 = vand.u32 %v930, 15
      %v933 = vsub.s32 0, %v932
      %v934 = vsel %vm928, %v933, %v932
      %vm935 = vcmp.lt.s32.totalorder %v807, 0
      %v936 = vsub.s32 0, %v807
      %v937 = vsel %vm935, %v936, %v807
      %v938 = vshrl.u32 %v937, 4
      %v939 = vand.u32 %v937, 15
      %v940 = vsub.s32 0, %v939
      %v941 = vsel %vm935, %v940, %v939
      %vm942 = vcmp.lt.s32.totalorder %v808, 0
      %v943 = vsub.s32 0, %v808
      %v944 = vsel %vm942, %v943, %v808
      %v945 = vshrl.u32 %v944, 4
      %v946 = vand.u32 %v944, 15
      %v947 = vsub.s32 0, %v946
      %v948 = vsel %vm942, %v947, %v946
      %vm949 = vcmp.lt.s32.totalorder %v809, 0
      %v950 = vsub.s32 0, %v809
      %v951 = vsel %vm949, %v950, %v809
      %v952 = vshrl.u32 %v951, 4
      %v953 = vand.u32 %v951, 15
      %v954 = vsub.s32 0, %v953
      %v955 = vsel %vm949, %v954, %v953
      %vm956 = vcmp.lt.s32.totalorder %v810, 0
      %v957 = vsub.s32 0, %v810
      %v958 = vsel %vm956, %v957, %v810
      %v959 = vshrl.u32 %v958, 4
      %v960 = vand.u32 %v958, 15
      %v961 = vsub.s32 0, %v960
      %v962 = vsel %vm956, %v961, %v960
      %vm963 = vcmp.lt.s32.totalorder %v811, 0
      %v964 = vsub.s32 0, %v811
      %v965 = vsel %vm963, %v964, %v811
      %v966 = vshrl.u32 %v965, 4
      %v967 = vand.u32 %v965, 15
      %v968 = vsub.s32 0, %v967
      %v969 = vsel %vm963, %v968, %v967
      %vm970 = vcmp.lt.s32.totalorder %v812, 0
      %v971 = vsub.s32 0, %v812
      %v972 = vsel %vm970, %v971, %v812
      %v973 = vshrl.u32 %v972, 4
      %v974 = vand.u32 %v972, 15
      %v975 = vsub.s32 0, %v974
      %v976 = vsel %vm970, %v975, %v974
      %vm977 = vcmp.lt.s32.totalorder %v813, 0
      %v978 = vsub.s32 0, %v813
      %v979 = vsel %vm977, %v978, %v813
      %v980 = vshrl.u32 %v979, 4
      %v981 = vand.u32 %v979, 15
      %v982 = vsub.s32 0, %v981
      %v983 = vsel %vm977, %v982, %v981
      %vm984 = vcmp.lt.s32.totalorder %v814, 0
      %v985 = vsub.s32 0, %v814
      %v986 = vsel %vm984, %v985, %v814
      %v987 = vshrl.u32 %v986, 4
      %v988 = vand.u32 %v986, 15
      %v989 = vsub.s32 0, %v988
      %v990 = vsel %vm984, %v989, %v988
      %vm991 = vcmp.lt.s32.totalorder %v815, 0
      %v992 = vsub.s32 0, %v815
      %v993 = vsel %vm991, %v992, %v815
      %v994 = vshrl.u32 %v993, 4
      %v995 = vand.u32 %v993, 15
      %v996 = vsub.s32 0, %v995
      %v997 = vsel %vm991, %v996, %v995
      %vm998 = vcmp.lt.s32.totalorder %v816, 0
      %v999 = vsub.s32 0, %v816
      %v1000 = vsel %vm998, %v999, %v816
      %v1001 = vshrl.u32 %v1000, 4
      %v1002 = vand.u32 %v1000, 15
      %v1003 = vsub.s32 0, %v1002
      %v1004 = vsel %vm998, %v1003, %v1002
      %vm1005 = vcmp.ne.s32.totalorder %v927, 0
      %vm1006 = vcmp.ne.s32.totalorder %v934, 0
      %vm1007 = vcmp.ne.s32.totalorder %v941, 0
      %vm1008 = vcmp.ne.s32.totalorder %v948, 0
      %vm1009 = vcmp.ne.s32.totalorder %v955, 0
      %vm1010 = vcmp.ne.s32.totalorder %v962, 0
      %vm1011 = vcmp.ne.s32.totalorder %v969, 0
      %vm1012 = vcmp.ne.s32.totalorder %v976, 0
      %vm1013 = vcmp.ne.s32.totalorder %v983, 0
      %vm1014 = vcmp.ne.s32.totalorder %v990, 0
      %vm1015 = vcmp.ne.s32.totalorder %v997, 0
      %vm1016 = vcmp.ne.s32.totalorder %v1004, 0
      %vm1017 = vcmp.lt.s32.totalorder %v927, 0
      %vm1018 = vcmp.lt.s32.totalorder %v934, 0
      %vm1019 = vcmp.lt.s32.totalorder %v941, 0
      %vm1020 = vcmp.lt.s32.totalorder %v948, 0
      %vm1021 = vcmp.lt.s32.totalorder %v955, 0
      %vm1022 = vcmp.lt.s32.totalorder %v962, 0
      %vm1023 = vcmp.lt.s32.totalorder %v969, 0
      %vm1024 = vcmp.lt.s32.totalorder %v976, 0
      %vm1025 = vcmp.lt.s32.totalorder %v983, 0
      %vm1026 = vcmp.lt.s32.totalorder %v990, 0
      %vm1027 = vcmp.lt.s32.totalorder %v997, 0
      %vm1028 = vcmp.lt.s32.totalorder %v1004, 0
      %vm1029 = vmand %vm1017, %vm1005
      %vm1030 = vmand %vm1018, %vm1006
      %vm1031 = vmand %vm1019, %vm1007
      %vm1032 = vmand %vm1020, %vm1008
      %vm1033 = vmand %vm1021, %vm1009
      %vm1034 = vmand %vm1022, %vm1010
      %vm1035 = vmand %vm1023, %vm1011
      %vm1036 = vmand %vm1024, %vm1012
      %vm1037 = vmand %vm1025, %vm1013
      %vm1038 = vmand %vm1026, %vm1014
      %vm1039 = vmand %vm1027, %vm1015
      %vm1040 = vmand %vm1028, %vm1016
      %v1041 = vadd.s32 %v927, 16
      %v1042 = vadd.s32 %v934, 16
      %v1043 = vadd.s32 %v941, 16
      %v1044 = vadd.s32 %v948, 16
      %v1045 = vadd.s32 %v955, 16
      %v1046 = vadd.s32 %v962, 16
      %v1047 = vadd.s32 %v969, 16
      %v1048 = vadd.s32 %v976, 16
      %v1049 = vadd.s32 %v983, 16
      %v1050 = vadd.s32 %v990, 16
      %v1051 = vadd.s32 %v997, 16
      %v1052 = vadd.s32 %v1004, 16
      %v1053 = vsel %vm1029, %v1041, %v927
      %v1054 = vsel %vm1030, %v1042, %v934
      %v1055 = vsel %vm1031, %v1043, %v941
      %v1056 = vsel %vm1032, %v1044, %v948
      %v1057 = vsel %vm1033, %v1045, %v955
      %v1058 = vsel %vm1034, %v1046, %v962
      %v1059 = vsel %vm1035, %v1047, %v969
      %v1060 = vsel %vm1036, %v1048, %v976
      %v1061 = vsel %vm1037, %v1049, %v983
      %v1062 = vsel %vm1038, %v1050, %v990
      %v1063 = vsel %vm1039, %v1051, %v997
      %v1064 = vsel %vm1040, %v1052, %v1004
      %vm1065 = vcmp.gt.s32.totalorder %v1053, 0
      %vm1066 = vcmp.gt.s32.totalorder %v1054, 0
      %vm1067 = vcmp.gt.s32.totalorder %v1055, 0
      %vm1068 = vcmp.gt.s32.totalorder %v1056, 0
      %vm1069 = vcmp.gt.s32.totalorder %v1057, 0
      %vm1070 = vcmp.gt.s32.totalorder %v1058, 0
      %vm1071 = vcmp.gt.s32.totalorder %v1059, 0
      %vm1072 = vcmp.gt.s32.totalorder %v1060, 0
      %vm1073 = vcmp.gt.s32.totalorder %v1061, 0
      %vm1074 = vcmp.gt.s32.totalorder %v1062, 0
      %vm1075 = vcmp.gt.s32.totalorder %v1063, 0
      %vm1076 = vcmp.gt.s32.totalorder %v1064, 0
      %v1077 = vrot.slane %v909, 7
      %v1078 = vrot.slane %v910, 7
      %v1079 = vrot.slane %v911, 7
      %v1080 = vrot.slane %v912, 7
      %v1081 = vrot.slane %v913, 7
      %v1082 = vrot.slane %v914, 7
      %v1083 = vrot.slane %v915, 7
      %v1084 = vrot.slane %v916, 7
      %v1085 = vrot.slane %v917, 7
      %v1086 = vrot.slane %v918, 7
      %v1087 = vrot.slane %v919, 7
      %v1088 = vrot.slane %v920, 7
      %vm1089 = vcmp.lt.s32.totalorder %v805, 1
      %v1090 = vsel %vm1089, %v1087, %v1088
      %v1091 = vsel %vm1089, %v1086, %v1087
      %v1092 = vsel %vm1089, %v1085, %v1086
      %v1093 = vsel %vm1089, %v1084, %v1085
      %v1094 = vsel %vm1089, %v1083, %v1084
      %v1095 = vsel %vm1089, %v1082, %v1083
      %v1096 = vsel %vm1089, %v1081, %v1082
      %v1097 = vsel %vm1089, %v1080, %v1081
      %v1098 = vsel %vm1089, %v1079, %v1080
      %v1099 = vsel %vm1089, %v1078, %v1079
      %v1100 = vsel %vm1089, %v1077, %v1078
      %v1101 = vsel %vm1089, %v1088, %v1077
      %v1102 = vsel %vm1065, 1, 0
      %v1103 = vsel %vm1066, 1, 0
      %v1104 = vsel %vm1067, 1, 0
      %v1105 = vsel %vm1068, 1, 0
      %v1106 = vsel %vm1069, 1, 0
      %v1107 = vsel %vm1070, 1, 0
      %v1108 = vsel %vm1071, 1, 0
      %v1109 = vsel %vm1072, 1, 0
      %v1110 = vsel %vm1073, 1, 0
      %v1111 = vsel %vm1074, 1, 0
      %v1112 = vsel %vm1075, 1, 0
      %v1113 = vsel %vm1076, 1, 0
      %vm1114 = vcmp.eq.s32.totalorder %v1102, 1
      %vm1115 = vcmp.eq.s32.totalorder %v1103, 1
      %vm1116 = vcmp.eq.s32.totalorder %v1104, 1
      %vm1117 = vcmp.eq.s32.totalorder %v1105, 1
      %vm1118 = vcmp.eq.s32.totalorder %v1106, 1
      %vm1119 = vcmp.eq.s32.totalorder %v1107, 1
      %vm1120 = vcmp.eq.s32.totalorder %v1108, 1
      %vm1121 = vcmp.eq.s32.totalorder %v1109, 1
      %vm1122 = vcmp.eq.s32.totalorder %v1110, 1
      %vm1123 = vcmp.eq.s32.totalorder %v1111, 1
      %vm1124 = vcmp.eq.s32.totalorder %v1112, 1
      %vm1125 = vcmp.eq.s32.totalorder %v1113, 1
      %v1126 = vsel %vm1114, %v1101, 0.0
      %v1127 = vsel %vm1115, %v1100, 0.0
      %v1128 = vsel %vm1116, %v1099, 0.0
      %v1129 = vsel %vm1117, %v1098, 0.0
      %v1130 = vsel %vm1118, %v1097, 0.0
      %v1131 = vsel %vm1119, %v1096, 0.0
      %v1132 = vsel %vm1120, %v1095, 0.0
      %v1133 = vsel %vm1121, %v1094, 0.0
      %v1134 = vsel %vm1122, %v1093, 0.0
      %v1135 = vsel %vm1123, %v1092, 0.0
      %v1136 = vsel %vm1124, %v1091, 0.0
      %v1137 = vsel %vm1125, %v1090, 0.0
      %vm1138 = vcmp.lt.s32.totalorder %v1053, 15
      %vm1139 = vcmp.lt.s32.totalorder %v1054, 15
      %vm1140 = vcmp.lt.s32.totalorder %v1055, 15
      %vm1141 = vcmp.lt.s32.totalorder %v1056, 15
      %vm1142 = vcmp.lt.s32.totalorder %v1057, 15
      %vm1143 = vcmp.lt.s32.totalorder %v1058, 15
      %vm1144 = vcmp.lt.s32.totalorder %v1059, 15
      %vm1145 = vcmp.lt.s32.totalorder %v1060, 15
      %vm1146 = vcmp.lt.s32.totalorder %v1061, 15
      %vm1147 = vcmp.lt.s32.totalorder %v1062, 15
      %vm1148 = vcmp.lt.s32.totalorder %v1063, 15
      %vm1149 = vcmp.lt.s32.totalorder %v1064, 15
      %v1150 = vrot.slane %v909, 1
      %v1151 = vrot.slane %v910, 1
      %v1152 = vrot.slane %v911, 1
      %v1153 = vrot.slane %v912, 1
      %v1154 = vrot.slane %v913, 1
      %v1155 = vrot.slane %v914, 1
      %v1156 = vrot.slane %v915, 1
      %v1157 = vrot.slane %v916, 1
      %v1158 = vrot.slane %v917, 1
      %v1159 = vrot.slane %v918, 1
      %v1160 = vrot.slane %v919, 1
      %v1161 = vrot.slane %v920, 1
      %vm1162 = vcmp.lt.s32.totalorder %v805, 7
      %v1163 = vsel %vm1162, %v1160, %v1161
      %v1164 = vsel %vm1162, %v1159, %v1160
      %v1165 = vsel %vm1162, %v1158, %v1159
      %v1166 = vsel %vm1162, %v1157, %v1158
      %v1167 = vsel %vm1162, %v1156, %v1157
      %v1168 = vsel %vm1162, %v1155, %v1156
      %v1169 = vsel %vm1162, %v1154, %v1155
      %v1170 = vsel %vm1162, %v1153, %v1154
      %v1171 = vsel %vm1162, %v1152, %v1153
      %v1172 = vsel %vm1162, %v1151, %v1152
      %v1173 = vsel %vm1162, %v1150, %v1151
      %v1174 = vsel %vm1162, %v1161, %v1150
      %v1175 = vsel %vm1138, 1, 0
      %v1176 = vsel %vm1139, 1, 0
      %v1177 = vsel %vm1140, 1, 0
      %v1178 = vsel %vm1141, 1, 0
      %v1179 = vsel %vm1142, 1, 0
      %v1180 = vsel %vm1143, 1, 0
      %v1181 = vsel %vm1144, 1, 0
      %v1182 = vsel %vm1145, 1, 0
      %v1183 = vsel %vm1146, 1, 0
      %v1184 = vsel %vm1147, 1, 0
      %v1185 = vsel %vm1148, 1, 0
      %v1186 = vsel %vm1149, 1, 0
      %vm1187 = vcmp.eq.s32.totalorder %v1175, 1
      %vm1188 = vcmp.eq.s32.totalorder %v1176, 1
      %vm1189 = vcmp.eq.s32.totalorder %v1177, 1
      %vm1190 = vcmp.eq.s32.totalorder %v1178, 1
      %vm1191 = vcmp.eq.s32.totalorder %v1179, 1
      %vm1192 = vcmp.eq.s32.totalorder %v1180, 1
      %vm1193 = vcmp.eq.s32.totalorder %v1181, 1
      %vm1194 = vcmp.eq.s32.totalorder %v1182, 1
      %vm1195 = vcmp.eq.s32.totalorder %v1183, 1
      %vm1196 = vcmp.eq.s32.totalorder %v1184, 1
      %vm1197 = vcmp.eq.s32.totalorder %v1185, 1
      %vm1198 = vcmp.eq.s32.totalorder %v1186, 1
      %v1199 = vsel %vm1187, %v1173, 0.0
      %v1200 = vsel %vm1188, %v1172, 0.0
      %v1201 = vsel %vm1189, %v1171, 0.0
      %v1202 = vsel %vm1190, %v1170, 0.0
      %v1203 = vsel %vm1191, %v1169, 0.0
      %v1204 = vsel %vm1192, %v1168, 0.0
      %v1205 = vsel %vm1193, %v1167, 0.0
      %v1206 = vsel %vm1194, %v1166, 0.0
      %v1207 = vsel %vm1195, %v1165, 0.0
      %v1208 = vsel %vm1196, %v1164, 0.0
      %v1209 = vsel %vm1197, %v1163, 0.0
      %v1210 = vsel %vm1198, %v1174, 0.0
      %v1211 = vpack.c.bf16 %v1127, %v1126
      %v1212 = vpack.c.bf16 %v1129, %v1128
      %v1213 = vpack.c.bf16 %v1131, %v1130
      %v1214 = vpack.c.bf16 %v1133, %v1132
      %v1215 = vpack.c.bf16 %v1135, %v1134
      %v1216 = vpack.c.bf16 %v1137, %v1136
      %v1217 = vpack.c.bf16 %v910, %v909
      %v1218 = vpack.c.bf16 %v912, %v911
      %v1219 = vpack.c.bf16 %v914, %v913
      %v1220 = vpack.c.bf16 %v916, %v915
      %v1221 = vpack.c.bf16 %v918, %v917
      %v1222 = vpack.c.bf16 %v920, %v919
      %v1223 = vpack.c.bf16 %v1200, %v1199
      %v1224 = vpack.c.bf16 %v1202, %v1201
      %v1225 = vpack.c.bf16 %v1204, %v1203
      %v1226 = vpack.c.bf16 %v1206, %v1205
      %v1227 = vpack.c.bf16 %v1208, %v1207
      %v1228 = vpack.c.bf16 %v1210, %v1209
      %v1229 = vld [vmem:[%s6] sm:$0xf]
      %v1230 = vld [vmem:[%s6 + $0x4] sm:$0xf]
      %v1231 = vld [vmem:[%s6 + $0x8] sm:$0xf]
      %v1232 = vld [vmem:[%s6 + $0xc] sm:$0xf]
      %v1233 = vld [vmem:[%s6 + $0x10] sm:$0xf]
      %v1234 = vld [vmem:[%s6 + $0x14] sm:$0xf]
      %v1235 = vld [vmem:[%s6 + $0x18] sm:$0xf]
      %v1236 = vld [vmem:[%s6 + $0x1c] sm:$0xf]
      %v1237 = vld [vmem:[%s6 + $0x20] sm:$0xf]
      %v1238 = vld [vmem:[%s6 + $0x24] sm:$0xf]
      %v1239 = vld [vmem:[%s6 + $0x28] sm:$0xf]
      %v1240 = vld [vmem:[%s6 + $0x2c] sm:$0xf]
      %v1241 = vld [vmem:[%s6 + $0x30] sm:$0xf]
      %v1242 = vld [vmem:[%s6 + $0x34] sm:$0xf]
      %v1243 = vld [vmem:[%s6 + $0x38] sm:$0xf]
      %v1244 = vld [vmem:[%s6 + $0x3c] sm:$0xf]
      %v1245 = vld [vmem:[%s6 + $0x40] sm:$0xf]
      %v1246 = vld [vmem:[%s6 + $0x44] sm:$0xf]
      %v1247 = vld [vmem:[%s6 + $0x48] sm:$0xf]
      %v1248 = vld [vmem:[%s6 + $0x4c] sm:$0xf]
      %v1249 = vld [vmem:[%s6 + $0x50] sm:$0xf]
      %v1250 = vld [vmem:[%s6 + $0x54] sm:$0xf]
      %v1251 = vld [vmem:[%s6 + $0x58] sm:$0xf]
      %v1252 = vld [vmem:[%s6 + $0x5c] sm:$0xf]
      %v1253 = vld [vmem:[%s6 + $0x60] sm:$0xf]
      %v1254 = vld [vmem:[%s6 + $0x64] sm:$0xf]
      %v1255 = vld [vmem:[%s6 + $0x68] sm:$0xf]
      %v1256 = vld [vmem:[%s6 + $0x6c] sm:$0xf]
      %v1257 = vld [vmem:[%s6 + $0x70] sm:$0xf]
      %v1258 = vld [vmem:[%s6 + $0x74] sm:$0xf]
      %v1259 = vld [vmem:[%s6 + $0x78] sm:$0xf]
      %v1260 = vld [vmem:[%s6 + $0x7c] sm:$0xf]
      %v1261 = vld [vmem:[%s6 + $0x80] sm:$0xf]
      %v1262 = vld [vmem:[%s6 + $0x84] sm:$0xf]
      %v1263 = vld [vmem:[%s6 + $0x88] sm:$0xf]
      %v1264 = vld [vmem:[%s6 + $0x8c] sm:$0xf]
      %v1265 = vld [vmem:[%s6 + $0x90] sm:$0xf]
      %v1266 = vld [vmem:[%s6 + $0x94] sm:$0xf]
      %v1267 = vld [vmem:[%s6 + $0x98] sm:$0xf]
      %v1268 = vld [vmem:[%s6 + $0x9c] sm:$0xf]
      %v1269 = vld [vmem:[%s6 + $0xa0] sm:$0xf]
      %v1270 = vld [vmem:[%s6 + $0xa4] sm:$0xf]
      %v1271 = vld [vmem:[%s6 + $0xa8] sm:$0xf]
      %v1272 = vld [vmem:[%s6 + $0xac] sm:$0xf]
      %v1273 = vld [vmem:[%s6 + $0xb0] sm:$0xf]
      %v1274 = vld [vmem:[%s6 + $0xb4] sm:$0xf]
      %v1275 = vld [vmem:[%s6 + $0xb8] sm:$0xf]
      %v1276 = vld [vmem:[%s6 + $0xbc] sm:$0xf]
      %s1277 = scalar_lea.vmem %s6, 192
      %v1278 = vld [vmem:[%s1277] sm:$0xf]
      %v1279 = vld [vmem:[%s1277 + $0x4] sm:$0xf]
      %v1280 = vld [vmem:[%s1277 + $0x8] sm:$0xf]
      %v1281 = vld [vmem:[%s1277 + $0xc] sm:$0xf]
      %v1282 = vld [vmem:[%s1277 + $0x10] sm:$0xf]
      %v1283 = vld [vmem:[%s1277 + $0x14] sm:$0xf]
      %v1284 = vld [vmem:[%s1277 + $0x18] sm:$0xf]
      %v1285 = vld [vmem:[%s1277 + $0x1c] sm:$0xf]
      %v1286 = vld [vmem:[%s1277 + $0x20] sm:$0xf]
      %v1287 = vld [vmem:[%s1277 + $0x24] sm:$0xf]
      %v1288 = vld [vmem:[%s1277 + $0x28] sm:$0xf]
      %v1289 = vld [vmem:[%s1277 + $0x2c] sm:$0xf]
      %v1290 = vld [vmem:[%s1277 + $0x30] sm:$0xf]
      %v1291 = vld [vmem:[%s1277 + $0x34] sm:$0xf]
      %v1292 = vld [vmem:[%s1277 + $0x38] sm:$0xf]
      %v1293 = vld [vmem:[%s1277 + $0x3c] sm:$0xf]
      %v1294 = vld [vmem:[%s1277 + $0x40] sm:$0xf]
      %v1295 = vld [vmem:[%s1277 + $0x44] sm:$0xf]
      %v1296 = vld [vmem:[%s1277 + $0x48] sm:$0xf]
      %v1297 = vld [vmem:[%s1277 + $0x4c] sm:$0xf]
      %v1298 = vld [vmem:[%s1277 + $0x50] sm:$0xf]
      %v1299 = vld [vmem:[%s1277 + $0x54] sm:$0xf]
      %v1300 = vld [vmem:[%s1277 + $0x58] sm:$0xf]
      %v1301 = vld [vmem:[%s1277 + $0x5c] sm:$0xf]
      %v1302 = vld [vmem:[%s1277 + $0x60] sm:$0xf]
      %v1303 = vld [vmem:[%s1277 + $0x64] sm:$0xf]
      %v1304 = vld [vmem:[%s1277 + $0x68] sm:$0xf]
      %v1305 = vld [vmem:[%s1277 + $0x6c] sm:$0xf]
      %v1306 = vld [vmem:[%s1277 + $0x70] sm:$0xf]
      %v1307 = vld [vmem:[%s1277 + $0x74] sm:$0xf]
      %v1308 = vld [vmem:[%s1277 + $0x78] sm:$0xf]
      %v1309 = vld [vmem:[%s1277 + $0x7c] sm:$0xf]
      %v1310 = vld [vmem:[%s1277 + $0x80] sm:$0xf]
      %v1311 = vld [vmem:[%s1277 + $0x84] sm:$0xf]
      %v1312 = vld [vmem:[%s1277 + $0x88] sm:$0xf]
      %v1313 = vld [vmem:[%s1277 + $0x8c] sm:$0xf]
      %v1314 = vld [vmem:[%s1277 + $0x90] sm:$0xf]
      %v1315 = vld [vmem:[%s1277 + $0x94] sm:$0xf]
      %v1316 = vld [vmem:[%s1277 + $0x98] sm:$0xf]
      %v1317 = vld [vmem:[%s1277 + $0x9c] sm:$0xf]
      %v1318 = vld [vmem:[%s1277 + $0xa0] sm:$0xf]
      %v1319 = vld [vmem:[%s1277 + $0xa4] sm:$0xf]
      %v1320 = vld [vmem:[%s1277 + $0xa8] sm:$0xf]
      %v1321 = vld [vmem:[%s1277 + $0xac] sm:$0xf]
      %v1322 = vld [vmem:[%s1277 + $0xb0] sm:$0xf]
      %v1323 = vld [vmem:[%s1277 + $0xb4] sm:$0xf]
      %v1324 = vld [vmem:[%s1277 + $0xb8] sm:$0xf]
      %v1325 = vld [vmem:[%s1277 + $0xbc] sm:$0xf]
      %v1374 = vunpack.c.l.b16 %v1278
      %v1375 = vunpack.c.l.b16 %v1279
      %v1376 = vunpack.c.l.b16 %v1280
      %v1377 = vunpack.c.l.b16 %v1281
      %v1378 = vunpack.c.l.b16 %v1282
      %v1379 = vunpack.c.l.b16 %v1283
      %v1380 = vunpack.c.l.b16 %v1284
      %v1381 = vunpack.c.l.b16 %v1285
      %v1382 = vunpack.c.l.b16 %v1286
      %v1383 = vunpack.c.l.b16 %v1287
      %v1384 = vunpack.c.l.b16 %v1288
      %v1385 = vunpack.c.l.b16 %v1289
      %v1386 = vunpack.c.l.b16 %v1290
      %v1387 = vunpack.c.l.b16 %v1291
      %v1388 = vunpack.c.l.b16 %v1292
      %v1389 = vunpack.c.l.b16 %v1293
      %v1390 = vunpack.c.l.b16 %v1294
      %v1391 = vunpack.c.l.b16 %v1295
      %v1392 = vunpack.c.l.b16 %v1296
      %v1393 = vunpack.c.l.b16 %v1297
      %v1394 = vunpack.c.l.b16 %v1298
      %v1395 = vunpack.c.l.b16 %v1299
      %v1396 = vunpack.c.l.b16 %v1300
      %v1397 = vunpack.c.l.b16 %v1301
      %v1398 = vunpack.c.l.b16 %v1302
      %v1399 = vunpack.c.l.b16 %v1303
      %v1400 = vunpack.c.l.b16 %v1304
      %v1401 = vunpack.c.l.b16 %v1305
      %v1402 = vunpack.c.l.b16 %v1306
      %v1403 = vunpack.c.l.b16 %v1307
      %v1404 = vunpack.c.l.b16 %v1308
      %v1405 = vunpack.c.l.b16 %v1309
      %v1406 = vunpack.c.l.b16 %v1310
      %v1407 = vunpack.c.l.b16 %v1311
      %v1408 = vunpack.c.l.b16 %v1312
      %v1409 = vunpack.c.l.b16 %v1313
      %v1410 = vunpack.c.l.b16 %v1314
      %v1411 = vunpack.c.l.b16 %v1315
      %v1412 = vunpack.c.l.b16 %v1316
      %v1413 = vunpack.c.l.b16 %v1317
      %v1414 = vunpack.c.l.b16 %v1318
      %v1415 = vunpack.c.l.b16 %v1319
      %v1416 = vunpack.c.l.b16 %v1320
      %v1417 = vunpack.c.l.b16 %v1321
      %v1418 = vunpack.c.l.b16 %v1322
      %v1419 = vunpack.c.l.b16 %v1323
      %v1420 = vunpack.c.l.b16 %v1324
      %v1421 = vunpack.c.l.b16 %v1325
      %v1422 = vpack.c.b16 %v1375, %v1374
      %v1423 = vpack.c.b16 %v1377, %v1376
      %v1424 = vpack.c.b16 %v1379, %v1378
      %v1425 = vpack.c.b16 %v1381, %v1380
      %v1426 = vpack.c.b16 %v1383, %v1382
      %v1427 = vpack.c.b16 %v1385, %v1384
      %v1428 = vpack.c.b16 %v1387, %v1386
      %v1429 = vpack.c.b16 %v1389, %v1388
      %v1430 = vpack.c.b16 %v1391, %v1390
      %v1431 = vpack.c.b16 %v1393, %v1392
      %v1432 = vpack.c.b16 %v1395, %v1394
      %v1433 = vpack.c.b16 %v1397, %v1396
      %v1434 = vpack.c.b16 %v1399, %v1398
      %v1435 = vpack.c.b16 %v1401, %v1400
      %v1436 = vpack.c.b16 %v1403, %v1402
      %v1437 = vpack.c.b16 %v1405, %v1404
      %v1438 = vpack.c.b16 %v1407, %v1406
      %v1439 = vpack.c.b16 %v1409, %v1408
      %v1440 = vpack.c.b16 %v1411, %v1410
      %v1441 = vpack.c.b16 %v1413, %v1412
      %v1442 = vpack.c.b16 %v1415, %v1414
      %v1443 = vpack.c.b16 %v1417, %v1416
      %v1444 = vpack.c.b16 %v1419, %v1418
      %v1445 = vpack.c.b16 %v1421, %v1420
      %1470 = vmatprep.subr.bf16.mxu0 0
      %1471 = vmatpush1.bf16.msra.mxu0 %v1429
      %1472 = vmatprep.subr.bf16.mxu0 0
      %1473 = vmatpush1.bf16.msra.mxu0 %v1428
      %1474 = vmatprep.subr.bf16.mxu0 0
      %1475 = vmatpush1.bf16.msra.mxu0 %v1427
      %1476 = vmatprep.subr.bf16.mxu0 0
      %1477 = vmatpush1.bf16.msra.mxu0 %v1426
      %1478 = vmatprep.subr.bf16.mxu0 0
      %1479 = vmatpush1.bf16.msra.mxu0 %v1425
      %1480 = vmatprep.subr.bf16.mxu0 0
      %1481 = vmatpush1.bf16.msra.mxu0 %v1424
      %1482 = vmatprep.subr.bf16.mxu0 0
      %1483 = vmatpush1.bf16.msra.mxu0 %v1423
      %1484 = vmatprep.subr.bf16.mxu0 0
      %1485 = vmatpush1.bf16.msra.mxu0 %v1422
      %1486 = vmatprep.subr.bf16.mxu0 0
      %1487 = vmatpush2.bf16.msra.mxu0 %v1437
      %1488 = vmatprep.subr.bf16.mxu0 0
      %1489 = vmatpush2.bf16.msra.mxu0 %v1436
      %1490 = vmatprep.subr.bf16.mxu0 0
      %1491 = vmatpush2.bf16.msra.mxu0 %v1435
      %1492 = vmatprep.subr.bf16.mxu0 0
      %1493 = vmatpush2.bf16.msra.mxu0 %v1434
      %1494 = vmatprep.subr.bf16.mxu0 0
      %1495 = vmatpush2.bf16.msra.mxu0 %v1433
      %1496 = vmatprep.subr.bf16.mxu0 0
      %1497 = vmatpush2.bf16.msra.mxu0 %v1432
      %1498 = vmatprep.subr.bf16.mxu0 0
      %1499 = vmatpush2.bf16.msra.mxu0 %v1431
      %1500 = vmatprep.subr.bf16.mxu0 0
      %1501 = vmatpush2.bf16.msra.mxu0 %v1430
      %1502 = vmatprep.mubr.bf16.mxu0 %v1218
      %1503 = vmatmul.mubr.bf16.gmra.mxu0 %v1212
      %v1504 = vpop.f32.mrf.mxu0
      %v1505 = vadd.f32 0.0, %v1504
      %v1506 = vpop.f32.mrf.mxu0
      %v1507 = vpop.f32.mrf.mxu0
      %v1508 = vadd.f32 0.0, %v1507
      %v1509 = vpop.f32.mrf.mxu0
      %1510 = vmatprep.mubr.bf16.mxu0 %v1219
      %1511 = vmatmul.mubr.bf16.gmra.mxu0 %v1213
      %v1512 = vpop.f32.mrf.mxu0
      %v1513 = vadd.f32 0.0, %v1512
      %v1514 = vpop.f32.mrf.mxu0
      %v1515 = vpop.f32.mrf.mxu0
      %v1516 = vadd.f32 0.0, %v1515
      %v1517 = vpop.f32.mrf.mxu0
      %1518 = vmatprep.mubr.bf16.mxu0 %v1220
      %1519 = vmatmul.mubr.bf16.gmra.mxu0 %v1214
      %v1520 = vpop.f32.mrf.mxu0
      %v1521 = vadd.f32 0.0, %v1520
      %v1522 = vpop.f32.mrf.mxu0
      %v1523 = vpop.f32.mrf.mxu0
      %v1524 = vadd.f32 0.0, %v1523
      %v1525 = vpop.f32.mrf.mxu0
      %1526 = vmatprep.mubr.bf16.mxu0 %v1221
      %1527 = vmatmul.mubr.bf16.gmra.mxu0 %v1215
      %v1528 = vpop.f32.mrf.mxu0
      %v1529 = vadd.f32 0.0, %v1528
      %v1530 = vpop.f32.mrf.mxu0
      %v1531 = vpop.f32.mrf.mxu0
      %v1532 = vadd.f32 0.0, %v1531
      %v1533 = vpop.f32.mrf.mxu0
      %1534 = vdwg.mxu0
      %1535 = vmatprep.subr.bf16.mxu0 0
      %1536 = vmatpush1.bf16.msra.mxu0 %v1445
      %1537 = vmatprep.subr.bf16.mxu0 0
      %1538 = vmatpush1.bf16.msra.mxu0 %v1444
      %1539 = vmatprep.subr.bf16.mxu0 0
      %1540 = vmatpush1.bf16.msra.mxu0 %v1443
      %1541 = vmatprep.subr.bf16.mxu0 0
      %1542 = vmatpush1.bf16.msra.mxu0 %v1442
      %1543 = vmatprep.subr.bf16.mxu0 0
      %1544 = vmatpush1.bf16.msra.mxu0 %v1441
      %1545 = vmatprep.subr.bf16.mxu0 0
      %1546 = vmatpush1.bf16.msra.mxu0 %v1440
      %1547 = vmatprep.subr.bf16.mxu0 0
      %1548 = vmatpush1.bf16.msra.mxu0 %v1439
      %1549 = vmatprep.subr.bf16.mxu0 0
      %1550 = vmatpush1.bf16.msra.mxu0 %v1438
      %1551 = vmatprep.subr.bf16.mxu0 0
      %1552 = vmatpush2.bf16.msra.mxu0 0
      %1553 = vmatprep.subr.bf16.mxu0 0
      %1554 = vmatpush2.bf16.msra.mxu0 0
      %1555 = vmatprep.subr.bf16.mxu0 0
      %1556 = vmatpush2.bf16.msra.mxu0 0
      %1557 = vmatprep.subr.bf16.mxu0 0
      %1558 = vmatpush2.bf16.msra.mxu0 0
      %1559 = vmatprep.subr.bf16.mxu0 0
      %1560 = vmatpush2.bf16.msra.mxu0 0
      %1561 = vmatprep.subr.bf16.mxu0 0
      %1562 = vmatpush2.bf16.msra.mxu0 0
      %1563 = vmatprep.subr.bf16.mxu0 0
      %1564 = vmatpush2.bf16.msra.mxu0 0
      %1565 = vmatprep.subr.bf16.mxu0 0
      %1566 = vmatpush2.bf16.msra.mxu0 0
      %1567 = vmatprep.mubr.bf16.mxu0 0
      %1568 = vmatmul.mubr.bf16.gmra.mxu0 %v1224
      %v1569 = vpop.f32.mrf.mxu0
      %v1570 = vadd.f32 %v1505, %v1569
      %v1571 = vpop.f32.mrf.mxu0
      %v1572 = vpop.f32.mrf.mxu0
      %v1573 = vadd.f32 %v1508, %v1572
      %v1574 = vpop.f32.mrf.mxu0
      %1575 = vmatprep.mubr.bf16.mxu0 0
      %1576 = vmatmul.mubr.bf16.gmra.mxu0 %v1225
      %v1577 = vpop.f32.mrf.mxu0
      %v1578 = vadd.f32 %v1513, %v1577
      %v1579 = vpop.f32.mrf.mxu0
      %v1580 = vpop.f32.mrf.mxu0
      %v1581 = vadd.f32 %v1516, %v1580
      %v1582 = vpop.f32.mrf.mxu0
      %1583 = vmatprep.mubr.bf16.mxu0 0
      %1584 = vmatmul.mubr.bf16.gmra.mxu0 %v1226
      %v1585 = vpop.f32.mrf.mxu0
      %v1586 = vadd.f32 %v1521, %v1585
      %v1587 = vpop.f32.mrf.mxu0
      %v1588 = vpop.f32.mrf.mxu0
      %v1589 = vadd.f32 %v1524, %v1588
      %v1590 = vpop.f32.mrf.mxu0
      %1591 = vmatprep.mubr.bf16.mxu0 0
      %1592 = vmatmul.mubr.bf16.gmra.mxu0 %v1227
      %v1593 = vpop.f32.mrf.mxu0
      %v1594 = vadd.f32 %v1529, %v1593
      %v1595 = vpop.f32.mrf.mxu0
      %v1596 = vpop.f32.mrf.mxu0
      %v1597 = vadd.f32 %v1532, %v1596
      %v1598 = vpop.f32.mrf.mxu0
      %1599 = vdwg.mxu0
      %v1648 = vunpack.c.l.b16 %v1229
      %v1649 = vunpack.c.l.b16 %v1230
      %v1650 = vunpack.c.l.b16 %v1231
      %v1651 = vunpack.c.l.b16 %v1232
      %v1652 = vunpack.c.l.b16 %v1233
      %v1653 = vunpack.c.l.b16 %v1234
      %v1654 = vunpack.c.l.b16 %v1235
      %v1655 = vunpack.c.l.b16 %v1236
      %v1656 = vunpack.c.l.b16 %v1237
      %v1657 = vunpack.c.l.b16 %v1238
      %v1658 = vunpack.c.l.b16 %v1239
      %v1659 = vunpack.c.l.b16 %v1240
      %v1660 = vunpack.c.l.b16 %v1241
      %v1661 = vunpack.c.l.b16 %v1242
      %v1662 = vunpack.c.l.b16 %v1243
      %v1663 = vunpack.c.l.b16 %v1244
      %v1664 = vunpack.c.l.b16 %v1245
      %v1665 = vunpack.c.l.b16 %v1246
      %v1666 = vunpack.c.l.b16 %v1247
      %v1667 = vunpack.c.l.b16 %v1248
      %v1668 = vunpack.c.l.b16 %v1249
      %v1669 = vunpack.c.l.b16 %v1250
      %v1670 = vunpack.c.l.b16 %v1251
      %v1671 = vunpack.c.l.b16 %v1252
      %v1672 = vunpack.c.l.b16 %v1253
      %v1673 = vunpack.c.l.b16 %v1254
      %v1674 = vunpack.c.l.b16 %v1255
      %v1675 = vunpack.c.l.b16 %v1256
      %v1676 = vunpack.c.l.b16 %v1257
      %v1677 = vunpack.c.l.b16 %v1258
      %v1678 = vunpack.c.l.b16 %v1259
      %v1679 = vunpack.c.l.b16 %v1260
      %v1680 = vunpack.c.l.b16 %v1261
      %v1681 = vunpack.c.l.b16 %v1262
      %v1682 = vunpack.c.l.b16 %v1263
      %v1683 = vunpack.c.l.b16 %v1264
      %v1684 = vunpack.c.l.b16 %v1265
      %v1685 = vunpack.c.l.b16 %v1266
      %v1686 = vunpack.c.l.b16 %v1267
      %v1687 = vunpack.c.l.b16 %v1268
      %v1688 = vunpack.c.l.b16 %v1269
      %v1689 = vunpack.c.l.b16 %v1270
      %v1690 = vunpack.c.l.b16 %v1271
      %v1691 = vunpack.c.l.b16 %v1272
      %v1692 = vunpack.c.l.b16 %v1273
      %v1693 = vunpack.c.l.b16 %v1274
      %v1694 = vunpack.c.l.b16 %v1275
      %v1695 = vunpack.c.l.b16 %v1276
      %v1696 = vpack.c.b16 %v1649, %v1648
      %v1697 = vpack.c.b16 %v1651, %v1650
      %v1698 = vpack.c.b16 %v1653, %v1652
      %v1699 = vpack.c.b16 %v1655, %v1654
      %v1700 = vpack.c.b16 %v1657, %v1656
      %v1701 = vpack.c.b16 %v1659, %v1658
      %v1702 = vpack.c.b16 %v1661, %v1660
      %v1703 = vpack.c.b16 %v1663, %v1662
      %v1704 = vpack.c.b16 %v1665, %v1664
      %v1705 = vpack.c.b16 %v1667, %v1666
      %v1706 = vpack.c.b16 %v1669, %v1668
      %v1707 = vpack.c.b16 %v1671, %v1670
      %v1708 = vpack.c.b16 %v1673, %v1672
      %v1709 = vpack.c.b16 %v1675, %v1674
      %v1710 = vpack.c.b16 %v1677, %v1676
      %v1711 = vpack.c.b16 %v1679, %v1678
      %v1712 = vpack.c.b16 %v1681, %v1680
      %v1713 = vpack.c.b16 %v1683, %v1682
      %v1714 = vpack.c.b16 %v1685, %v1684
      %v1715 = vpack.c.b16 %v1687, %v1686
      %v1716 = vpack.c.b16 %v1689, %v1688
      %v1717 = vpack.c.b16 %v1691, %v1690
      %v1718 = vpack.c.b16 %v1693, %v1692
      %v1719 = vpack.c.b16 %v1695, %v1694
      %1744 = vmatprep.subr.bf16.mxu0 0
      %1745 = vmatpush1.bf16.msra.mxu0 %v1703
      %1746 = vmatprep.subr.bf16.mxu0 0
      %1747 = vmatpush1.bf16.msra.mxu0 %v1702
      %1748 = vmatprep.subr.bf16.mxu0 0
      %1749 = vmatpush1.bf16.msra.mxu0 %v1701
      %1750 = vmatprep.subr.bf16.mxu0 0
      %1751 = vmatpush1.bf16.msra.mxu0 %v1700
      %1752 = vmatprep.subr.bf16.mxu0 0
      %1753 = vmatpush1.bf16.msra.mxu0 %v1699
      %1754 = vmatprep.subr.bf16.mxu0 0
      %1755 = vmatpush1.bf16.msra.mxu0 %v1698
      %1756 = vmatprep.subr.bf16.mxu0 0
      %1757 = vmatpush1.bf16.msra.mxu0 %v1697
      %1758 = vmatprep.subr.bf16.mxu0 0
      %1759 = vmatpush1.bf16.msra.mxu0 %v1696
      %1760 = vmatprep.subr.bf16.mxu0 0
      %1761 = vmatpush2.bf16.msra.mxu0 %v1711
      %1762 = vmatprep.subr.bf16.mxu0 0
      %1763 = vmatpush2.bf16.msra.mxu0 %v1710
      %1764 = vmatprep.subr.bf16.mxu0 0
      %1765 = vmatpush2.bf16.msra.mxu0 %v1709
      %1766 = vmatprep.subr.bf16.mxu0 0
      %1767 = vmatpush2.bf16.msra.mxu0 %v1708
      %1768 = vmatprep.subr.bf16.mxu0 0
      %1769 = vmatpush2.bf16.msra.mxu0 %v1707
      %1770 = vmatprep.subr.bf16.mxu0 0
      %1771 = vmatpush2.bf16.msra.mxu0 %v1706
      %1772 = vmatprep.subr.bf16.mxu0 0
      %1773 = vmatpush2.bf16.msra.mxu0 %v1705
      %1774 = vmatprep.subr.bf16.mxu0 0
      %1775 = vmatpush2.bf16.msra.mxu0 %v1704
      %1776 = vmatprep.mubr.bf16.mxu0 %v1217
      %1777 = vmatmul.mubr.bf16.gmra.mxu0 %v1211
      %v1778 = vpop.f32.mrf.mxu0
      %v1779 = vadd.f32 %v1570, %v1778
      %v1780 = vpop.f32.mrf.mxu0
      %v1781 = vpop.f32.mrf.mxu0
      %v1782 = vadd.f32 %v1573, %v1781
      %v1783 = vpop.f32.mrf.mxu0
      %1784 = vmatprep.mubr.bf16.mxu0 %v1218
      %1785 = vmatmul.mubr.bf16.gmra.mxu0 %v1212
      %v1786 = vpop.f32.mrf.mxu0
      %v1787 = vadd.f32 %v1578, %v1786
      %v1788 = vpop.f32.mrf.mxu0
      %v1789 = vpop.f32.mrf.mxu0
      %v1790 = vadd.f32 %v1581, %v1789
      %v1791 = vpop.f32.mrf.mxu0
      %1792 = vmatprep.mubr.bf16.mxu0 %v1219
      %1793 = vmatmul.mubr.bf16.gmra.mxu0 %v1213
      %v1794 = vpop.f32.mrf.mxu0
      %v1795 = vadd.f32 %v1586, %v1794
      %v1796 = vpop.f32.mrf.mxu0
      %v1797 = vpop.f32.mrf.mxu0
      %v1798 = vadd.f32 %v1589, %v1797
      %v1799 = vpop.f32.mrf.mxu0
      %1800 = vmatprep.mubr.bf16.mxu0 %v1220
      %1801 = vmatmul.mubr.bf16.gmra.mxu0 %v1214
      %v1802 = vpop.f32.mrf.mxu0
      %v1803 = vadd.f32 %v1594, %v1802
      %v1804 = vpop.f32.mrf.mxu0
      %v1805 = vpop.f32.mrf.mxu0
      %v1806 = vadd.f32 %v1597, %v1805
      %v1807 = vpop.f32.mrf.mxu0
      %1808 = vdwg.mxu0
      %1809 = vmatprep.subr.bf16.mxu0 0
      %1810 = vmatpush1.bf16.msra.mxu0 %v1719
      %1811 = vmatprep.subr.bf16.mxu0 0
      %1812 = vmatpush1.bf16.msra.mxu0 %v1718
      %1813 = vmatprep.subr.bf16.mxu0 0
      %1814 = vmatpush1.bf16.msra.mxu0 %v1717
      %1815 = vmatprep.subr.bf16.mxu0 0
      %1816 = vmatpush1.bf16.msra.mxu0 %v1716
      %1817 = vmatprep.subr.bf16.mxu0 0
      %1818 = vmatpush1.bf16.msra.mxu0 %v1715
      %1819 = vmatprep.subr.bf16.mxu0 0
      %1820 = vmatpush1.bf16.msra.mxu0 %v1714
      %1821 = vmatprep.subr.bf16.mxu0 0
      %1822 = vmatpush1.bf16.msra.mxu0 %v1713
      %1823 = vmatprep.subr.bf16.mxu0 0
      %1824 = vmatpush1.bf16.msra.mxu0 %v1712
      %1825 = vmatprep.subr.bf16.mxu0 0
      %1826 = vmatpush2.bf16.msra.mxu0 0
      %1827 = vmatprep.subr.bf16.mxu0 0
      %1828 = vmatpush2.bf16.msra.mxu0 0
      %1829 = vmatprep.subr.bf16.mxu0 0
      %1830 = vmatpush2.bf16.msra.mxu0 0
      %1831 = vmatprep.subr.bf16.mxu0 0
      %1832 = vmatpush2.bf16.msra.mxu0 0
      %1833 = vmatprep.subr.bf16.mxu0 0
      %1834 = vmatpush2.bf16.msra.mxu0 0
      %1835 = vmatprep.subr.bf16.mxu0 0
      %1836 = vmatpush2.bf16.msra.mxu0 0
      %1837 = vmatprep.subr.bf16.mxu0 0
      %1838 = vmatpush2.bf16.msra.mxu0 0
      %1839 = vmatprep.subr.bf16.mxu0 0
      %1840 = vmatpush2.bf16.msra.mxu0 0
      %1841 = vmatprep.mubr.bf16.mxu0 0
      %1842 = vmatmul.mubr.bf16.gmra.mxu0 %v1223
      %v1843 = vpop.f32.mrf.mxu0
      %v1844 = vadd.f32 %v1779, %v1843
      %v1845 = vpop.f32.mrf.mxu0
      %v1846 = vpop.f32.mrf.mxu0
      %v1847 = vadd.f32 %v1782, %v1846
      %v1848 = vpop.f32.mrf.mxu0
      %1849 = vmatprep.mubr.bf16.mxu0 0
      %1850 = vmatmul.mubr.bf16.gmra.mxu0 %v1224
      %v1851 = vpop.f32.mrf.mxu0
      %v1852 = vadd.f32 %v1787, %v1851
      %v1853 = vpop.f32.mrf.mxu0
      %v1854 = vpop.f32.mrf.mxu0
      %v1855 = vadd.f32 %v1790, %v1854
      %v1856 = vpop.f32.mrf.mxu0
      %1857 = vmatprep.mubr.bf16.mxu0 0
      %1858 = vmatmul.mubr.bf16.gmra.mxu0 %v1225
      %v1859 = vpop.f32.mrf.mxu0
      %v1860 = vadd.f32 %v1795, %v1859
      %v1861 = vpop.f32.mrf.mxu0
      %v1862 = vpop.f32.mrf.mxu0
      %v1863 = vadd.f32 %v1798, %v1862
      %v1864 = vpop.f32.mrf.mxu0
      %1865 = vmatprep.mubr.bf16.mxu0 0
      %1866 = vmatmul.mubr.bf16.gmra.mxu0 %v1226
      %v1867 = vpop.f32.mrf.mxu0
      %v1868 = vadd.f32 %v1803, %v1867
      %v1869 = vpop.f32.mrf.mxu0
      %v1870 = vpop.f32.mrf.mxu0
      %v1871 = vadd.f32 %v1806, %v1870
      %v1872 = vpop.f32.mrf.mxu0
      %1873 = vdwg.mxu0
      %s1874 = scalar_lea.vmem %s6, 384
      %v1875 = vld [vmem:[%s1874] sm:$0xf]
      %v1876 = vld [vmem:[%s1874 + $0x4] sm:$0xf]
      %v1877 = vld [vmem:[%s1874 + $0x8] sm:$0xf]
      %v1878 = vld [vmem:[%s1874 + $0xc] sm:$0xf]
      %v1879 = vld [vmem:[%s1874 + $0x10] sm:$0xf]
      %v1880 = vld [vmem:[%s1874 + $0x14] sm:$0xf]
      %v1881 = vld [vmem:[%s1874 + $0x18] sm:$0xf]
      %v1882 = vld [vmem:[%s1874 + $0x1c] sm:$0xf]
      %v1883 = vld [vmem:[%s1874 + $0x20] sm:$0xf]
      %v1884 = vld [vmem:[%s1874 + $0x24] sm:$0xf]
      %v1885 = vld [vmem:[%s1874 + $0x28] sm:$0xf]
      %v1886 = vld [vmem:[%s1874 + $0x2c] sm:$0xf]
      %v1887 = vld [vmem:[%s1874 + $0x30] sm:$0xf]
      %v1888 = vld [vmem:[%s1874 + $0x34] sm:$0xf]
      %v1889 = vld [vmem:[%s1874 + $0x38] sm:$0xf]
      %v1890 = vld [vmem:[%s1874 + $0x3c] sm:$0xf]
      %v1891 = vld [vmem:[%s1874 + $0x40] sm:$0xf]
      %v1892 = vld [vmem:[%s1874 + $0x44] sm:$0xf]
      %v1893 = vld [vmem:[%s1874 + $0x48] sm:$0xf]
      %v1894 = vld [vmem:[%s1874 + $0x4c] sm:$0xf]
      %v1895 = vld [vmem:[%s1874 + $0x50] sm:$0xf]
      %v1896 = vld [vmem:[%s1874 + $0x54] sm:$0xf]
      %v1897 = vld [vmem:[%s1874 + $0x58] sm:$0xf]
      %v1898 = vld [vmem:[%s1874 + $0x5c] sm:$0xf]
      %v1899 = vld [vmem:[%s1874 + $0x60] sm:$0xf]
      %v1900 = vld [vmem:[%s1874 + $0x64] sm:$0xf]
      %v1901 = vld [vmem:[%s1874 + $0x68] sm:$0xf]
      %v1902 = vld [vmem:[%s1874 + $0x6c] sm:$0xf]
      %v1903 = vld [vmem:[%s1874 + $0x70] sm:$0xf]
      %v1904 = vld [vmem:[%s1874 + $0x74] sm:$0xf]
      %v1905 = vld [vmem:[%s1874 + $0x78] sm:$0xf]
      %v1906 = vld [vmem:[%s1874 + $0x7c] sm:$0xf]
      %v1907 = vld [vmem:[%s1874 + $0x80] sm:$0xf]
      %v1908 = vld [vmem:[%s1874 + $0x84] sm:$0xf]
      %v1909 = vld [vmem:[%s1874 + $0x88] sm:$0xf]
      %v1910 = vld [vmem:[%s1874 + $0x8c] sm:$0xf]
      %v1911 = vld [vmem:[%s1874 + $0x90] sm:$0xf]
      %v1912 = vld [vmem:[%s1874 + $0x94] sm:$0xf]
      %v1913 = vld [vmem:[%s1874 + $0x98] sm:$0xf]
      %v1914 = vld [vmem:[%s1874 + $0x9c] sm:$0xf]
      %v1915 = vld [vmem:[%s1874 + $0xa0] sm:$0xf]
      %v1916 = vld [vmem:[%s1874 + $0xa4] sm:$0xf]
      %v1917 = vld [vmem:[%s1874 + $0xa8] sm:$0xf]
      %v1918 = vld [vmem:[%s1874 + $0xac] sm:$0xf]
      %v1919 = vld [vmem:[%s1874 + $0xb0] sm:$0xf]
      %v1920 = vld [vmem:[%s1874 + $0xb4] sm:$0xf]
      %v1921 = vld [vmem:[%s1874 + $0xb8] sm:$0xf]
      %v1922 = vld [vmem:[%s1874 + $0xbc] sm:$0xf]
      %v1971 = vunpack.c.l.b16 %v1875
      %v1972 = vunpack.c.l.b16 %v1876
      %v1973 = vunpack.c.l.b16 %v1877
      %v1974 = vunpack.c.l.b16 %v1878
      %v1975 = vunpack.c.l.b16 %v1879
      %v1976 = vunpack.c.l.b16 %v1880
      %v1977 = vunpack.c.l.b16 %v1881
      %v1978 = vunpack.c.l.b16 %v1882
      %v1979 = vunpack.c.l.b16 %v1883
      %v1980 = vunpack.c.l.b16 %v1884
      %v1981 = vunpack.c.l.b16 %v1885
      %v1982 = vunpack.c.l.b16 %v1886
      %v1983 = vunpack.c.l.b16 %v1887
      %v1984 = vunpack.c.l.b16 %v1888
      %v1985 = vunpack.c.l.b16 %v1889
      %v1986 = vunpack.c.l.b16 %v1890
      %v1987 = vunpack.c.l.b16 %v1891
      %v1988 = vunpack.c.l.b16 %v1892
      %v1989 = vunpack.c.l.b16 %v1893
      %v1990 = vunpack.c.l.b16 %v1894
      %v1991 = vunpack.c.l.b16 %v1895
      %v1992 = vunpack.c.l.b16 %v1896
      %v1993 = vunpack.c.l.b16 %v1897
      %v1994 = vunpack.c.l.b16 %v1898
      %v1995 = vunpack.c.l.b16 %v1899
      %v1996 = vunpack.c.l.b16 %v1900
      %v1997 = vunpack.c.l.b16 %v1901
      %v1998 = vunpack.c.l.b16 %v1902
      %v1999 = vunpack.c.l.b16 %v1903
      %v2000 = vunpack.c.l.b16 %v1904
      %v2001 = vunpack.c.l.b16 %v1905
      %v2002 = vunpack.c.l.b16 %v1906
      %v2003 = vunpack.c.l.b16 %v1907
      %v2004 = vunpack.c.l.b16 %v1908
      %v2005 = vunpack.c.l.b16 %v1909
      %v2006 = vunpack.c.l.b16 %v1910
      %v2007 = vunpack.c.l.b16 %v1911
      %v2008 = vunpack.c.l.b16 %v1912
      %v2009 = vunpack.c.l.b16 %v1913
      %v2010 = vunpack.c.l.b16 %v1914
      %v2011 = vunpack.c.l.b16 %v1915
      %v2012 = vunpack.c.l.b16 %v1916
      %v2013 = vunpack.c.l.b16 %v1917
      %v2014 = vunpack.c.l.b16 %v1918
      %v2015 = vunpack.c.l.b16 %v1919
      %v2016 = vunpack.c.l.b16 %v1920
      %v2017 = vunpack.c.l.b16 %v1921
      %v2018 = vunpack.c.l.b16 %v1922
      %v2019 = vpack.c.b16 %v1972, %v1971
      %v2020 = vpack.c.b16 %v1974, %v1973
      %v2021 = vpack.c.b16 %v1976, %v1975
      %v2022 = vpack.c.b16 %v1978, %v1977
      %v2023 = vpack.c.b16 %v1980, %v1979
      %v2024 = vpack.c.b16 %v1982, %v1981
      %v2025 = vpack.c.b16 %v1984, %v1983
      %v2026 = vpack.c.b16 %v1986, %v1985
      %v2027 = vpack.c.b16 %v1988, %v1987
      %v2028 = vpack.c.b16 %v1990, %v1989
      %v2029 = vpack.c.b16 %v1992, %v1991
      %v2030 = vpack.c.b16 %v1994, %v1993
      %v2031 = vpack.c.b16 %v1996, %v1995
      %v2032 = vpack.c.b16 %v1998, %v1997
      %v2033 = vpack.c.b16 %v2000, %v1999
      %v2034 = vpack.c.b16 %v2002, %v2001
      %v2035 = vpack.c.b16 %v2004, %v2003
      %v2036 = vpack.c.b16 %v2006, %v2005
      %v2037 = vpack.c.b16 %v2008, %v2007
      %v2038 = vpack.c.b16 %v2010, %v2009
      %v2039 = vpack.c.b16 %v2012, %v2011
      %v2040 = vpack.c.b16 %v2014, %v2013
      %v2041 = vpack.c.b16 %v2016, %v2015
      %v2042 = vpack.c.b16 %v2018, %v2017
      %2067 = vmatprep.subr.bf16.mxu0 0
      %2068 = vmatpush1.bf16.msra.mxu0 %v2026
      %2069 = vmatprep.subr.bf16.mxu0 0
      %2070 = vmatpush1.bf16.msra.mxu0 %v2025
      %2071 = vmatprep.subr.bf16.mxu0 0
      %2072 = vmatpush1.bf16.msra.mxu0 %v2024
      %2073 = vmatprep.subr.bf16.mxu0 0
      %2074 = vmatpush1.bf16.msra.mxu0 %v2023
      %2075 = vmatprep.subr.bf16.mxu0 0
      %2076 = vmatpush1.bf16.msra.mxu0 %v2022
      %2077 = vmatprep.subr.bf16.mxu0 0
      %2078 = vmatpush1.bf16.msra.mxu0 %v2021
      %2079 = vmatprep.subr.bf16.mxu0 0
      %2080 = vmatpush1.bf16.msra.mxu0 %v2020
      %2081 = vmatprep.subr.bf16.mxu0 0
      %2082 = vmatpush1.bf16.msra.mxu0 %v2019
      %2083 = vmatprep.subr.bf16.mxu0 0
      %2084 = vmatpush2.bf16.msra.mxu0 %v2034
      %2085 = vmatprep.subr.bf16.mxu0 0
      %2086 = vmatpush2.bf16.msra.mxu0 %v2033
      %2087 = vmatprep.subr.bf16.mxu0 0
      %2088 = vmatpush2.bf16.msra.mxu0 %v2032
      %2089 = vmatprep.subr.bf16.mxu0 0
      %2090 = vmatpush2.bf16.msra.mxu0 %v2031
      %2091 = vmatprep.subr.bf16.mxu0 0
      %2092 = vmatpush2.bf16.msra.mxu0 %v2030
      %2093 = vmatprep.subr.bf16.mxu0 0
      %2094 = vmatpush2.bf16.msra.mxu0 %v2029
      %2095 = vmatprep.subr.bf16.mxu0 0
      %2096 = vmatpush2.bf16.msra.mxu0 %v2028
      %2097 = vmatprep.subr.bf16.mxu0 0
      %2098 = vmatpush2.bf16.msra.mxu0 %v2027
      %2099 = vmatprep.mubr.bf16.mxu0 %v1219
      %2100 = vmatmul.mubr.bf16.gmra.mxu0 %v1213
      %v2101 = vpop.f32.mrf.mxu0
      %v2102 = vadd.f32 0.0, %v2101
      %v2103 = vpop.f32.mrf.mxu0
      %v2104 = vpop.f32.mrf.mxu0
      %v2105 = vadd.f32 0.0, %v2104
      %v2106 = vpop.f32.mrf.mxu0
      %2107 = vmatprep.mubr.bf16.mxu0 %v1220
      %2108 = vmatmul.mubr.bf16.gmra.mxu0 %v1214
      %v2109 = vpop.f32.mrf.mxu0
      %v2110 = vadd.f32 0.0, %v2109
      %v2111 = vpop.f32.mrf.mxu0
      %v2112 = vpop.f32.mrf.mxu0
      %v2113 = vadd.f32 0.0, %v2112
      %v2114 = vpop.f32.mrf.mxu0
      %2115 = vmatprep.mubr.bf16.mxu0 %v1221
      %2116 = vmatmul.mubr.bf16.gmra.mxu0 %v1215
      %v2117 = vpop.f32.mrf.mxu0
      %v2118 = vadd.f32 0.0, %v2117
      %v2119 = vpop.f32.mrf.mxu0
      %v2120 = vpop.f32.mrf.mxu0
      %v2121 = vadd.f32 0.0, %v2120
      %v2122 = vpop.f32.mrf.mxu0
      %2123 = vmatprep.mubr.bf16.mxu0 %v1222
      %2124 = vmatmul.mubr.bf16.gmra.mxu0 %v1216
      %v2125 = vpop.f32.mrf.mxu0
      %v2126 = vadd.f32 0.0, %v2125
      %v2127 = vpop.f32.mrf.mxu0
      %v2128 = vpop.f32.mrf.mxu0
      %v2129 = vadd.f32 0.0, %v2128
      %v2130 = vpop.f32.mrf.mxu0
      %2131 = vdwg.mxu0
      %2132 = vmatprep.subr.bf16.mxu0 0
      %2133 = vmatpush1.bf16.msra.mxu0 %v2042
      %2134 = vmatprep.subr.bf16.mxu0 0
      %2135 = vmatpush1.bf16.msra.mxu0 %v2041
      %2136 = vmatprep.subr.bf16.mxu0 0
      %2137 = vmatpush1.bf16.msra.mxu0 %v2040
      %2138 = vmatprep.subr.bf16.mxu0 0
      %2139 = vmatpush1.bf16.msra.mxu0 %v2039
      %2140 = vmatprep.subr.bf16.mxu0 0
      %2141 = vmatpush1.bf16.msra.mxu0 %v2038
      %2142 = vmatprep.subr.bf16.mxu0 0
      %2143 = vmatpush1.bf16.msra.mxu0 %v2037
      %2144 = vmatprep.subr.bf16.mxu0 0
      %2145 = vmatpush1.bf16.msra.mxu0 %v2036
      %2146 = vmatprep.subr.bf16.mxu0 0
      %2147 = vmatpush1.bf16.msra.mxu0 %v2035
      %2148 = vmatprep.subr.bf16.mxu0 0
      %2149 = vmatpush2.bf16.msra.mxu0 0
      %2150 = vmatprep.subr.bf16.mxu0 0
      %2151 = vmatpush2.bf16.msra.mxu0 0
      %2152 = vmatprep.subr.bf16.mxu0 0
      %2153 = vmatpush2.bf16.msra.mxu0 0
      %2154 = vmatprep.subr.bf16.mxu0 0
      %2155 = vmatpush2.bf16.msra.mxu0 0
      %2156 = vmatprep.subr.bf16.mxu0 0
      %2157 = vmatpush2.bf16.msra.mxu0 0
      %2158 = vmatprep.subr.bf16.mxu0 0
      %2159 = vmatpush2.bf16.msra.mxu0 0
      %2160 = vmatprep.subr.bf16.mxu0 0
      %2161 = vmatpush2.bf16.msra.mxu0 0
      %2162 = vmatprep.subr.bf16.mxu0 0
      %2163 = vmatpush2.bf16.msra.mxu0 0
      %2164 = vmatprep.mubr.bf16.mxu0 0
      %2165 = vmatmul.mubr.bf16.gmra.mxu0 %v1225
      %v2166 = vpop.f32.mrf.mxu0
      %v2167 = vadd.f32 %v2102, %v2166
      %v2168 = vpop.f32.mrf.mxu0
      %v2169 = vpop.f32.mrf.mxu0
      %v2170 = vadd.f32 %v2105, %v2169
      %v2171 = vpop.f32.mrf.mxu0
      %2172 = vmatprep.mubr.bf16.mxu0 0
      %2173 = vmatmul.mubr.bf16.gmra.mxu0 %v1226
      %v2174 = vpop.f32.mrf.mxu0
      %v2175 = vadd.f32 %v2110, %v2174
      %v2176 = vpop.f32.mrf.mxu0
      %v2177 = vpop.f32.mrf.mxu0
      %v2178 = vadd.f32 %v2113, %v2177
      %v2179 = vpop.f32.mrf.mxu0
      %2180 = vmatprep.mubr.bf16.mxu0 0
      %2181 = vmatmul.mubr.bf16.gmra.mxu0 %v1227
      %v2182 = vpop.f32.mrf.mxu0
      %v2183 = vadd.f32 %v2118, %v2182
      %v2184 = vpop.f32.mrf.mxu0
      %v2185 = vpop.f32.mrf.mxu0
      %v2186 = vadd.f32 %v2121, %v2185
      %v2187 = vpop.f32.mrf.mxu0
      %2188 = vmatprep.mubr.bf16.mxu0 0
      %2189 = vmatmul.mubr.bf16.gmra.mxu0 %v1228
      %v2190 = vpop.f32.mrf.mxu0
      %v2191 = vadd.f32 %v2126, %v2190
      %v2192 = vpop.f32.mrf.mxu0
      %v2193 = vpop.f32.mrf.mxu0
      %v2194 = vadd.f32 %v2129, %v2193
      %v2195 = vpop.f32.mrf.mxu0
      %2196 = vdwg.mxu0
      %v2197 = vadd.f32 %v1844, %v2167
      %v2198 = vadd.f32 %v1847, %v2170
      %v2199 = vadd.f32 %v1852, %v2175
      %v2200 = vadd.f32 %v1855, %v2178
      %v2201 = vadd.f32 %v1860, %v2183
      %v2202 = vadd.f32 %v1863, %v2186
      %v2203 = vadd.f32 %v1868, %v2191
      %v2204 = vadd.f32 %v1871, %v2194
      %v2205 = vld [vmem:[%s7] sm:$0x1]
      %v2206 = vld [vmem:[%s8] sm:$0x1]
      %v2208 = vlaneseq
      %v2209 = vshrl.u32 %v2208, 7
      %v2210 = vsub.s32 0, %v2209
      %v2211 = vrot.slane %v2205, %v2210
      %v2213 = vmul.f32 %v2197, %v2211
      %v2214 = vmul.f32 %v2198, %v2211
      %v2215 = vmul.f32 %v2199, %v2211
      %v2216 = vmul.f32 %v2200, %v2211
      %v2217 = vmul.f32 %v2201, %v2211
      %v2218 = vmul.f32 %v2202, %v2211
      %v2219 = vmul.f32 %v2203, %v2211
      %v2220 = vmul.f32 %v2204, %v2211
      %v2222 = vlaneseq
      %v2223 = vshrl.u32 %v2222, 7
      %v2224 = vsub.s32 0, %v2223
      %v2225 = vrot.slane %v2206, %v2224
      %v2227 = vadd.f32 %v2213, %v2225
      %v2228 = vadd.f32 %v2214, %v2225
      %v2229 = vadd.f32 %v2215, %v2225
      %v2230 = vadd.f32 %v2216, %v2225
      %v2231 = vadd.f32 %v2217, %v2225
      %v2232 = vadd.f32 %v2218, %v2225
      %v2233 = vadd.f32 %v2219, %v2225
      %v2234 = vadd.f32 %v2220, %v2225
      %v2235 = vsub.f32 0.0, %v2227
      %v2236 = vsub.f32 0.0, %v2228
      %v2237 = vsub.f32 0.0, %v2229
      %v2238 = vsub.f32 0.0, %v2230
      %v2239 = vsub.f32 0.0, %v2231
      %v2240 = vsub.f32 0.0, %v2232
      %v2241 = vsub.f32 0.0, %v2233
      %v2242 = vsub.f32 0.0, %v2234
      %v2243 = vmul.f32 %v2235, 1.442695
      %v2244 = vpow.pop %v2243
      %v2245 = vmul.f32 %v2236, 1.442695
      %v2246 = vpow.pop %v2245
      %v2247 = vmul.f32 %v2237, 1.442695
      %v2248 = vpow.pop %v2247
      %v2249 = vmul.f32 %v2238, 1.442695
      %v2250 = vpow.pop %v2249
      %v2251 = vmul.f32 %v2239, 1.442695
      %v2252 = vpow.pop %v2251
      %v2253 = vmul.f32 %v2240, 1.442695
      %v2254 = vpow.pop %v2253
      %v2255 = vmul.f32 %v2241, 1.442695
      %v2256 = vpow.pop %v2255
      %v2257 = vmul.f32 %v2242, 1.442695
      %v2258 = vpow.pop %v2257
      %v2259 = vadd.f32 %v2244, 1.0
      %v2260 = vadd.f32 %v2246, 1.0
      %v2261 = vadd.f32 %v2248, 1.0
      %v2262 = vadd.f32 %v2250, 1.0
      %v2263 = vadd.f32 %v2252, 1.0
      %v2264 = vadd.f32 %v2254, 1.0
      %v2265 = vadd.f32 %v2256, 1.0
      %v2266 = vadd.f32 %v2258, 1.0
      %v2267 = vrcp.pop %v2259
      %v2268 = vrcp.pop %v2260
      %v2269 = vrcp.pop %v2261
      %v2270 = vrcp.pop %v2262
      %v2271 = vrcp.pop %v2263
      %v2272 = vrcp.pop %v2264
      %v2273 = vrcp.pop %v2265
      %v2274 = vrcp.pop %v2266
      %v2275 = vmul.f32 %v2227, %v2267
      %v2276 = vmul.f32 %v2228, %v2268
      %v2277 = vmul.f32 %v2229, %v2269
      %v2278 = vmul.f32 %v2230, %v2270
      %v2279 = vmul.f32 %v2231, %v2271
      %v2280 = vmul.f32 %v2232, %v2272
      %v2281 = vmul.f32 %v2233, %v2273
      %v2282 = vmul.f32 %v2234, %v2274
      %v2283 = vunpack.c.l.bf16 %v501
      %v2284 = vunpack.c.l.bf16 %v502
      %v2285 = vunpack.c.l.bf16 %v503
      %v2286 = vunpack.c.l.bf16 %v504
      %v2287 = vunpack.c.l.bf16 %v505
      %v2288 = vunpack.c.l.bf16 %v506
      %v2289 = vunpack.c.l.bf16 %v507
      %v2290 = vunpack.c.l.bf16 %v508
      %v2291 = vadd.f32 %v2275, %v2283
      %v2292 = vadd.f32 %v2276, %v2284
      %v2293 = vadd.f32 %v2277, %v2285
      %v2294 = vadd.f32 %v2278, %v2286
      %v2295 = vadd.f32 %v2279, %v2287
      %v2296 = vadd.f32 %v2280, %v2288
      %v2297 = vadd.f32 %v2281, %v2289
      %v2298 = vadd.f32 %v2282, %v2290
      %v2299 = vpack.c.bf16 %v2292, %v2291
      %v2300 = vpack.c.bf16 %v2294, %v2293
      %v2301 = vpack.c.bf16 %v2296, %v2295
      %v2302 = vpack.c.bf16 %v2298, %v2297
      %v2307 = vunpack.c.l.b16 %v2299
      %v2308 = vunpack.c.h.b16 %v2299
      %v2309 = vunpack.c.l.b16 %v2300
      %v2310 = vunpack.c.h.b16 %v2300
      %v2311 = vunpack.c.l.b16 %v2301
      %v2312 = vunpack.c.h.b16 %v2301
      %v2313 = vunpack.c.l.b16 %v2302
      %v2314 = vunpack.c.h.b16 %v2302
      %v2315 = vpack.c.b16 %v2307, %v2307
      %v2316 = vpack.c.b16 %v2308, %v2308
      %v2317 = vpack.c.b16 %v2309, %v2309
      %v2318 = vpack.c.b16 %v2310, %v2310
      %v2319 = vpack.c.b16 %v2311, %v2311
      %v2320 = vpack.c.b16 %v2312, %v2312
      %v2321 = vpack.c.b16 %v2313, %v2313
      %v2322 = vpack.c.b16 %v2314, %v2314
      %2331 = vst [vmem:[%s496] sm:$0xf] %v2315
      %2332 = vst [vmem:[%s496 + $0x4] sm:$0xf] %v2316
      %2333 = vst [vmem:[%s496 + $0x8] sm:$0xf] %v2317
      %2334 = vst [vmem:[%s496 + $0xc] sm:$0xf] %v2318
      %2335 = vst [vmem:[%s496 + $0x10] sm:$0xf] %v2319
      %2336 = vst [vmem:[%s496 + $0x14] sm:$0xf] %v2320
      %2337 = vst [vmem:[%s496 + $0x18] sm:$0xf] %v2321
      %2338 = vst [vmem:[%s496 + $0x1c] sm:$0xf] %v2322
      %s2339 = smul.u32 %s24, 4
      %s2340 = sadd.s32 %s2339, %s25
      %s2341 = smul.u32 8, %s2340
      %p2342 = scmp.lt.s32.totalorder %s2341, 63
      %s2343 = scalar_select %p2342, %s2341, 63
      %s2344 = smul.addr %s2343, 4
      %s2345 = scalar_lea.vmem %s9, %s2344
      // Predicated region
      $region57: #{csp_bottleneck_forward.4} parent=55 // pred_check
        %p2346 = pneg %p286
      $region58: #{csp_bottleneck_forward.4} parent=55 // pred_check_branch
        %2348 = sbr.rel (%p2346) target = $region60
      $region59: #{csp_bottleneck_forward.4} parent=55 // pred_region
        %s2349 = smul.u32 %s24, 4
        %s2350 = sadd.s32 %s2349, %s25
        %s2351 = smul.u32 8, %s2350
      $region60: #{csp_bottleneck_forward.4} parent=55 // pred_fallthru
        _
    $region56: #{csp_bottleneck_forward.4} parent=5 // pred_fallthru
      _
    %p2352 = scmp.le.s32.totalorder 2, %s15
    // Predicated region
    $region61: #{csp_bottleneck_forward.4} parent=5 // pred_check
      %p2353 = pneg %p2352
    $region62: #{csp_bottleneck_forward.4} parent=5 // pred_check_branch
      %2355 = sbr.rel (%p2353) target = $region64
    $region63: #{csp_bottleneck_forward.4} parent=5 // pred_region
      %s2356 = ssub.s32 %s15, 2
      // Predicated region
      $region65: #{csp_bottleneck_forward.4} parent=63 // pred_check
        %p2357 = pneg %p292
      $region66: #{csp_bottleneck_forward.4} parent=63 // pred_check_branch
        %2359 = sbr.rel (%p2357) target = $region68
      $region67: #{csp_bottleneck_forward.4} parent=63 // pred_region
        %s2360 = smul.u32 %s26, 4
        %s2361 = sadd.s32 %s2360, %s27
        %s2362 = smul.u32 8, %s2361
        %p2363 = scmp.lt.s32.totalorder %s2362, 63
        %s2364 = scalar_select %p2363, %s2362, 63
        %s2365 = smul.addr %s2364, 4
        %s2366 = scalar_lea.vmem %s9, %s2365
      $region68: #{csp_bottleneck_forward.4} parent=63 // pred_fallthru
        _
    $region64: #{csp_bottleneck_forward.4} parent=5 // pred_fallthru
      _
  $region6: #{csp_bottleneck_forward.4} parent=0 // loop_footer
    %s19 = sadd.s32 1, %s15
  $region7: #{csp_bottleneck_forward.4} parent=0 // loop_footer_branch
    %14 = sbr.rel target = $region3
  $region8: #{csp_bottleneck_forward.4} parent=0 // loop_exit
    _

// kernel: csp_bottleneck_forward.5
$region0: #{csp_bottleneck_forward.5}
  #allocation0 [shape = 'u32[]', space=smem, size = 0x4, offset = 0x4, fixed_abs, tag = 'smem constant byte address 0x4 - core index']
  #allocation1 [shape = 'u32[144,128]{1,0:T(1,128)}', space=vmem, size = 0x12000, scoped, tag = 'internal scratch']
  %s0 = inlined_call_operand.vmem [shape: bf16[512,128], index: 0, kind: input, shape index: {}]
  %s1 = inlined_call_operand.vmem [shape: bf16[512,128], index: 1, kind: input, shape index: {}]
  %s2 = inlined_call_operand.vmem [shape: bf16[256,4], index: 2, kind: input, shape index: {}]
  %s3 = inlined_call_operand.vmem [shape: f32[1,4], index: 3, kind: input, shape index: {}]
  %s4 = inlined_call_operand.vmem [shape: f32[1,4], index: 4, kind: input, shape index: {}]
  %s5 = inlined_call_operand.vmem [shape: f32[512,4], index: 5, kind: output, shape index: {}]
  %s6 = sld [smem:[#allocation0]]
  $region53: #{csp_bottleneck_forward.5} parent=0
    _
  %s8 = ssub.s32 1, %s6
  %s9 = scalar_select 0, %s8, %s6
  loop: start=0, step=1, limit=10
  $region2: #{csp_bottleneck_forward.5} parent=0 // loop_pre_header
    _
  $region3: #{csp_bottleneck_forward.5} parent=0 // loop_header
    %s11 = sphi 0, %s15
    %p12 = scmp.ge.s32.totalorder %s11, 10
    %s21 = sphi 0, %s23
    %s24 = sphi 0, %s21
    %s25 = sphi 0, %s24
    %s41 = sphi 0, %s25
    %s47 = sphi 0, %s49
    %s50 = sphi 0, %s47
    %s51 = sphi 0, %s50
    %s67 = sphi 0, %s51
    %s71 = sphi 0, %s71
    %s73 = sphi 0, %s71
    %s74 = sphi 0, %s73
    %s88 = sphi 0, %s74
    %s92 = sphi 0, %s92
    %s94 = sphi 0, %s92
    %s95 = sphi 0, %s94
    %s109 = sphi 0, %s95
    %s113 = sphi 0, %s113
    %s115 = sphi 0, %s113
    %s116 = sphi 0, %s115
    %s130 = sphi 0, %s116
    %s136 = sphi 0, %s138
    %s139 = sphi 0, %s136
    %s140 = sphi 0, %s139
    %s156 = sphi 0, %s140
  $region4: #{csp_bottleneck_forward.5} parent=0 // loop_header_branch
    %14 = sbr.rel (%p12) target = $region8
  $region5: #{csp_bottleneck_forward.5} parent=0 // loop_body
    %s16 = ssub.s32 %s11, 1
    %s17 = ssub.s32 %s11, 2
    %s18 = sadd.s32 %s11, 1
    %s19 = ssub.s32 %s11, %s18
    %p20 = scmp.eq.s32.totalorder %s19, 0
    %s22 = sadd.s32 %s21, 1
    %s23 = scalar_select %p20, %s21, %s22
    %p26 = pneg %p20
    %p27 = scmp.eq.s32.totalorder %s11, 7
    %p28 = por %p26, %p27
    %p29 = scmp.ne.s32.totalorder %s21, %s24
    %p30 = scmp.eq.s32.totalorder %s11, 0
    %p31 = por %p29, %p30
    %p32 = scmp.ne.s32.totalorder %s21, %s24
    %p33 = scmp.eq.s32.totalorder %s16, 7
    %p34 = por %p32, %p33
    %p35 = scmp.ne.s32.totalorder %s24, %s25
    %p36 = scmp.eq.s32.totalorder %s16, 0
    %p37 = por %p35, %p36
    %p38 = scmp.ne.s32.totalorder %s24, %s25
    %p39 = scmp.eq.s32.totalorder %s17, 7
    %p40 = por %p38, %p39
    %p42 = scmp.ne.s32.totalorder %s25, %s41
    %p43 = scmp.eq.s32.totalorder %s17, 0
    %p44 = por %p42, %p43
    %s45 = ssub.s32 %s11, %s18
    %p46 = scmp.eq.s32.totalorder %s45, 0
    %s48 = sadd.s32 %s47, 1
    %s49 = scalar_select %p46, %s47, %s48
    %p52 = pneg %p46
    %p53 = scmp.eq.s32.totalorder %s11, 7
    %p54 = por %p52, %p53
    %p55 = scmp.ne.s32.totalorder %s47, %s50
    %p56 = scmp.eq.s32.totalorder %s11, 0
    %p57 = por %p55, %p56
    %p58 = scmp.ne.s32.totalorder %s47, %s50
    %p59 = scmp.eq.s32.totalorder %s16, 7
    %p60 = por %p58, %p59
    %p61 = scmp.ne.s32.totalorder %s50, %s51
    %p62 = scmp.eq.s32.totalorder %s16, 0
    %p63 = por %p61, %p62
    %p64 = scmp.ne.s32.totalorder %s50, %s51
    %p65 = scmp.eq.s32.totalorder %s17, 7
    %p66 = por %p64, %p65
    %p68 = scmp.ne.s32.totalorder %s51, %s67
    %p69 = scmp.eq.s32.totalorder %s17, 0
    %p70 = por %p68, %p69
    %s72 = sadd.s32 %s71, 1
    %p75 = scmp.eq.s32.totalorder %s11, 7
    %p76 = scmp.ne.s32.totalorder %s71, %s73
    %p77 = scmp.eq.s32.totalorder %s11, 0
    %p78 = por %p76, %p77
    %p79 = scmp.ne.s32.totalorder %s71, %s73
    %p80 = scmp.eq.s32.totalorder %s16, 7
    %p81 = por %p79, %p80
    %p82 = scmp.ne.s32.totalorder %s73, %s74
    %p83 = scmp.eq.s32.totalorder %s16, 0
    %p84 = por %p82, %p83
    %p85 = scmp.ne.s32.totalorder %s73, %s74
    %p86 = scmp.eq.s32.totalorder %s17, 7
    %p87 = por %p85, %p86
    %p89 = scmp.ne.s32.totalorder %s74, %s88
    %p90 = scmp.eq.s32.totalorder %s17, 0
    %p91 = por %p89, %p90
    %s93 = sadd.s32 %s92, 1
    %p96 = scmp.eq.s32.totalorder %s11, 7
    %p97 = scmp.ne.s32.totalorder %s92, %s94
    %p98 = scmp.eq.s32.totalorder %s11, 0
    %p99 = por %p97, %p98
    %p100 = scmp.ne.s32.totalorder %s92, %s94
    %p101 = scmp.eq.s32.totalorder %s16, 7
    %p102 = por %p100, %p101
    %p103 = scmp.ne.s32.totalorder %s94, %s95
    %p104 = scmp.eq.s32.totalorder %s16, 0
    %p105 = por %p103, %p104
    %p106 = scmp.ne.s32.totalorder %s94, %s95
    %p107 = scmp.eq.s32.totalorder %s17, 7
    %p108 = por %p106, %p107
    %p110 = scmp.ne.s32.totalorder %s95, %s109
    %p111 = scmp.eq.s32.totalorder %s17, 0
    %p112 = por %p110, %p111
    %s114 = sadd.s32 %s113, 1
    %p117 = scmp.eq.s32.totalorder %s11, 7
    %p118 = scmp.ne.s32.totalorder %s113, %s115
    %p119 = scmp.eq.s32.totalorder %s11, 0
    %p120 = por %p118, %p119
    %p121 = scmp.ne.s32.totalorder %s113, %s115
    %p122 = scmp.eq.s32.totalorder %s16, 7
    %p123 = por %p121, %p122
    %p124 = scmp.ne.s32.totalorder %s115, %s116
    %p125 = scmp.eq.s32.totalorder %s16, 0
    %p126 = por %p124, %p125
    %p127 = scmp.ne.s32.totalorder %s115, %s116
    %p128 = scmp.eq.s32.totalorder %s17, 7
    %p129 = por %p127, %p128
    %p131 = scmp.ne.s32.totalorder %s116, %s130
    %p132 = scmp.eq.s32.totalorder %s17, 0
    %p133 = por %p131, %p132
    %s134 = ssub.s32 %s11, %s18
    %p135 = scmp.eq.s32.totalorder %s134, 0
    %s137 = sadd.s32 %s136, 1
    %s138 = scalar_select %p135, %s136, %s137
    %p141 = pneg %p135
    %p142 = scmp.eq.s32.totalorder %s11, 7
    %p143 = por %p141, %p142
    %p144 = scmp.ne.s32.totalorder %s136, %s139
    %p145 = scmp.eq.s32.totalorder %s11, 0
    %p146 = por %p144, %p145
    %p147 = scmp.ne.s32.totalorder %s136, %s139
    %p148 = scmp.eq.s32.totalorder %s16, 7
    %p149 = por %p147, %p148
    %p150 = scmp.ne.s32.totalorder %s139, %s140
    %p151 = scmp.eq.s32.totalorder %s16, 0
    %p152 = por %p150, %p151
    %p153 = scmp.ne.s32.totalorder %s139, %s140
    %p154 = scmp.eq.s32.totalorder %s17, 7
    %p155 = por %p153, %p154
    %p157 = scmp.ne.s32.totalorder %s140, %s156
    %p158 = scmp.eq.s32.totalorder %s17, 0
    %p159 = por %p157, %p158
    %p160 = scmp.le.s32.totalorder 1, %s11
    %p161 = scmp.lt.s32.totalorder %s11, 9
    %p162 = pnand %p160, %p161
    %p163 = pneg %p162
    // Predicated region
    $region9: #{csp_bottleneck_forward.5} parent=5 // pred_check
      _
    $region10: #{csp_bottleneck_forward.5} parent=5 // pred_check_branch
      %165 = sbr.rel (%p162) target = $region12
    $region11: #{csp_bottleneck_forward.5} parent=5 // pred_region
      %s166 = ssub.s32 %s11, 1
      // Predicated region
      $region13: #{csp_bottleneck_forward.5} parent=11 // pred_check
        %p167 = pneg %p84
      $region14: #{csp_bottleneck_forward.5} parent=11 // pred_check_branch
        %169 = sbr.rel (%p167) target = $region16
      $region15: #{csp_bottleneck_forward.5} parent=11 // pred_region
        _
      $region16: #{csp_bottleneck_forward.5} parent=11 // pred_fallthru
        _
      // Predicated region
      $region17: #{csp_bottleneck_forward.5} parent=11 // pred_check
        %p170 = pneg %p105
      $region18: #{csp_bottleneck_forward.5} parent=11 // pred_check_branch
        %172 = sbr.rel (%p170) target = $region20
      $region19: #{csp_bottleneck_forward.5} parent=11 // pred_region
        _
      $region20: #{csp_bottleneck_forward.5} parent=11 // pred_fallthru
        _
      // Predicated region
      $region21: #{csp_bottleneck_forward.5} parent=11 // pred_check
        %p173 = pneg %p126
      $region22: #{csp_bottleneck_forward.5} parent=11 // pred_check_branch
        %175 = sbr.rel (%p173) target = $region24
      $region23: #{csp_bottleneck_forward.5} parent=11 // pred_region
        _
      $region24: #{csp_bottleneck_forward.5} parent=11 // pred_fallthru
        _
    $region12: #{csp_bottleneck_forward.5} parent=5 // pred_fallthru
      _
    %p176 = scmp.lt.s32.totalorder %s11, 8
    // Predicated region
    $region25: #{csp_bottleneck_forward.5} parent=5 // pred_check
      %p177 = pneg %p176
    $region26: #{csp_bottleneck_forward.5} parent=5 // pred_check_branch
      %179 = sbr.rel (%p177) target = $region28
    $region27: #{csp_bottleneck_forward.5} parent=5 // pred_region
      // Predicated region
      $region29: #{csp_bottleneck_forward.5} parent=27 // pred_check
        %p180 = pneg %p31
      $region30: #{csp_bottleneck_forward.5} parent=27 // pred_check_branch
        %182 = sbr.rel (%p180) target = $region32
      $region31: #{csp_bottleneck_forward.5} parent=27 // pred_region
        %s183 = smul.u32 8, %s11
        %p184 = scmp.lt.s32.totalorder %s183, 63
        %s185 = scalar_select %p184, %s183, 63
        %s186 = smul.addr %s185, 4
        %s187 = scalar_lea.vmem %s0, %s186
        %s188 = smul.u32 8, %s11
      $region32: #{csp_bottleneck_forward.5} parent=27 // pred_fallthru
        _
      // Predicated region
      $region33: #{csp_bottleneck_forward.5} parent=27 // pred_check
        %p189 = pneg %p57
      $region34: #{csp_bottleneck_forward.5} parent=27 // pred_check_branch
        %191 = sbr.rel (%p189) target = $region36
      $region35: #{csp_bottleneck_forward.5} parent=27 // pred_region
        %s192 = smul.u32 8, %s11
        %p193 = scmp.lt.s32.totalorder %s192, 63
        %s194 = scalar_select %p193, %s192, 63
        %s195 = smul.addr %s194, 4
        %s196 = scalar_lea.vmem %s1, %s195
        %s197 = smul.u32 8, %s11
      $region36: #{csp_bottleneck_forward.5} parent=27 // pred_fallthru
        _
    $region28: #{csp_bottleneck_forward.5} parent=5 // pred_fallthru
      _
    %p198 = scmp.le.s32.totalorder 1, %s11
    %p199 = scmp.lt.s32.totalorder %s11, 9
    %p200 = pnand %p198, %p199
    %p201 = pneg %p200
    // Predicated region
    $region37: #{csp_bottleneck_forward.5} parent=5 // pred_check
      _
    $region38: #{csp_bottleneck_forward.5} parent=5 // pred_check_branch
      %203 = sbr.rel (%p200) target = $region40
    $region39: #{csp_bottleneck_forward.5} parent=5 // pred_region
      %s204 = ssub.s32 %s11, 1
      %s205 = smul.u32 8, %s16
      %p206 = scmp.lt.s32.totalorder %s205, 63
      %s207 = scalar_select %p206, %s205, 63
      %s208 = smul.addr %s207, 4
      %s209 = scalar_lea.vmem %s0, %s208
      %p210 = pneg %p37
      %p211 = pneg %p34
      %s212 = smul.u32 8, %s16
      %p213 = scmp.lt.s32.totalorder %s212, 63
      %s214 = scalar_select %p213, %s212, 63
      %s215 = smul.addr %s214, 4
      %s216 = scalar_lea.vmem %s1, %s215
      %p217 = pneg %p63
      %p218 = pneg %p60
      %p219 = pneg %p84
      %p220 = pneg %p81
      %p221 = pneg %p105
      %p222 = pneg %p102
      %p223 = pneg %p126
      %p224 = pneg %p123
      %p225 = pneg %p152
      %p226 = pneg %p149
      %s227 = smul.u32 8, %s16
      %p228 = scmp.lt.s32.totalorder %s227, 63
      %s229 = scalar_select %p228, %s227, 63
      %s230 = smul.addr %s229, 8
      %s231 = scalar_lea.vmem %s5, %s230
      %s232 = smul.u32 8, %s16
      %p233 = scmp.lt.s32.totalorder %s232, 63
      %s234 = scalar_select %p233, %s232, 63
      %s235 = smul.addr %s234, 4
      %s236 = scalar_lea.vmem %s0, %s235
      %s237 = smul.u32 8, %s16
      %s238 = smul.u32 8, %s16
      %p239 = scmp.lt.s32.totalorder %s238, 63
      %s240 = scalar_select %p239, %s238, 63
      %s241 = smul.addr %s240, 4
      %s242 = scalar_lea.vmem %s1, %s241
      %s243 = smul.u32 8, %s16
      %s244 = smul.u32 8, %s16
      %p245 = scmp.lt.s32.totalorder %s244, 63
      %s246 = scalar_select %p245, %s244, 63
      %s247 = smul.addr %s246, 8
      %s248 = scalar_lea.vmem %s5, %s247
      %s249 = smul.u32 8, %s16
      %v251 = vld [vmem:[%s236] sm:$0xf]
      %v252 = vld [vmem:[%s236 + $0x4] sm:$0xf]
      %v253 = vld [vmem:[%s236 + $0x8] sm:$0xf]
      %v254 = vld [vmem:[%s236 + $0xc] sm:$0xf]
      %v255 = vld [vmem:[%s236 + $0x10] sm:$0xf]
      %v256 = vld [vmem:[%s236 + $0x14] sm:$0xf]
      %v257 = vld [vmem:[%s236 + $0x18] sm:$0xf]
      %v258 = vld [vmem:[%s236 + $0x1c] sm:$0xf]
      %v259 = vld [vmem:[%s242] sm:$0xf]
      %v260 = vld [vmem:[%s242 + $0x4] sm:$0xf]
      %v261 = vld [vmem:[%s242 + $0x8] sm:$0xf]
      %v262 = vld [vmem:[%s242 + $0xc] sm:$0xf]
      %v263 = vld [vmem:[%s242 + $0x10] sm:$0xf]
      %v264 = vld [vmem:[%s242 + $0x14] sm:$0xf]
      %v265 = vld [vmem:[%s242 + $0x18] sm:$0xf]
      %v266 = vld [vmem:[%s242 + $0x1c] sm:$0xf]
      %v275 = vunpack.c.l.b16 %v251
      %v276 = vunpack.c.l.b16 %v252
      %v277 = vunpack.c.l.b16 %v253
      %v278 = vunpack.c.l.b16 %v254
      %v279 = vunpack.c.l.b16 %v255
      %v280 = vunpack.c.l.b16 %v256
      %v281 = vunpack.c.l.b16 %v257
      %v282 = vunpack.c.l.b16 %v258
      %v283 = vpack.c.b16 %v276, %v275
      %v284 = vpack.c.b16 %v278, %v277
      %v285 = vpack.c.b16 %v280, %v279
      %v286 = vpack.c.b16 %v282, %v281
      %v299 = vunpack.c.l.b16 %v259
      %v300 = vunpack.c.l.b16 %v260
      %v301 = vunpack.c.l.b16 %v261
      %v302 = vunpack.c.l.b16 %v262
      %v303 = vunpack.c.l.b16 %v263
      %v304 = vunpack.c.l.b16 %v264
      %v305 = vunpack.c.l.b16 %v265
      %v306 = vunpack.c.l.b16 %v266
      %v307 = vpack.c.b16 %v300, %v299
      %v308 = vpack.c.b16 %v302, %v301
      %v309 = vpack.c.b16 %v304, %v303
      %v310 = vpack.c.b16 %v306, %v305
      %v315 = vld [vmem:[%s2] sm:$0xf]
      %v316 = vld [vmem:[%s2 + $0x4] sm:$0xf]
      %v317 = vld [vmem:[%s2 + $0x8] sm:$0xf]
      %v318 = vld [vmem:[%s2 + $0xc] sm:$0xf]
      %v319 = vld [vmem:[%s2 + $0x10] sm:$0xf]
      %v320 = vld [vmem:[%s2 + $0x14] sm:$0xf]
      %v321 = vld [vmem:[%s2 + $0x18] sm:$0xf]
      %v322 = vld [vmem:[%s2 + $0x1c] sm:$0xf]
      %v323 = vld [vmem:[%s2 + $0x20] sm:$0xf]
      %v324 = vld [vmem:[%s2 + $0x24] sm:$0xf]
      %v325 = vld [vmem:[%s2 + $0x28] sm:$0xf]
      %v326 = vld [vmem:[%s2 + $0x2c] sm:$0xf]
      %v327 = vld [vmem:[%s2 + $0x30] sm:$0xf]
      %v328 = vld [vmem:[%s2 + $0x34] sm:$0xf]
      %v329 = vld [vmem:[%s2 + $0x38] sm:$0xf]
      %v330 = vld [vmem:[%s2 + $0x3c] sm:$0xf]
      %v331 = vld [vmem:[%s2 + $0x40] sm:$0xf]
      %v332 = vld [vmem:[%s2 + $0x44] sm:$0xf]
      %v333 = vld [vmem:[%s2 + $0x48] sm:$0xf]
      %v334 = vld [vmem:[%s2 + $0x4c] sm:$0xf]
      %v335 = vld [vmem:[%s2 + $0x50] sm:$0xf]
      %v336 = vld [vmem:[%s2 + $0x54] sm:$0xf]
      %v337 = vld [vmem:[%s2 + $0x58] sm:$0xf]
      %v338 = vld [vmem:[%s2 + $0x5c] sm:$0xf]
      %v339 = vld [vmem:[%s2 + $0x60] sm:$0xf]
      %v340 = vld [vmem:[%s2 + $0x64] sm:$0xf]
      %v341 = vld [vmem:[%s2 + $0x68] sm:$0xf]
      %v342 = vld [vmem:[%s2 + $0x6c] sm:$0xf]
      %v343 = vld [vmem:[%s2 + $0x70] sm:$0xf]
      %v344 = vld [vmem:[%s2 + $0x74] sm:$0xf]
      %v345 = vld [vmem:[%s2 + $0x78] sm:$0xf]
      %v346 = vld [vmem:[%s2 + $0x7c] sm:$0xf]
      %v379 = vunpack.c.l.b16 %v315
      %v380 = vunpack.c.l.b16 %v316
      %v381 = vunpack.c.l.b16 %v317
      %v382 = vunpack.c.l.b16 %v318
      %v383 = vunpack.c.l.b16 %v319
      %v384 = vunpack.c.l.b16 %v320
      %v385 = vunpack.c.l.b16 %v321
      %v386 = vunpack.c.l.b16 %v322
      %v387 = vunpack.c.l.b16 %v323
      %v388 = vunpack.c.l.b16 %v324
      %v389 = vunpack.c.l.b16 %v325
      %v390 = vunpack.c.l.b16 %v326
      %v391 = vunpack.c.l.b16 %v327
      %v392 = vunpack.c.l.b16 %v328
      %v393 = vunpack.c.l.b16 %v329
      %v394 = vunpack.c.l.b16 %v330
      %v395 = vunpack.c.l.b16 %v331
      %v396 = vunpack.c.l.b16 %v332
      %v397 = vunpack.c.l.b16 %v333
      %v398 = vunpack.c.l.b16 %v334
      %v399 = vunpack.c.l.b16 %v335
      %v400 = vunpack.c.l.b16 %v336
      %v401 = vunpack.c.l.b16 %v337
      %v402 = vunpack.c.l.b16 %v338
      %v403 = vunpack.c.l.b16 %v339
      %v404 = vunpack.c.l.b16 %v340
      %v405 = vunpack.c.l.b16 %v341
      %v406 = vunpack.c.l.b16 %v342
      %v407 = vunpack.c.l.b16 %v343
      %v408 = vunpack.c.l.b16 %v344
      %v409 = vunpack.c.l.b16 %v345
      %v410 = vunpack.c.l.b16 %v346
      %v411 = vpack.c.b16 %v380, %v379
      %v412 = vpack.c.b16 %v382, %v381
      %v413 = vpack.c.b16 %v384, %v383
      %v414 = vpack.c.b16 %v386, %v385
      %v415 = vpack.c.b16 %v388, %v387
      %v416 = vpack.c.b16 %v390, %v389
      %v417 = vpack.c.b16 %v392, %v391
      %v418 = vpack.c.b16 %v394, %v393
      %v419 = vpack.c.b16 %v396, %v395
      %v420 = vpack.c.b16 %v398, %v397
      %v421 = vpack.c.b16 %v400, %v399
      %v422 = vpack.c.b16 %v402, %v401
      %v423 = vpack.c.b16 %v404, %v403
      %v424 = vpack.c.b16 %v406, %v405
      %v425 = vpack.c.b16 %v408, %v407
      %v426 = vpack.c.b16 %v410, %v409
      %443 = vmatprep.subr.bf16.mxu0 0
      %444 = vmatpush1.bf16.msra.mxu0 %v418
      %445 = vmatprep.subr.bf16.mxu0 0
      %446 = vmatpush1.bf16.msra.mxu0 %v417
      %447 = vmatprep.subr.bf16.mxu0 0
      %448 = vmatpush1.bf16.msra.mxu0 %v416
      %449 = vmatprep.subr.bf16.mxu0 0
      %450 = vmatpush1.bf16.msra.mxu0 %v415
      %451 = vmatprep.subr.bf16.mxu0 0
      %452 = vmatpush1.bf16.msra.mxu0 %v414
      %453 = vmatprep.subr.bf16.mxu0 0
      %454 = vmatpush1.bf16.msra.mxu0 %v413
      %455 = vmatprep.subr.bf16.mxu0 0
      %456 = vmatpush1.bf16.msra.mxu0 %v412
      %457 = vmatprep.subr.bf16.mxu0 0
      %458 = vmatpush1.bf16.msra.mxu0 %v411
      %459 = vmatprep.subr.bf16.mxu0 0
      %460 = vmatpush2.bf16.msra.mxu0 %v426
      %461 = vmatprep.subr.bf16.mxu0 0
      %462 = vmatpush2.bf16.msra.mxu0 %v425
      %463 = vmatprep.subr.bf16.mxu0 0
      %464 = vmatpush2.bf16.msra.mxu0 %v424
      %465 = vmatprep.subr.bf16.mxu0 0
      %466 = vmatpush2.bf16.msra.mxu0 %v423
      %467 = vmatprep.subr.bf16.mxu0 0
      %468 = vmatpush2.bf16.msra.mxu0 %v422
      %469 = vmatprep.subr.bf16.mxu0 0
      %470 = vmatpush2.bf16.msra.mxu0 %v421
      %471 = vmatprep.subr.bf16.mxu0 0
      %472 = vmatpush2.bf16.msra.mxu0 %v420
      %473 = vmatprep.subr.bf16.mxu0 0
      %474 = vmatpush2.bf16.msra.mxu0 %v419
      %475 = vmatprep.mubr.bf16.mxu0 %v307
      %476 = vmatmul.mubr.bf16.gmra.mxu0 %v283
      %v477 = vpop.f32.mrf.mxu0
      %v478 = vadd.f32 0.0, %v477
      %v479 = vpop.f32.mrf.mxu0
      %v480 = vpop.f32.mrf.mxu0
      %v481 = vadd.f32 0.0, %v480
      %v482 = vpop.f32.mrf.mxu0
      %483 = vmatprep.mubr.bf16.mxu0 %v308
      %484 = vmatmul.mubr.bf16.gmra.mxu0 %v284
      %v485 = vpop.f32.mrf.mxu0
      %v486 = vadd.f32 0.0, %v485
      %v487 = vpop.f32.mrf.mxu0
      %v488 = vpop.f32.mrf.mxu0
      %v489 = vadd.f32 0.0, %v488
      %v490 = vpop.f32.mrf.mxu0
      %491 = vmatprep.mubr.bf16.mxu0 %v309
      %492 = vmatmul.mubr.bf16.gmra.mxu0 %v285
      %v493 = vpop.f32.mrf.mxu0
      %v494 = vadd.f32 0.0, %v493
      %v495 = vpop.f32.mrf.mxu0
      %v496 = vpop.f32.mrf.mxu0
      %v497 = vadd.f32 0.0, %v496
      %v498 = vpop.f32.mrf.mxu0
      %499 = vmatprep.mubr.bf16.mxu0 %v310
      %500 = vmatmul.mubr.bf16.gmra.mxu0 %v286
      %v501 = vpop.f32.mrf.mxu0
      %v502 = vadd.f32 0.0, %v501
      %v503 = vpop.f32.mrf.mxu0
      %v504 = vpop.f32.mrf.mxu0
      %v505 = vadd.f32 0.0, %v504
      %v506 = vpop.f32.mrf.mxu0
      %507 = vdwg.mxu0
      %v508 = vld [vmem:[%s3] sm:$0x1]
      %v509 = vld [vmem:[%s4] sm:$0x1]
      %v511 = vlaneseq
      %v512 = vshrl.u32 %v511, 7
      %v513 = vsub.s32 0, %v512
      %v514 = vrot.slane %v508, %v513
      %v516 = vmul.f32 %v478, %v514
      %v517 = vmul.f32 %v481, %v514
      %v518 = vmul.f32 %v486, %v514
      %v519 = vmul.f32 %v489, %v514
      %v520 = vmul.f32 %v494, %v514
      %v521 = vmul.f32 %v497, %v514
      %v522 = vmul.f32 %v502, %v514
      %v523 = vmul.f32 %v505, %v514
      %v525 = vlaneseq
      %v526 = vshrl.u32 %v525, 7
      %v527 = vsub.s32 0, %v526
      %v528 = vrot.slane %v509, %v527
      %v530 = vadd.f32 %v516, %v528
      %v531 = vadd.f32 %v517, %v528
      %v532 = vadd.f32 %v518, %v528
      %v533 = vadd.f32 %v519, %v528
      %v534 = vadd.f32 %v520, %v528
      %v535 = vadd.f32 %v521, %v528
      %v536 = vadd.f32 %v522, %v528
      %v537 = vadd.f32 %v523, %v528
      %v538 = vsub.f32 0.0, %v530
      %v539 = vsub.f32 0.0, %v531
      %v540 = vsub.f32 0.0, %v532
      %v541 = vsub.f32 0.0, %v533
      %v542 = vsub.f32 0.0, %v534
      %v543 = vsub.f32 0.0, %v535
      %v544 = vsub.f32 0.0, %v536
      %v545 = vsub.f32 0.0, %v537
      %v546 = vmul.f32 %v538, 1.442695
      %v547 = vpow.pop %v546
      %v548 = vmul.f32 %v539, 1.442695
      %v549 = vpow.pop %v548
      %v550 = vmul.f32 %v540, 1.442695
      %v551 = vpow.pop %v550
      %v552 = vmul.f32 %v541, 1.442695
      %v553 = vpow.pop %v552
      %v554 = vmul.f32 %v542, 1.442695
      %v555 = vpow.pop %v554
      %v556 = vmul.f32 %v543, 1.442695
      %v557 = vpow.pop %v556
      %v558 = vmul.f32 %v544, 1.442695
      %v559 = vpow.pop %v558
      %v560 = vmul.f32 %v545, 1.442695
      %v561 = vpow.pop %v560
      %v562 = vadd.f32 %v547, 1.0
      %v563 = vadd.f32 %v549, 1.0
      %v564 = vadd.f32 %v551, 1.0
      %v565 = vadd.f32 %v553, 1.0
      %v566 = vadd.f32 %v555, 1.0
      %v567 = vadd.f32 %v557, 1.0
      %v568 = vadd.f32 %v559, 1.0
      %v569 = vadd.f32 %v561, 1.0
      %v570 = vrcp.pop %v562
      %v571 = vrcp.pop %v563
      %v572 = vrcp.pop %v564
      %v573 = vrcp.pop %v565
      %v574 = vrcp.pop %v566
      %v575 = vrcp.pop %v567
      %v576 = vrcp.pop %v568
      %v577 = vrcp.pop %v569
      %v578 = vmul.f32 %v530, %v570
      %v579 = vmul.f32 %v531, %v571
      %v580 = vmul.f32 %v532, %v572
      %v581 = vmul.f32 %v533, %v573
      %v582 = vmul.f32 %v534, %v574
      %v583 = vmul.f32 %v535, %v575
      %v584 = vmul.f32 %v536, %v576
      %v585 = vmul.f32 %v537, %v577
      %vm586 = vcmask 31744
      %587 = vst.msk [vmem:[%s248] sm:$0xff] %vm586, %v578
      %588 = vst.msk [vmem:[%s248 + $0x8] sm:$0xff] %vm586, %v579
      %589 = vst.msk [vmem:[%s248 + $0x10] sm:$0xff] %vm586, %v580
      %590 = vst.msk [vmem:[%s248 + $0x18] sm:$0xff] %vm586, %v581
      %591 = vst.msk [vmem:[%s248 + $0x20] sm:$0xff] %vm586, %v582
      %592 = vst.msk [vmem:[%s248 + $0x28] sm:$0xff] %vm586, %v583
      %593 = vst.msk [vmem:[%s248 + $0x30] sm:$0xff] %vm586, %v584
      %594 = vst.msk [vmem:[%s248 + $0x38] sm:$0xff] %vm586, %v585
      %s595 = smul.u32 8, %s16
      %p596 = scmp.lt.s32.totalorder %s595, 63
      %s597 = scalar_select %p596, %s595, 63
      %s598 = smul.addr %s597, 8
      %s599 = scalar_lea.vmem %s5, %s598
      // Predicated region
      $region41: #{csp_bottleneck_forward.5} parent=39 // pred_check
        %p600 = pneg %p149
      $region42: #{csp_bottleneck_forward.5} parent=39 // pred_check_branch
        %602 = sbr.rel (%p600) target = $region44
      $region43: #{csp_bottleneck_forward.5} parent=39 // pred_region
        %s603 = smul.u32 8, %s16
      $region44: #{csp_bottleneck_forward.5} parent=39 // pred_fallthru
        _
    $region40: #{csp_bottleneck_forward.5} parent=5 // pred_fallthru
      _
    %p604 = scmp.le.s32.totalorder 2, %s11
    // Predicated region
    $region45: #{csp_bottleneck_forward.5} parent=5 // pred_check
      %p605 = pneg %p604
    $region46: #{csp_bottleneck_forward.5} parent=5 // pred_check_branch
      %607 = sbr.rel (%p605) target = $region48
    $region47: #{csp_bottleneck_forward.5} parent=5 // pred_region
      %s608 = ssub.s32 %s11, 2
      // Predicated region
      $region49: #{csp_bottleneck_forward.5} parent=47 // pred_check
        %p609 = pneg %p155
      $region50: #{csp_bottleneck_forward.5} parent=47 // pred_check_branch
        %611 = sbr.rel (%p609) target = $region52
      $region51: #{csp_bottleneck_forward.5} parent=47 // pred_region
        %s612 = smul.u32 8, %s17
        %p613 = scmp.lt.s32.totalorder %s612, 63
        %s614 = scalar_select %p613, %s612, 63
        %s615 = smul.addr %s614, 8
        %s616 = scalar_lea.vmem %s5, %s615
      $region52: #{csp_bottleneck_forward.5} parent=47 // pred_fallthru
        _
    $region48: #{csp_bottleneck_forward.5} parent=5 // pred_fallthru
      _
  $region6: #{csp_bottleneck_forward.5} parent=0 // loop_footer
    %s15 = sadd.s32 1, %s11
  $region7: #{csp_bottleneck_forward.5} parent=0 // loop_footer_branch
    %10 = sbr.rel target = $region3
  $region8: #{csp_bottleneck_forward.5} parent=0 // loop_exit
    _

</llo_original>
